<compile_context>
chip_gen: v5e
topology: v5e:2x2
jax: 0.10.0
libtpu: 0.0.40
codegen_flags: <defaults>
</compile_context>

<pallas_src>
import jax
import jax.numpy as jnp
from jax import lax
from jax.experimental import pallas as pl
from jax.experimental.pallas import tpu as pltpu

BN_EPS = 1e-5
NORMALIZE_EPS = 1e-12
F_PAD = 128  # lane-dense padded feature width for every internal activation

# Architecture (matches the nn.Module).
ENC_DIMS = [(16, 128), (128, 64), (64, 64), (64, 32)]
DEC_DIMS = [(32, 64), (64, 64), (64, 128), (128, 16)]
ALL_DIMS = ENC_DIMS + DEC_DIMS
BN_DIMS = [128, 64, 64, 64, 64, 128]
D_IN = ENC_DIMS[0][0]           # 16
D_OUT = DEC_DIMS[-1][1]         # 16
D_BOTTLENECK = ENC_DIMS[-1][1]  # 32
N_LAYERS = len(ALL_DIMS)        # 8
N_VECS = 16                     # 2 biases + 12 gamma/beta, padded to 16 rows

# Vector-slab row layout.
VEC_B4 = 0   # bottleneck bias
VEC_B8 = 1   # output bias
VEC_BN0 = 2  # gamma_j at 2+2j, beta_j at 3+2j


def deep_autoencoder_kernel(x_ref, w_ref, v_ref, out_ref):
    # x_ref:   (N, 16)  f32 — narrow, no padding
    # w_ref:   (8, 128, 128) f32 — layer k weight in [k, :din_k, :dout_k]
    # v_ref:   (16, 128) f32 — packed biases / gamma / beta (zero padded)
    # out_ref: (N, 16)  f32 — narrow, no padding
    x = x_ref[...]
    n = x.shape[0]
    inv_n = 1.0 / float(n)  # static; avoids per-layer divides

    def matmul(h, w):
        # f32 operands, f32 accumulator; MXU rounds operands to bf16 (DEFAULT).
        return jnp.dot(h, w, preferred_element_type=jnp.float32)

    def bn_relu(h, bn_idx):
        # Training-mode BatchNorm1d (batch mean, biased batch var) with
        # single-pass statistics, folded into one scale/shift, then ReLU.
        # Padded lanes: h = 0, gamma = beta = 0 -> stay exactly zero.
        row = VEC_BN0 + 2 * bn_idx
        gamma = v_ref[row:row + 1, :]          # (1, 128)
        beta = v_ref[row + 1:row + 2, :]       # (1, 128)
        s = jnp.sum(h, axis=0, keepdims=True)
        ss = jnp.sum(h * h, axis=0, keepdims=True)
        mean = s * inv_n
        var = jnp.maximum(ss * inv_n - mean * mean, 0.0)
        scale = gamma * lax.rsqrt(var + BN_EPS)
        shift = beta - mean * scale
        return jnp.maximum(h * scale + shift, 0.0)

    # ---- encoder ---- (pre-BN linear biases cancel exactly against BN mean)
    h = bn_relu(matmul(x, w_ref[0][:D_IN, :]), 0)    # (N, 128)
    h = bn_relu(matmul(h, w_ref[1]), 1)              # (N, 64 -> 128 padded)
    h = bn_relu(matmul(h, w_ref[2]), 2)              # (N, 64 -> 128 padded)
    z = matmul(h, w_ref[3]) + v_ref[VEC_B4:VEC_B4 + 1, :]   # (N, 32 -> padded)

    # ---- F.normalize(z, dim=1) ---- padded lanes of z are exactly zero, so
    # reducing over all 128 lanes equals reducing over the 32 real features.
    sumsq = jnp.sum(z * z, axis=1, keepdims=True)
    z = z * lax.rsqrt(jnp.maximum(sumsq, NORMALIZE_EPS * NORMALIZE_EPS))

    # ---- decoder ----
    h = bn_relu(matmul(z, w_ref[4]), 3)              # (N, 64 -> 128 padded)
    h = bn_relu(matmul(h, w_ref[5]), 4)              # (N, 64 -> 128 padded)
    h = bn_relu(matmul(h, w_ref[6]), 5)              # (N, 128)

    # Final linear: slice the weight to its 16 real output columns so the
    # kernel writes a narrow (N, 16) result (8x less output HBM traffic).
    w_last = w_ref[N_LAYERS - 1][:, :D_OUT]          # (128, 16)
    b_last = v_ref[VEC_B8:VEC_B8 + 1, :][:, :D_OUT]  # (1, 16)
    out_ref[...] = (matmul(h, w_last) + b_last).astype(out_ref.dtype)


def _pick_vmem_limit_bytes():
    """Generation-dependent VMEM limit: ~3/4 of physical, capped at 100 MiB."""
    fallback_phys = 64 * 1024 * 1024  # safe for all generations (>= v7x physical)
    try:
        info = pltpu.get_tpu_info()
        phys = getattr(info, "vmem_capacity_bytes", None) or fallback_phys
    except Exception:
        phys = fallback_phys
    return int(min(phys * 3 // 4, 100 * 1024 * 1024))


_VMEM_LIMIT_BYTES = _pick_vmem_limit_bytes()


def init_params(key):
    """Deterministic synthetic parameters matching the nn.Module shapes."""
    params = {"w": [], "b": [], "gamma": [], "beta": []}
    keys = jax.random.split(key, 2 * len(ALL_DIMS) + 2 * len(BN_DIMS))
    i = 0
    for (din, dout) in ALL_DIMS:
        # stored as (in, out) — already "transposed" vs torch (out, in)
        scale = 1.0 / jnp.sqrt(jnp.float32(din))
        params["w"].append(
            jax.random.uniform(keys[i], (din, dout), jnp.float32, -scale, scale))
        i += 1
        params["b"].append(
            jax.random.uniform(keys[i], (dout,), jnp.float32, -scale, scale))
        i += 1
    for d in BN_DIMS:
        params["gamma"].append(
            1.0 + 0.1 * jax.random.normal(keys[i], (d,), jnp.float32))
        i += 1
        params["beta"].append(
            0.1 * jax.random.normal(keys[i], (d,), jnp.float32))
        i += 1
    return params


def pack_params(params):
    """Pack all parameters into two DMA slabs (done once, outside the kernel).

    Pre-BN linear biases (indices 0,1,2,4,5,6) are intentionally omitted:
    training-mode BatchNorm subtracts the batch mean, so they cancel exactly.
    """
    w_slab = jnp.zeros((N_LAYERS, F_PAD, F_PAD), jnp.float32)
    for k, w in enumerate(params["w"]):
        din, dout = w.shape
        w_slab = w_slab.at[k, :din, :dout].set(w)

    v_slab = jnp.zeros((N_VECS, F_PAD), jnp.float32)
    v_slab = v_slab.at[VEC_B4, :D_BOTTLENECK].set(params["b"][3])
    v_slab = v_slab.at[VEC_B8, :D_OUT].set(params["b"][7])
    for j, (g, be) in enumerate(zip(params["gamma"], params["beta"])):
        d = g.shape[-1]
        v_slab = v_slab.at[VEC_BN0 + 2 * j, :d].set(g)
        v_slab = v_slab.at[VEC_BN0 + 2 * j + 1, :d].set(be)
    return w_slab, v_slab


@jax.jit
def deep_autoencoder(x, w_slab, v_slab):
    n = x.shape[0]
    vmem = pl.BlockSpec(memory_space=pltpu.MemorySpace.VMEM)
    cost = pl.CostEstimate(
        flops=2 * n * F_PAD * F_PAD * N_LAYERS,
        transcendentals=n + len(BN_DIMS) * F_PAD,
        bytes_accessed=4 * (n * D_IN + N_LAYERS * F_PAD * F_PAD
                            + N_VECS * F_PAD + n * D_OUT),
    )
    return pl.pallas_call(
        deep_autoencoder_kernel,
        out_shape=jax.ShapeDtypeStruct((n, D_OUT), jnp.float32),
        in_specs=[vmem, vmem, vmem],
        out_specs=vmem,
        compiler_params=pltpu.CompilerParams(
            vmem_limit_bytes=_VMEM_LIMIT_BYTES),
        cost_estimate=cost,
    )(x.astype(jnp.float32), w_slab, v_slab)


if __name__ == "__main__":
    key = jax.random.PRNGKey(0)
    k_params, k_x = jax.random.split(key)
    params = init_params(k_params)
    w_slab, v_slab = pack_params(params)

    # Batch sized to fill MXU rows while staying a small, fast example run.
    N = 256
    x = jax.random.normal(k_x, (N, D_IN), jnp.float32)

    out = deep_autoencoder(x, w_slab, v_slab)
    jax.block_until_ready(out)
    assert out.shape == (N, D_OUT), out.shape
    assert bool(jnp.all(jnp.isfinite(out)))
    print("KERNEL_OK")
</pallas_src>

<mosaic_0001>
module attributes {stable_mosaic.version = 11 : i64} {
  func.func @deep_autoencoder_kernel(%arg0: memref<256x16xf32, #tpu.memory_space<vmem>>, %arg1: memref<8x128x128xf32, #tpu.memory_space<vmem>>, %arg2: memref<16x128xf32, #tpu.memory_space<vmem>>, %arg3: memref<256x16xf32, #tpu.memory_space<vmem>>) attributes {dimension_semantics = [], scalar_prefetch = 0 : i64, scratch_operands = 0 : i64, tpu.core_type = #tpu.core_type<tc>} {
    %c0 = arith.constant 0 : index
    %c0_0 = arith.constant 0 : index
    %0 = vector.load %arg0[%c0, %c0_0] : memref<256x16xf32, #tpu.memory_space<vmem>>, vector<256x16xf32>
    %c0_1 = arith.constant 0 : index
    %c0_2 = arith.constant 0 : index
    %c0_3 = arith.constant 0 : index
    %1 = vector.load %arg1[%c0_1, %c0_2, %c0_3] : memref<8x128x128xf32, #tpu.memory_space<vmem>>, vector<1x128x128xf32>
    %2 = vector.shape_cast %1 : vector<1x128x128xf32> to vector<128x128xf32>
    %3 = vector.extract_strided_slice %2 {offsets = [0, 0], sizes = [16, 128], strides = [1, 1]} : vector<128x128xf32> to vector<16x128xf32>
    %cst = arith.constant dense<0.000000e+00> : vector<256x128xf32>
    %4 = tpu.matmul %0, %3, %cst {dimension_numbers = #tpu.dot_dimension_numbers<[1], [0], [0], [1], [0, 0, 1, 1], [], []>} : vector<256x16xf32>, vector<16x128xf32>, vector<256x128xf32> -> vector<256x128xf32>
    %c2 = arith.constant 2 : index
    %c0_4 = arith.constant 0 : index
    %5 = vector.load %arg2[%c2, %c0_4] : memref<16x128xf32, #tpu.memory_space<vmem>>, vector<1x128xf32>
    %c3 = arith.constant 3 : index
    %c0_5 = arith.constant 0 : index
    %6 = vector.load %arg2[%c3, %c0_5] : memref<16x128xf32, #tpu.memory_space<vmem>>, vector<1x128xf32>
    %cst_6 = arith.constant dense<0.000000e+00> : vector<128xf32>
    %7 = vector.multi_reduction <add>, %4, %cst_6 [0] : vector<256x128xf32> to vector<128xf32>
    %8 = vector.shape_cast %7 : vector<128xf32> to vector<1x128xf32>
    %9 = arith.mulf %4, %4 : vector<256x128xf32>
    %cst_7 = arith.constant dense<0.000000e+00> : vector<128xf32>
    %10 = vector.multi_reduction <add>, %9, %cst_7 [0] : vector<256x128xf32> to vector<128xf32>
    %11 = vector.shape_cast %10 : vector<128xf32> to vector<1x128xf32>
    %cst_8 = arith.constant 3.906250e-03 : f32
    %12 = vector.broadcast %cst_8 : f32 to vector<1x128xf32>
    %13 = arith.mulf %8, %12 : vector<1x128xf32>
    %cst_9 = arith.constant 3.906250e-03 : f32
    %14 = vector.broadcast %cst_9 : f32 to vector<1x128xf32>
    %15 = arith.mulf %11, %14 : vector<1x128xf32>
    %16 = arith.mulf %13, %13 : vector<1x128xf32>
    %17 = arith.subf %15, %16 : vector<1x128xf32>
    %cst_10 = arith.constant 0.000000e+00 : f32
    %18 = vector.broadcast %cst_10 : f32 to vector<1x128xf32>
    %19 = arith.maximumf %17, %18 : vector<1x128xf32>
    %cst_11 = arith.constant 9.99999974E-6 : f32
    %20 = vector.broadcast %cst_11 : f32 to vector<1x128xf32>
    %21 = arith.addf %19, %20 : vector<1x128xf32>
    %22 = math.rsqrt %21 : vector<1x128xf32>
    %23 = arith.mulf %5, %22 : vector<1x128xf32>
    %24 = arith.mulf %13, %23 : vector<1x128xf32>
    %25 = arith.subf %6, %24 : vector<1x128xf32>
    %26 = vector.broadcast %23 : vector<1x128xf32> to vector<256x128xf32>
    %27 = arith.mulf %4, %26 : vector<256x128xf32>
    %28 = vector.broadcast %25 : vector<1x128xf32> to vector<256x128xf32>
    %29 = arith.addf %27, %28 : vector<256x128xf32>
    %cst_12 = arith.constant 0.000000e+00 : f32
    %30 = vector.broadcast %cst_12 : f32 to vector<256x128xf32>
    %31 = arith.maximumf %29, %30 : vector<256x128xf32>
    %c1 = arith.constant 1 : index
    %c0_13 = arith.constant 0 : index
    %c0_14 = arith.constant 0 : index
    %32 = vector.load %arg1[%c1, %c0_13, %c0_14] : memref<8x128x128xf32, #tpu.memory_space<vmem>>, vector<1x128x128xf32>
    %33 = vector.shape_cast %32 : vector<1x128x128xf32> to vector<128x128xf32>
    %cst_15 = arith.constant dense<0.000000e+00> : vector<256x128xf32>
    %34 = tpu.matmul %31, %33, %cst_15 {dimension_numbers = #tpu.dot_dimension_numbers<[1], [0], [0], [1], [0, 0, 1, 1], [], []>} : vector<256x128xf32>, vector<128x128xf32>, vector<256x128xf32> -> vector<256x128xf32>
    %c4 = arith.constant 4 : index
    %c0_16 = arith.constant 0 : index
    %35 = vector.load %arg2[%c4, %c0_16] : memref<16x128xf32, #tpu.memory_space<vmem>>, vector<1x128xf32>
    %c5 = arith.constant 5 : index
    %c0_17 = arith.constant 0 : index
    %36 = vector.load %arg2[%c5, %c0_17] : memref<16x128xf32, #tpu.memory_space<vmem>>, vector<1x128xf32>
    %cst_18 = arith.constant dense<0.000000e+00> : vector<128xf32>
    %37 = vector.multi_reduction <add>, %34, %cst_18 [0] : vector<256x128xf32> to vector<128xf32>
    %38 = vector.shape_cast %37 : vector<128xf32> to vector<1x128xf32>
    %39 = arith.mulf %34, %34 : vector<256x128xf32>
    %cst_19 = arith.constant dense<0.000000e+00> : vector<128xf32>
    %40 = vector.multi_reduction <add>, %39, %cst_19 [0] : vector<256x128xf32> to vector<128xf32>
    %41 = vector.shape_cast %40 : vector<128xf32> to vector<1x128xf32>
    %cst_20 = arith.constant 3.906250e-03 : f32
    %42 = vector.broadcast %cst_20 : f32 to vector<1x128xf32>
    %43 = arith.mulf %38, %42 : vector<1x128xf32>
    %cst_21 = arith.constant 3.906250e-03 : f32
    %44 = vector.broadcast %cst_21 : f32 to vector<1x128xf32>
    %45 = arith.mulf %41, %44 : vector<1x128xf32>
    %46 = arith.mulf %43, %43 : vector<1x128xf32>
    %47 = arith.subf %45, %46 : vector<1x128xf32>
    %cst_22 = arith.constant 0.000000e+00 : f32
    %48 = vector.broadcast %cst_22 : f32 to vector<1x128xf32>
    %49 = arith.maximumf %47, %48 : vector<1x128xf32>
    %cst_23 = arith.constant 9.99999974E-6 : f32
    %50 = vector.broadcast %cst_23 : f32 to vector<1x128xf32>
    %51 = arith.addf %49, %50 : vector<1x128xf32>
    %52 = math.rsqrt %51 : vector<1x128xf32>
    %53 = arith.mulf %35, %52 : vector<1x128xf32>
    %54 = arith.mulf %43, %53 : vector<1x128xf32>
    %55 = arith.subf %36, %54 : vector<1x128xf32>
    %56 = vector.broadcast %53 : vector<1x128xf32> to vector<256x128xf32>
    %57 = arith.mulf %34, %56 : vector<256x128xf32>
    %58 = vector.broadcast %55 : vector<1x128xf32> to vector<256x128xf32>
    %59 = arith.addf %57, %58 : vector<256x128xf32>
    %cst_24 = arith.constant 0.000000e+00 : f32
    %60 = vector.broadcast %cst_24 : f32 to vector<256x128xf32>
    %61 = arith.maximumf %59, %60 : vector<256x128xf32>
    %c2_25 = arith.constant 2 : index
    %c0_26 = arith.constant 0 : index
    %c0_27 = arith.constant 0 : index
    %62 = vector.load %arg1[%c2_25, %c0_26, %c0_27] : memref<8x128x128xf32, #tpu.memory_space<vmem>>, vector<1x128x128xf32>
    %63 = vector.shape_cast %62 : vector<1x128x128xf32> to vector<128x128xf32>
    %cst_28 = arith.constant dense<0.000000e+00> : vector<256x128xf32>
    %64 = tpu.matmul %61, %63, %cst_28 {dimension_numbers = #tpu.dot_dimension_numbers<[1], [0], [0], [1], [0, 0, 1, 1], [], []>} : vector<256x128xf32>, vector<128x128xf32>, vector<256x128xf32> -> vector<256x128xf32>
    %c6 = arith.constant 6 : index
    %c0_29 = arith.constant 0 : index
    %65 = vector.load %arg2[%c6, %c0_29] : memref<16x128xf32, #tpu.memory_space<vmem>>, vector<1x128xf32>
    %c7 = arith.constant 7 : index
    %c0_30 = arith.constant 0 : index
    %66 = vector.load %arg2[%c7, %c0_30] : memref<16x128xf32, #tpu.memory_space<vmem>>, vector<1x128xf32>
    %cst_31 = arith.constant dense<0.000000e+00> : vector<128xf32>
    %67 = vector.multi_reduction <add>, %64, %cst_31 [0] : vector<256x128xf32> to vector<128xf32>
    %68 = vector.shape_cast %67 : vector<128xf32> to vector<1x128xf32>
    %69 = arith.mulf %64, %64 : vector<256x128xf32>
    %cst_32 = arith.constant dense<0.000000e+00> : vector<128xf32>
    %70 = vector.multi_reduction <add>, %69, %cst_32 [0] : vector<256x128xf32> to vector<128xf32>
    %71 = vector.shape_cast %70 : vector<128xf32> to vector<1x128xf32>
    %cst_33 = arith.constant 3.906250e-03 : f32
    %72 = vector.broadcast %cst_33 : f32 to vector<1x128xf32>
    %73 = arith.mulf %68, %72 : vector<1x128xf32>
    %cst_34 = arith.constant 3.906250e-03 : f32
    %74 = vector.broadcast %cst_34 : f32 to vector<1x128xf32>
    %75 = arith.mulf %71, %74 : vector<1x128xf32>
    %76 = arith.mulf %73, %73 : vector<1x128xf32>
    %77 = arith.subf %75, %76 : vector<1x128xf32>
    %cst_35 = arith.constant 0.000000e+00 : f32
    %78 = vector.broadcast %cst_35 : f32 to vector<1x128xf32>
    %79 = arith.maximumf %77, %78 : vector<1x128xf32>
    %cst_36 = arith.constant 9.99999974E-6 : f32
    %80 = vector.broadcast %cst_36 : f32 to vector<1x128xf32>
    %81 = arith.addf %79, %80 : vector<1x128xf32>
    %82 = math.rsqrt %81 : vector<1x128xf32>
    %83 = arith.mulf %65, %82 : vector<1x128xf32>
    %84 = arith.mulf %73, %83 : vector<1x128xf32>
    %85 = arith.subf %66, %84 : vector<1x128xf32>
    %86 = vector.broadcast %83 : vector<1x128xf32> to vector<256x128xf32>
    %87 = arith.mulf %64, %86 : vector<256x128xf32>
    %88 = vector.broadcast %85 : vector<1x128xf32> to vector<256x128xf32>
    %89 = arith.addf %87, %88 : vector<256x128xf32>
    %cst_37 = arith.constant 0.000000e+00 : f32
    %90 = vector.broadcast %cst_37 : f32 to vector<256x128xf32>
    %91 = arith.maximumf %89, %90 : vector<256x128xf32>
    %c3_38 = arith.constant 3 : index
    %c0_39 = arith.constant 0 : index
    %c0_40 = arith.constant 0 : index
    %92 = vector.load %arg1[%c3_38, %c0_39, %c0_40] : memref<8x128x128xf32, #tpu.memory_space<vmem>>, vector<1x128x128xf32>
    %93 = vector.shape_cast %92 : vector<1x128x128xf32> to vector<128x128xf32>
    %cst_41 = arith.constant dense<0.000000e+00> : vector<256x128xf32>
    %94 = tpu.matmul %91, %93, %cst_41 {dimension_numbers = #tpu.dot_dimension_numbers<[1], [0], [0], [1], [0, 0, 1, 1], [], []>} : vector<256x128xf32>, vector<128x128xf32>, vector<256x128xf32> -> vector<256x128xf32>
    %c0_42 = arith.constant 0 : index
    %c0_43 = arith.constant 0 : index
    %95 = vector.load %arg2[%c0_42, %c0_43] : memref<16x128xf32, #tpu.memory_space<vmem>>, vector<1x128xf32>
    %96 = vector.broadcast %95 : vector<1x128xf32> to vector<256x128xf32>
    %97 = arith.addf %94, %96 : vector<256x128xf32>
    %98 = arith.mulf %97, %97 : vector<256x128xf32>
    %cst_44 = arith.constant dense<0.000000e+00> : vector<256xf32>
    %99 = vector.multi_reduction <add>, %98, %cst_44 [1] : vector<256x128xf32> to vector<256xf32>
    %100 = vector.shape_cast %99 : vector<256xf32> to vector<256x1xf32>
    %cst_45 = arith.constant 1.000000e-24 : f32
    %101 = vector.broadcast %cst_45 : f32 to vector<256x1xf32>
    %102 = arith.maximumf %100, %101 : vector<256x1xf32>
    %103 = math.rsqrt %102 : vector<256x1xf32>
    %104 = vector.broadcast %103 : vector<256x1xf32> to vector<256x128xf32>
    %105 = arith.mulf %97, %104 : vector<256x128xf32>
    %c4_46 = arith.constant 4 : index
    %c0_47 = arith.constant 0 : index
    %c0_48 = arith.constant 0 : index
    %106 = vector.load %arg1[%c4_46, %c0_47, %c0_48] : memref<8x128x128xf32, #tpu.memory_space<vmem>>, vector<1x128x128xf32>
    %107 = vector.shape_cast %106 : vector<1x128x128xf32> to vector<128x128xf32>
    %cst_49 = arith.constant dense<0.000000e+00> : vector<256x128xf32>
    %108 = tpu.matmul %105, %107, %cst_49 {dimension_numbers = #tpu.dot_dimension_numbers<[1], [0], [0], [1], [0, 0, 1, 1], [], []>} : vector<256x128xf32>, vector<128x128xf32>, vector<256x128xf32> -> vector<256x128xf32>
    %c8 = arith.constant 8 : index
    %c0_50 = arith.constant 0 : index
    %109 = vector.load %arg2[%c8, %c0_50] : memref<16x128xf32, #tpu.memory_space<vmem>>, vector<1x128xf32>
    %c9 = arith.constant 9 : index
    %c0_51 = arith.constant 0 : index
    %110 = vector.load %arg2[%c9, %c0_51] : memref<16x128xf32, #tpu.memory_space<vmem>>, vector<1x128xf32>
    %cst_52 = arith.constant dense<0.000000e+00> : vector<128xf32>
    %111 = vector.multi_reduction <add>, %108, %cst_52 [0] : vector<256x128xf32> to vector<128xf32>
    %112 = vector.shape_cast %111 : vector<128xf32> to vector<1x128xf32>
    %113 = arith.mulf %108, %108 : vector<256x128xf32>
    %cst_53 = arith.constant dense<0.000000e+00> : vector<128xf32>
    %114 = vector.multi_reduction <add>, %113, %cst_53 [0] : vector<256x128xf32> to vector<128xf32>
    %115 = vector.shape_cast %114 : vector<128xf32> to vector<1x128xf32>
    %cst_54 = arith.constant 3.906250e-03 : f32
    %116 = vector.broadcast %cst_54 : f32 to vector<1x128xf32>
    %117 = arith.mulf %112, %116 : vector<1x128xf32>
    %cst_55 = arith.constant 3.906250e-03 : f32
    %118 = vector.broadcast %cst_55 : f32 to vector<1x128xf32>
    %119 = arith.mulf %115, %118 : vector<1x128xf32>
    %120 = arith.mulf %117, %117 : vector<1x128xf32>
    %121 = arith.subf %119, %120 : vector<1x128xf32>
    %cst_56 = arith.constant 0.000000e+00 : f32
    %122 = vector.broadcast %cst_56 : f32 to vector<1x128xf32>
    %123 = arith.maximumf %121, %122 : vector<1x128xf32>
    %cst_57 = arith.constant 9.99999974E-6 : f32
    %124 = vector.broadcast %cst_57 : f32 to vector<1x128xf32>
    %125 = arith.addf %123, %124 : vector<1x128xf32>
    %126 = math.rsqrt %125 : vector<1x128xf32>
    %127 = arith.mulf %109, %126 : vector<1x128xf32>
    %128 = arith.mulf %117, %127 : vector<1x128xf32>
    %129 = arith.subf %110, %128 : vector<1x128xf32>
    %130 = vector.broadcast %127 : vector<1x128xf32> to vector<256x128xf32>
    %131 = arith.mulf %108, %130 : vector<256x128xf32>
    %132 = vector.broadcast %129 : vector<1x128xf32> to vector<256x128xf32>
    %133 = arith.addf %131, %132 : vector<256x128xf32>
    %cst_58 = arith.constant 0.000000e+00 : f32
    %134 = vector.broadcast %cst_58 : f32 to vector<256x128xf32>
    %135 = arith.maximumf %133, %134 : vector<256x128xf32>
    %c5_59 = arith.constant 5 : index
    %c0_60 = arith.constant 0 : index
    %c0_61 = arith.constant 0 : index
    %136 = vector.load %arg1[%c5_59, %c0_60, %c0_61] : memref<8x128x128xf32, #tpu.memory_space<vmem>>, vector<1x128x128xf32>
    %137 = vector.shape_cast %136 : vector<1x128x128xf32> to vector<128x128xf32>
    %cst_62 = arith.constant dense<0.000000e+00> : vector<256x128xf32>
    %138 = tpu.matmul %135, %137, %cst_62 {dimension_numbers = #tpu.dot_dimension_numbers<[1], [0], [0], [1], [0, 0, 1, 1], [], []>} : vector<256x128xf32>, vector<128x128xf32>, vector<256x128xf32> -> vector<256x128xf32>
    %c10 = arith.constant 10 : index
    %c0_63 = arith.constant 0 : index
    %139 = vector.load %arg2[%c10, %c0_63] : memref<16x128xf32, #tpu.memory_space<vmem>>, vector<1x128xf32>
    %c11 = arith.constant 11 : index
    %c0_64 = arith.constant 0 : index
    %140 = vector.load %arg2[%c11, %c0_64] : memref<16x128xf32, #tpu.memory_space<vmem>>, vector<1x128xf32>
    %cst_65 = arith.constant dense<0.000000e+00> : vector<128xf32>
    %141 = vector.multi_reduction <add>, %138, %cst_65 [0] : vector<256x128xf32> to vector<128xf32>
    %142 = vector.shape_cast %141 : vector<128xf32> to vector<1x128xf32>
    %143 = arith.mulf %138, %138 : vector<256x128xf32>
    %cst_66 = arith.constant dense<0.000000e+00> : vector<128xf32>
    %144 = vector.multi_reduction <add>, %143, %cst_66 [0] : vector<256x128xf32> to vector<128xf32>
    %145 = vector.shape_cast %144 : vector<128xf32> to vector<1x128xf32>
    %cst_67 = arith.constant 3.906250e-03 : f32
    %146 = vector.broadcast %cst_67 : f32 to vector<1x128xf32>
    %147 = arith.mulf %142, %146 : vector<1x128xf32>
    %cst_68 = arith.constant 3.906250e-03 : f32
    %148 = vector.broadcast %cst_68 : f32 to vector<1x128xf32>
    %149 = arith.mulf %145, %148 : vector<1x128xf32>
    %150 = arith.mulf %147, %147 : vector<1x128xf32>
    %151 = arith.subf %149, %150 : vector<1x128xf32>
    %cst_69 = arith.constant 0.000000e+00 : f32
    %152 = vector.broadcast %cst_69 : f32 to vector<1x128xf32>
    %153 = arith.maximumf %151, %152 : vector<1x128xf32>
    %cst_70 = arith.constant 9.99999974E-6 : f32
    %154 = vector.broadcast %cst_70 : f32 to vector<1x128xf32>
    %155 = arith.addf %153, %154 : vector<1x128xf32>
    %156 = math.rsqrt %155 : vector<1x128xf32>
    %157 = arith.mulf %139, %156 : vector<1x128xf32>
    %158 = arith.mulf %147, %157 : vector<1x128xf32>
    %159 = arith.subf %140, %158 : vector<1x128xf32>
    %160 = vector.broadcast %157 : vector<1x128xf32> to vector<256x128xf32>
    %161 = arith.mulf %138, %160 : vector<256x128xf32>
    %162 = vector.broadcast %159 : vector<1x128xf32> to vector<256x128xf32>
    %163 = arith.addf %161, %162 : vector<256x128xf32>
    %cst_71 = arith.constant 0.000000e+00 : f32
    %164 = vector.broadcast %cst_71 : f32 to vector<256x128xf32>
    %165 = arith.maximumf %163, %164 : vector<256x128xf32>
    %c6_72 = arith.constant 6 : index
    %c0_73 = arith.constant 0 : index
    %c0_74 = arith.constant 0 : index
    %166 = vector.load %arg1[%c6_72, %c0_73, %c0_74] : memref<8x128x128xf32, #tpu.memory_space<vmem>>, vector<1x128x128xf32>
    %167 = vector.shape_cast %166 : vector<1x128x128xf32> to vector<128x128xf32>
    %cst_75 = arith.constant dense<0.000000e+00> : vector<256x128xf32>
    %168 = tpu.matmul %165, %167, %cst_75 {dimension_numbers = #tpu.dot_dimension_numbers<[1], [0], [0], [1], [0, 0, 1, 1], [], []>} : vector<256x128xf32>, vector<128x128xf32>, vector<256x128xf32> -> vector<256x128xf32>
    %c12 = arith.constant 12 : index
    %c0_76 = arith.constant 0 : index
    %169 = vector.load %arg2[%c12, %c0_76] : memref<16x128xf32, #tpu.memory_space<vmem>>, vector<1x128xf32>
    %c13 = arith.constant 13 : index
    %c0_77 = arith.constant 0 : index
    %170 = vector.load %arg2[%c13, %c0_77] : memref<16x128xf32, #tpu.memory_space<vmem>>, vector<1x128xf32>
    %cst_78 = arith.constant dense<0.000000e+00> : vector<128xf32>
    %171 = vector.multi_reduction <add>, %168, %cst_78 [0] : vector<256x128xf32> to vector<128xf32>
    %172 = vector.shape_cast %171 : vector<128xf32> to vector<1x128xf32>
    %173 = arith.mulf %168, %168 : vector<256x128xf32>
    %cst_79 = arith.constant dense<0.000000e+00> : vector<128xf32>
    %174 = vector.multi_reduction <add>, %173, %cst_79 [0] : vector<256x128xf32> to vector<128xf32>
    %175 = vector.shape_cast %174 : vector<128xf32> to vector<1x128xf32>
    %cst_80 = arith.constant 3.906250e-03 : f32
    %176 = vector.broadcast %cst_80 : f32 to vector<1x128xf32>
    %177 = arith.mulf %172, %176 : vector<1x128xf32>
    %cst_81 = arith.constant 3.906250e-03 : f32
    %178 = vector.broadcast %cst_81 : f32 to vector<1x128xf32>
    %179 = arith.mulf %175, %178 : vector<1x128xf32>
    %180 = arith.mulf %177, %177 : vector<1x128xf32>
    %181 = arith.subf %179, %180 : vector<1x128xf32>
    %cst_82 = arith.constant 0.000000e+00 : f32
    %182 = vector.broadcast %cst_82 : f32 to vector<1x128xf32>
    %183 = arith.maximumf %181, %182 : vector<1x128xf32>
    %cst_83 = arith.constant 9.99999974E-6 : f32
    %184 = vector.broadcast %cst_83 : f32 to vector<1x128xf32>
    %185 = arith.addf %183, %184 : vector<1x128xf32>
    %186 = math.rsqrt %185 : vector<1x128xf32>
    %187 = arith.mulf %169, %186 : vector<1x128xf32>
    %188 = arith.mulf %177, %187 : vector<1x128xf32>
    %189 = arith.subf %170, %188 : vector<1x128xf32>
    %190 = vector.broadcast %187 : vector<1x128xf32> to vector<256x128xf32>
    %191 = arith.mulf %168, %190 : vector<256x128xf32>
    %192 = vector.broadcast %189 : vector<1x128xf32> to vector<256x128xf32>
    %193 = arith.addf %191, %192 : vector<256x128xf32>
    %cst_84 = arith.constant 0.000000e+00 : f32
    %194 = vector.broadcast %cst_84 : f32 to vector<256x128xf32>
    %195 = arith.maximumf %193, %194 : vector<256x128xf32>
    %c7_85 = arith.constant 7 : index
    %c0_86 = arith.constant 0 : index
    %c0_87 = arith.constant 0 : index
    %196 = vector.load %arg1[%c7_85, %c0_86, %c0_87] : memref<8x128x128xf32, #tpu.memory_space<vmem>>, vector<1x128x128xf32>
    %197 = vector.shape_cast %196 : vector<1x128x128xf32> to vector<128x128xf32>
    %198 = vector.extract_strided_slice %197 {offsets = [0, 0], sizes = [128, 16], strides = [1, 1]} : vector<128x128xf32> to vector<128x16xf32>
    %c1_88 = arith.constant 1 : index
    %c0_89 = arith.constant 0 : index
    %199 = vector.load %arg2[%c1_88, %c0_89] : memref<16x128xf32, #tpu.memory_space<vmem>>, vector<1x128xf32>
    %200 = vector.extract_strided_slice %199 {offsets = [0, 0], sizes = [1, 16], strides = [1, 1]} : vector<1x128xf32> to vector<1x16xf32>
    %cst_90 = arith.constant dense<0.000000e+00> : vector<256x16xf32>
    %201 = tpu.matmul %195, %198, %cst_90 {dimension_numbers = #tpu.dot_dimension_numbers<[1], [0], [0], [1], [0, 0, 1, 1], [], []>} : vector<256x128xf32>, vector<128x16xf32>, vector<256x16xf32> -> vector<256x16xf32>
    %202 = vector.broadcast %200 : vector<1x16xf32> to vector<256x16xf32>
    %203 = arith.addf %201, %202 : vector<256x16xf32>
    %c0_91 = arith.constant 0 : index
    %c0_92 = arith.constant 0 : index
    %204 = vector.load %arg3[%c0_91, %c0_92] : memref<256x16xf32, #tpu.memory_space<vmem>>, vector<256x16xf32>
    tpu.vector_store %arg3[%c0_91, %c0_92], %203 {strides = array<i32>} : memref<256x16xf32, #tpu.memory_space<vmem>>, vector<256x16xf32>,
    return
  }
}

</mosaic_0001>

<llo_original>
// kernel: deep_autoencoder.1
$region0: #{deep_autoencoder.1}
  #allocation0 [shape = 'u32[]', space=smem, size = 0x4, offset = 0x4, fixed_abs, tag = 'smem constant byte address 0x4 - core index']
  #allocation1 [shape = 'u32[72,128]{1,0:T(1,128)}', space=vmem, size = 0x9000, scoped, tag = 'internal scratch']
  %s0 = inlined_call_operand.vmem [shape: f32[256,16], index: 0, kind: input, shape index: {}]
  %s1 = inlined_call_operand.hbm [shape: f32[8,128,128], index: 1, kind: input, shape index: {}]
  %s2 = inlined_call_operand.vmem [shape: f32[16,128], index: 2, kind: input, shape index: {}]
  %s3 = inlined_call_operand.vmem [shape: f32[256,16], index: 3, kind: output, shape index: {}]
  %s4 = sld [smem:[#allocation0]]
  $region26: #{deep_autoencoder.1} parent=0
    _
  %s6 = ssub.s32 1, %s4
  %s7 = scalar_select 0, %s6, %s4
  $region1: #{deep_autoencoder.1} parent=0
    #allocation2 [shape = 'u8[524288]{0}', space=vmem, size = 0x80000, scoped, tag = 'input window, operand 1, single buffered']
    #allocation3 [shape = 's32[1]{0}', space=sflag, size = 0x4, scoped, tag = 'scoped memory for deep_autoencoder.1']
    %8 = vsyncpa [#allocation3], 0
    // Predicated region
    $region2: #{deep_autoencoder.1} parent=1 // pred_check
      _
    $region3: #{deep_autoencoder.1} parent=1 // pred_check_branch
      %10 = sbr.rel (0) target = $region5
    $region4: #{deep_autoencoder.1} parent=1 // pred_region
      _
    $region5: #{deep_autoencoder.1} parent=1 // pred_fallthru
      _
    // Predicated region
    $region6: #{deep_autoencoder.1} parent=1 // pred_check
      _
    $region7: #{deep_autoencoder.1} parent=1 // pred_check_branch
      %12 = sbr.rel (0) target = $region9
    $region8: #{deep_autoencoder.1} parent=1 // pred_region
      %14 = vsyncadd [#allocation3], 0
      %s15 = sshll.u32 %s1, 4
      %s16 = int_to_ptr.hbm [resolvable:$true] %s15
      %s17 = sshll.u32 [#allocation2], 4
      %s18 = int_to_ptr.vmem [resolvable:$true] %s17
      %23 = dma.hbm_to_vmem [thread:$0]  %s16, 16384, %s18, [#allocation3], 128, 128, 8
    $region9: #{deep_autoencoder.1} parent=1 // pred_fallthru
      _
    // Predicated region
    $region10: #{deep_autoencoder.1} parent=1 // pred_check
      _
    $region11: #{deep_autoencoder.1} parent=1 // pred_check_branch
      %25 = sbr.rel (0) target = $region13
    $region12: #{deep_autoencoder.1} parent=1 // pred_region
      _
    $region13: #{deep_autoencoder.1} parent=1 // pred_fallthru
      _
    // Predicated region
    $region14: #{deep_autoencoder.1} parent=1 // pred_check
      _
    $region15: #{deep_autoencoder.1} parent=1 // pred_check_branch
      %27 = sbr.rel (0) target = $region17
    $region16: #{deep_autoencoder.1} parent=1 // pred_region
      %29 = dma.done [#allocation3], 16384
    $region17: #{deep_autoencoder.1} parent=1 // pred_fallthru
      _
    %v30 = vld [vmem:[%s0] sm:$0xff]
    %v31 = vld [vmem:[%s0 + $0x8] sm:$0xff]
    %v32 = vld [vmem:[%s0 + $0x10] sm:$0xff]
    %v33 = vld [vmem:[%s0 + $0x18] sm:$0xff]
    %v34 = vld [vmem:[%s0 + $0x20] sm:$0xff]
    %v35 = vld [vmem:[%s0 + $0x28] sm:$0xff]
    %v36 = vld [vmem:[%s0 + $0x30] sm:$0xff]
    %v37 = vld [vmem:[%s0 + $0x38] sm:$0xff]
    %v38 = vld [vmem:[%s0 + $0x40] sm:$0xff]
    %v39 = vld [vmem:[%s0 + $0x48] sm:$0xff]
    %v40 = vld [vmem:[%s0 + $0x50] sm:$0xff]
    %v41 = vld [vmem:[%s0 + $0x58] sm:$0xff]
    %v42 = vld [vmem:[%s0 + $0x60] sm:$0xff]
    %v43 = vld [vmem:[%s0 + $0x68] sm:$0xff]
    %v44 = vld [vmem:[%s0 + $0x70] sm:$0xff]
    %v45 = vld [vmem:[%s0 + $0x78] sm:$0xff]
    %v46 = vld [vmem:[%s0 + $0x80] sm:$0xff]
    %v47 = vld [vmem:[%s0 + $0x88] sm:$0xff]
    %v48 = vld [vmem:[%s0 + $0x90] sm:$0xff]
    %v49 = vld [vmem:[%s0 + $0x98] sm:$0xff]
    %v50 = vld [vmem:[%s0 + $0xa0] sm:$0xff]
    %v51 = vld [vmem:[%s0 + $0xa8] sm:$0xff]
    %v52 = vld [vmem:[%s0 + $0xb0] sm:$0xff]
    %v53 = vld [vmem:[%s0 + $0xb8] sm:$0xff]
    %v54 = vld [vmem:[%s0 + $0xc0] sm:$0xff]
    %v55 = vld [vmem:[%s0 + $0xc8] sm:$0xff]
    %v56 = vld [vmem:[%s0 + $0xd0] sm:$0xff]
    %v57 = vld [vmem:[%s0 + $0xd8] sm:$0xff]
    %v58 = vld [vmem:[%s0 + $0xe0] sm:$0xff]
    %v59 = vld [vmem:[%s0 + $0xe8] sm:$0xff]
    %v60 = vld [vmem:[%s0 + $0xf0] sm:$0xff]
    %v61 = vld [vmem:[%s0 + $0xf8] sm:$0xff]
    %v62 = vld [vmem:[#allocation2] sm:$0xff]
    %v63 = vld [vmem:[#allocation2 + $0x8] sm:$0xff]
    %vm64 = vcmask 130048
    %v66 = vsel %vm64, %v30, 0
    %v69 = vsel %vm64, %v31, 0
    %v72 = vsel %vm64, %v32, 0
    %v75 = vsel %vm64, %v33, 0
    %v78 = vsel %vm64, %v34, 0
    %v81 = vsel %vm64, %v35, 0
    %v84 = vsel %vm64, %v36, 0
    %v87 = vsel %vm64, %v37, 0
    %v90 = vsel %vm64, %v38, 0
    %v93 = vsel %vm64, %v39, 0
    %v96 = vsel %vm64, %v40, 0
    %v99 = vsel %vm64, %v41, 0
    %v102 = vsel %vm64, %v42, 0
    %v105 = vsel %vm64, %v43, 0
    %v108 = vsel %vm64, %v44, 0
    %v111 = vsel %vm64, %v45, 0
    %v114 = vsel %vm64, %v46, 0
    %v117 = vsel %vm64, %v47, 0
    %v120 = vsel %vm64, %v48, 0
    %v123 = vsel %vm64, %v49, 0
    %v126 = vsel %vm64, %v50, 0
    %v129 = vsel %vm64, %v51, 0
    %v132 = vsel %vm64, %v52, 0
    %v135 = vsel %vm64, %v53, 0
    %v138 = vsel %vm64, %v54, 0
    %v141 = vsel %vm64, %v55, 0
    %v144 = vsel %vm64, %v56, 0
    %v147 = vsel %vm64, %v57, 0
    %v150 = vsel %vm64, %v58, 0
    %v153 = vsel %vm64, %v59, 0
    %v156 = vsel %vm64, %v60, 0
    %v159 = vsel %vm64, %v61, 0
    %161 = vmatpush.msra.mxu0 0.0
    %162 = vmatpush.msra.mxu0 0.0
    %163 = vmatpush.msra.mxu0 0.0
    %164 = vmatpush.msra.mxu0 0.0
    %165 = vmatpush.msra.mxu0 0.0
    %166 = vmatpush.msra.mxu0 0.0
    %167 = vmatpush.msra.mxu0 0.0
    %168 = vmatpush.msra.mxu0 0.0
    %169 = vmatpush.msra.mxu0 0.0
    %170 = vmatpush.msra.mxu0 0.0
    %171 = vmatpush.msra.mxu0 0.0
    %172 = vmatpush.msra.mxu0 0.0
    %173 = vmatpush.msra.mxu0 0.0
    %174 = vmatpush.msra.mxu0 0.0
    %175 = vmatpush.msra.mxu0 %v63
    %176 = vmatpush.msra.mxu0 %v62
    %177 = vmatmul.f32.gmra.mxu0 %v66
    %v178 = vpop.f32.mrf.mxu0
    %v179 = vadd.f32 0.0, %v178
    %180 = vmatmul.f32.gmra.mxu0 %v69
    %v181 = vpop.f32.mrf.mxu0
    %v182 = vadd.f32 0.0, %v181
    %183 = vmatmul.f32.gmra.mxu0 %v72
    %v184 = vpop.f32.mrf.mxu0
    %v185 = vadd.f32 0.0, %v184
    %186 = vmatmul.f32.gmra.mxu0 %v75
    %v187 = vpop.f32.mrf.mxu0
    %v188 = vadd.f32 0.0, %v187
    %189 = vmatmul.f32.gmra.mxu0 %v78
    %v190 = vpop.f32.mrf.mxu0
    %v191 = vadd.f32 0.0, %v190
    %192 = vmatmul.f32.gmra.mxu0 %v81
    %v193 = vpop.f32.mrf.mxu0
    %v194 = vadd.f32 0.0, %v193
    %195 = vmatmul.f32.gmra.mxu0 %v84
    %v196 = vpop.f32.mrf.mxu0
    %v197 = vadd.f32 0.0, %v196
    %198 = vmatmul.f32.gmra.mxu0 %v87
    %v199 = vpop.f32.mrf.mxu0
    %v200 = vadd.f32 0.0, %v199
    %201 = vmatmul.f32.gmra.mxu0 %v90
    %v202 = vpop.f32.mrf.mxu0
    %v203 = vadd.f32 0.0, %v202
    %204 = vmatmul.f32.gmra.mxu0 %v93
    %v205 = vpop.f32.mrf.mxu0
    %v206 = vadd.f32 0.0, %v205
    %207 = vmatmul.f32.gmra.mxu0 %v96
    %v208 = vpop.f32.mrf.mxu0
    %v209 = vadd.f32 0.0, %v208
    %210 = vmatmul.f32.gmra.mxu0 %v99
    %v211 = vpop.f32.mrf.mxu0
    %v212 = vadd.f32 0.0, %v211
    %213 = vmatmul.f32.gmra.mxu0 %v102
    %v214 = vpop.f32.mrf.mxu0
    %v215 = vadd.f32 0.0, %v214
    %216 = vmatmul.f32.gmra.mxu0 %v105
    %v217 = vpop.f32.mrf.mxu0
    %v218 = vadd.f32 0.0, %v217
    %219 = vmatmul.f32.gmra.mxu0 %v108
    %v220 = vpop.f32.mrf.mxu0
    %v221 = vadd.f32 0.0, %v220
    %222 = vmatmul.f32.gmra.mxu0 %v111
    %v223 = vpop.f32.mrf.mxu0
    %v224 = vadd.f32 0.0, %v223
    %225 = vmatmul.f32.gmra.mxu0 %v114
    %v226 = vpop.f32.mrf.mxu0
    %v227 = vadd.f32 0.0, %v226
    %228 = vmatmul.f32.gmra.mxu0 %v117
    %v229 = vpop.f32.mrf.mxu0
    %v230 = vadd.f32 0.0, %v229
    %231 = vmatmul.f32.gmra.mxu0 %v120
    %v232 = vpop.f32.mrf.mxu0
    %v233 = vadd.f32 0.0, %v232
    %234 = vmatmul.f32.gmra.mxu0 %v123
    %v235 = vpop.f32.mrf.mxu0
    %v236 = vadd.f32 0.0, %v235
    %237 = vmatmul.f32.gmra.mxu0 %v126
    %v238 = vpop.f32.mrf.mxu0
    %v239 = vadd.f32 0.0, %v238
    %240 = vmatmul.f32.gmra.mxu0 %v129
    %v241 = vpop.f32.mrf.mxu0
    %v242 = vadd.f32 0.0, %v241
    %243 = vmatmul.f32.gmra.mxu0 %v132
    %v244 = vpop.f32.mrf.mxu0
    %v245 = vadd.f32 0.0, %v244
    %246 = vmatmul.f32.gmra.mxu0 %v135
    %v247 = vpop.f32.mrf.mxu0
    %v248 = vadd.f32 0.0, %v247
    %249 = vmatmul.f32.gmra.mxu0 %v138
    %v250 = vpop.f32.mrf.mxu0
    %v251 = vadd.f32 0.0, %v250
    %252 = vmatmul.f32.gmra.mxu0 %v141
    %v253 = vpop.f32.mrf.mxu0
    %v254 = vadd.f32 0.0, %v253
    %255 = vmatmul.f32.gmra.mxu0 %v144
    %v256 = vpop.f32.mrf.mxu0
    %v257 = vadd.f32 0.0, %v256
    %258 = vmatmul.f32.gmra.mxu0 %v147
    %v259 = vpop.f32.mrf.mxu0
    %v260 = vadd.f32 0.0, %v259
    %261 = vmatmul.f32.gmra.mxu0 %v150
    %v262 = vpop.f32.mrf.mxu0
    %v263 = vadd.f32 0.0, %v262
    %264 = vmatmul.f32.gmra.mxu0 %v153
    %v265 = vpop.f32.mrf.mxu0
    %v266 = vadd.f32 0.0, %v265
    %267 = vmatmul.f32.gmra.mxu0 %v156
    %v268 = vpop.f32.mrf.mxu0
    %v269 = vadd.f32 0.0, %v268
    %270 = vmatmul.f32.gmra.mxu0 %v159
    %v271 = vpop.f32.mrf.mxu0
    %v272 = vadd.f32 0.0, %v271
    %273 = vdwg.mxu0
    %v274 = vld [vmem:[%s2 + $0x2] sm:$0x1]
    %v275 = vld [vmem:[%s2 + $0x3] sm:$0x1]
    %v276 = vadd.f32 %v179, %v182
    %v277 = vadd.f32 %v276, %v185
    %v278 = vadd.f32 %v277, %v188
    %v279 = vadd.f32 %v278, %v191
    %v280 = vadd.f32 %v279, %v194
    %v281 = vadd.f32 %v280, %v197
    %v282 = vadd.f32 %v281, %v200
    %v283 = vadd.f32 %v282, %v203
    %v284 = vadd.f32 %v283, %v206
    %v285 = vadd.f32 %v284, %v209
    %v286 = vadd.f32 %v285, %v212
    %v287 = vadd.f32 %v286, %v215
    %v288 = vadd.f32 %v287, %v218
    %v289 = vadd.f32 %v288, %v221
    %v290 = vadd.f32 %v289, %v224
    %v291 = vadd.f32 %v290, %v227
    %v292 = vadd.f32 %v291, %v230
    %v293 = vadd.f32 %v292, %v233
    %v294 = vadd.f32 %v293, %v236
    %v295 = vadd.f32 %v294, %v239
    %v296 = vadd.f32 %v295, %v242
    %v297 = vadd.f32 %v296, %v245
    %v298 = vadd.f32 %v297, %v248
    %v299 = vadd.f32 %v298, %v251
    %v300 = vadd.f32 %v299, %v254
    %v301 = vadd.f32 %v300, %v257
    %v302 = vadd.f32 %v301, %v260
    %v303 = vadd.f32 %v302, %v263
    %v304 = vadd.f32 %v303, %v266
    %v305 = vadd.f32 %v304, %v269
    %v306 = vadd.f32 %v305, %v272
    %v307 = vrot.slane %v306, 4
    %v308 = vadd.f32 %v306, %v307
    %v309 = vrot.slane %v308, 2
    %v310 = vadd.f32 %v308, %v309
    %v311 = vrot.slane %v310, 1
    %v312 = vadd.f32 %v310, %v311
    %v313 = vmul.f32 %v179, %v179
    %v314 = vmul.f32 %v182, %v182
    %v315 = vmul.f32 %v185, %v185
    %v316 = vmul.f32 %v188, %v188
    %v317 = vmul.f32 %v191, %v191
    %v318 = vmul.f32 %v194, %v194
    %v319 = vmul.f32 %v197, %v197
    %v320 = vmul.f32 %v200, %v200
    %v321 = vmul.f32 %v203, %v203
    %v322 = vmul.f32 %v206, %v206
    %v323 = vmul.f32 %v209, %v209
    %v324 = vmul.f32 %v212, %v212
    %v325 = vmul.f32 %v215, %v215
    %v326 = vmul.f32 %v218, %v218
    %v327 = vmul.f32 %v221, %v221
    %v328 = vmul.f32 %v224, %v224
    %v329 = vmul.f32 %v227, %v227
    %v330 = vmul.f32 %v230, %v230
    %v331 = vmul.f32 %v233, %v233
    %v332 = vmul.f32 %v236, %v236
    %v333 = vmul.f32 %v239, %v239
    %v334 = vmul.f32 %v242, %v242
    %v335 = vmul.f32 %v245, %v245
    %v336 = vmul.f32 %v248, %v248
    %v337 = vmul.f32 %v251, %v251
    %v338 = vmul.f32 %v254, %v254
    %v339 = vmul.f32 %v257, %v257
    %v340 = vmul.f32 %v260, %v260
    %v341 = vmul.f32 %v263, %v263
    %v342 = vmul.f32 %v266, %v266
    %v343 = vmul.f32 %v269, %v269
    %v344 = vmul.f32 %v272, %v272
    %v345 = vadd.f32 %v313, %v314
    %v346 = vadd.f32 %v345, %v315
    %v347 = vadd.f32 %v346, %v316
    %v348 = vadd.f32 %v347, %v317
    %v349 = vadd.f32 %v348, %v318
    %v350 = vadd.f32 %v349, %v319
    %v351 = vadd.f32 %v350, %v320
    %v352 = vadd.f32 %v351, %v321
    %v353 = vadd.f32 %v352, %v322
    %v354 = vadd.f32 %v353, %v323
    %v355 = vadd.f32 %v354, %v324
    %v356 = vadd.f32 %v355, %v325
    %v357 = vadd.f32 %v356, %v326
    %v358 = vadd.f32 %v357, %v327
    %v359 = vadd.f32 %v358, %v328
    %v360 = vadd.f32 %v359, %v329
    %v361 = vadd.f32 %v360, %v330
    %v362 = vadd.f32 %v361, %v331
    %v363 = vadd.f32 %v362, %v332
    %v364 = vadd.f32 %v363, %v333
    %v365 = vadd.f32 %v364, %v334
    %v366 = vadd.f32 %v365, %v335
    %v367 = vadd.f32 %v366, %v336
    %v368 = vadd.f32 %v367, %v337
    %v369 = vadd.f32 %v368, %v338
    %v370 = vadd.f32 %v369, %v339
    %v371 = vadd.f32 %v370, %v340
    %v372 = vadd.f32 %v371, %v341
    %v373 = vadd.f32 %v372, %v342
    %v374 = vadd.f32 %v373, %v343
    %v375 = vadd.f32 %v374, %v344
    %v376 = vrot.slane %v375, 4
    %v377 = vadd.f32 %v375, %v376
    %v378 = vrot.slane %v377, 2
    %v379 = vadd.f32 %v377, %v378
    %v380 = vrot.slane %v379, 1
    %v381 = vadd.f32 %v379, %v380
    %v382 = vmul.f32 %v312, 0.00390625
    %v383 = vmul.f32 %v381, 0.00390625
    %v384 = vmul.f32 %v382, %v382
    %v385 = vsub.f32 %v383, %v384
    %v386 = vmax.f32 %v385, 0.0
    %v387 = vadd.f32 %v386, 1e-05
    %v388 = vrsqrt.pop %v387
    %v389 = vmul.f32 %v388, %v387
    %v390 = vmul.f32 %v389, %v388
    %v391 = vmul.f32 0.5, %v390
    %v392 = vsub.f32 1.5, %v391
    %v393 = vmul.f32 %v388, %v392
    %vm394 = vweird.f32 %v387
    %vm395 = vweird.f32 %v388
    %vm396 = vmor %vm394, %vm395
    %v397 = vsel %vm396, %v388, %v393
    %v398 = vmul.f32 %v274, %v397
    %v399 = vmul.f32 %v382, %v398
    %v400 = vsub.f32 %v275, %v399
    %v401 = vperm.slane %v398, 0
    %v402 = vmul.f32 %v179, %v401
    %v403 = vmul.f32 %v182, %v401
    %v404 = vmul.f32 %v185, %v401
    %v405 = vmul.f32 %v188, %v401
    %v406 = vmul.f32 %v191, %v401
    %v407 = vmul.f32 %v194, %v401
    %v408 = vmul.f32 %v197, %v401
    %v409 = vmul.f32 %v200, %v401
    %v410 = vmul.f32 %v203, %v401
    %v411 = vmul.f32 %v206, %v401
    %v412 = vmul.f32 %v209, %v401
    %v413 = vmul.f32 %v212, %v401
    %v414 = vmul.f32 %v215, %v401
    %v415 = vmul.f32 %v218, %v401
    %v416 = vmul.f32 %v221, %v401
    %v417 = vmul.f32 %v224, %v401
    %v418 = vmul.f32 %v227, %v401
    %v419 = vmul.f32 %v230, %v401
    %v420 = vmul.f32 %v233, %v401
    %v421 = vmul.f32 %v236, %v401
    %v422 = vmul.f32 %v239, %v401
    %v423 = vmul.f32 %v242, %v401
    %v424 = vmul.f32 %v245, %v401
    %v425 = vmul.f32 %v248, %v401
    %v426 = vmul.f32 %v251, %v401
    %v427 = vmul.f32 %v254, %v401
    %v428 = vmul.f32 %v257, %v401
    %v429 = vmul.f32 %v260, %v401
    %v430 = vmul.f32 %v263, %v401
    %v431 = vmul.f32 %v266, %v401
    %v432 = vmul.f32 %v269, %v401
    %v433 = vmul.f32 %v272, %v401
    %v434 = vperm.slane %v400, 0
    %v435 = vadd.f32 %v402, %v434
    %v436 = vadd.f32 %v403, %v434
    %v437 = vadd.f32 %v404, %v434
    %v438 = vadd.f32 %v405, %v434
    %v439 = vadd.f32 %v406, %v434
    %v440 = vadd.f32 %v407, %v434
    %v441 = vadd.f32 %v408, %v434
    %v442 = vadd.f32 %v409, %v434
    %v443 = vadd.f32 %v410, %v434
    %v444 = vadd.f32 %v411, %v434
    %v445 = vadd.f32 %v412, %v434
    %v446 = vadd.f32 %v413, %v434
    %v447 = vadd.f32 %v414, %v434
    %v448 = vadd.f32 %v415, %v434
    %v449 = vadd.f32 %v416, %v434
    %v450 = vadd.f32 %v417, %v434
    %v451 = vadd.f32 %v418, %v434
    %v452 = vadd.f32 %v419, %v434
    %v453 = vadd.f32 %v420, %v434
    %v454 = vadd.f32 %v421, %v434
    %v455 = vadd.f32 %v422, %v434
    %v456 = vadd.f32 %v423, %v434
    %v457 = vadd.f32 %v424, %v434
    %v458 = vadd.f32 %v425, %v434
    %v459 = vadd.f32 %v426, %v434
    %v460 = vadd.f32 %v427, %v434
    %v461 = vadd.f32 %v428, %v434
    %v462 = vadd.f32 %v429, %v434
    %v463 = vadd.f32 %v430, %v434
    %v464 = vadd.f32 %v431, %v434
    %v465 = vadd.f32 %v432, %v434
    %v466 = vadd.f32 %v433, %v434
    %v467 = vmax.f32 %v435, 0.0
    %v468 = vmax.f32 %v436, 0.0
    %v469 = vmax.f32 %v437, 0.0
    %v470 = vmax.f32 %v438, 0.0
    %v471 = vmax.f32 %v439, 0.0
    %v472 = vmax.f32 %v440, 0.0
    %v473 = vmax.f32 %v441, 0.0
    %v474 = vmax.f32 %v442, 0.0
    %v475 = vmax.f32 %v443, 0.0
    %v476 = vmax.f32 %v444, 0.0
    %v477 = vmax.f32 %v445, 0.0
    %v478 = vmax.f32 %v446, 0.0
    %v479 = vmax.f32 %v447, 0.0
    %v480 = vmax.f32 %v448, 0.0
    %v481 = vmax.f32 %v449, 0.0
    %v482 = vmax.f32 %v450, 0.0
    %v483 = vmax.f32 %v451, 0.0
    %v484 = vmax.f32 %v452, 0.0
    %v485 = vmax.f32 %v453, 0.0
    %v486 = vmax.f32 %v454, 0.0
    %v487 = vmax.f32 %v455, 0.0
    %v488 = vmax.f32 %v456, 0.0
    %v489 = vmax.f32 %v457, 0.0
    %v490 = vmax.f32 %v458, 0.0
    %v491 = vmax.f32 %v459, 0.0
    %v492 = vmax.f32 %v460, 0.0
    %v493 = vmax.f32 %v461, 0.0
    %v494 = vmax.f32 %v462, 0.0
    %v495 = vmax.f32 %v463, 0.0
    %v496 = vmax.f32 %v464, 0.0
    %v497 = vmax.f32 %v465, 0.0
    %v498 = vmax.f32 %v466, 0.0
    %s499 = scalar_lea.vmem [#allocation2], 128
    %v500 = vld [vmem:[%s499] sm:$0xff]
    %v501 = vld [vmem:[%s499 + $0x8] sm:$0xff]
    %v502 = vld [vmem:[%s499 + $0x10] sm:$0xff]
    %v503 = vld [vmem:[%s499 + $0x18] sm:$0xff]
    %v504 = vld [vmem:[%s499 + $0x20] sm:$0xff]
    %v505 = vld [vmem:[%s499 + $0x28] sm:$0xff]
    %v506 = vld [vmem:[%s499 + $0x30] sm:$0xff]
    %v507 = vld [vmem:[%s499 + $0x38] sm:$0xff]
    %v508 = vld [vmem:[%s499 + $0x40] sm:$0xff]
    %v509 = vld [vmem:[%s499 + $0x48] sm:$0xff]
    %v510 = vld [vmem:[%s499 + $0x50] sm:$0xff]
    %v511 = vld [vmem:[%s499 + $0x58] sm:$0xff]
    %v512 = vld [vmem:[%s499 + $0x60] sm:$0xff]
    %v513 = vld [vmem:[%s499 + $0x68] sm:$0xff]
    %v514 = vld [vmem:[%s499 + $0x70] sm:$0xff]
    %v515 = vld [vmem:[%s499 + $0x78] sm:$0xff]
    %516 = vmatpush.msra.mxu0 %v515
    %517 = vmatpush.msra.mxu0 %v514
    %518 = vmatpush.msra.mxu0 %v513
    %519 = vmatpush.msra.mxu0 %v512
    %520 = vmatpush.msra.mxu0 %v511
    %521 = vmatpush.msra.mxu0 %v510
    %522 = vmatpush.msra.mxu0 %v509
    %523 = vmatpush.msra.mxu0 %v508
    %524 = vmatpush.msra.mxu0 %v507
    %525 = vmatpush.msra.mxu0 %v506
    %526 = vmatpush.msra.mxu0 %v505
    %527 = vmatpush.msra.mxu0 %v504
    %528 = vmatpush.msra.mxu0 %v503
    %529 = vmatpush.msra.mxu0 %v502
    %530 = vmatpush.msra.mxu0 %v501
    %531 = vmatpush.msra.mxu0 %v500
    %532 = vmatmul.f32.gmra.mxu0 %v467
    %v533 = vpop.f32.mrf.mxu0
    %v534 = vadd.f32 0.0, %v533
    %535 = vmatmul.f32.gmra.mxu0 %v468
    %v536 = vpop.f32.mrf.mxu0
    %v537 = vadd.f32 0.0, %v536
    %538 = vmatmul.f32.gmra.mxu0 %v469
    %v539 = vpop.f32.mrf.mxu0
    %v540 = vadd.f32 0.0, %v539
    %541 = vmatmul.f32.gmra.mxu0 %v470
    %v542 = vpop.f32.mrf.mxu0
    %v543 = vadd.f32 0.0, %v542
    %544 = vmatmul.f32.gmra.mxu0 %v471
    %v545 = vpop.f32.mrf.mxu0
    %v546 = vadd.f32 0.0, %v545
    %547 = vmatmul.f32.gmra.mxu0 %v472
    %v548 = vpop.f32.mrf.mxu0
    %v549 = vadd.f32 0.0, %v548
    %550 = vmatmul.f32.gmra.mxu0 %v473
    %v551 = vpop.f32.mrf.mxu0
    %v552 = vadd.f32 0.0, %v551
    %553 = vmatmul.f32.gmra.mxu0 %v474
    %v554 = vpop.f32.mrf.mxu0
    %v555 = vadd.f32 0.0, %v554
    %556 = vmatmul.f32.gmra.mxu0 %v475
    %v557 = vpop.f32.mrf.mxu0
    %v558 = vadd.f32 0.0, %v557
    %559 = vmatmul.f32.gmra.mxu0 %v476
    %v560 = vpop.f32.mrf.mxu0
    %v561 = vadd.f32 0.0, %v560
    %562 = vmatmul.f32.gmra.mxu0 %v477
    %v563 = vpop.f32.mrf.mxu0
    %v564 = vadd.f32 0.0, %v563
    %565 = vmatmul.f32.gmra.mxu0 %v478
    %v566 = vpop.f32.mrf.mxu0
    %v567 = vadd.f32 0.0, %v566
    %568 = vmatmul.f32.gmra.mxu0 %v479
    %v569 = vpop.f32.mrf.mxu0
    %v570 = vadd.f32 0.0, %v569
    %571 = vmatmul.f32.gmra.mxu0 %v480
    %v572 = vpop.f32.mrf.mxu0
    %v573 = vadd.f32 0.0, %v572
    %574 = vmatmul.f32.gmra.mxu0 %v481
    %v575 = vpop.f32.mrf.mxu0
    %v576 = vadd.f32 0.0, %v575
    %577 = vmatmul.f32.gmra.mxu0 %v482
    %v578 = vpop.f32.mrf.mxu0
    %v579 = vadd.f32 0.0, %v578
    %580 = vmatmul.f32.gmra.mxu0 %v483
    %v581 = vpop.f32.mrf.mxu0
    %v582 = vadd.f32 0.0, %v581
    %583 = vmatmul.f32.gmra.mxu0 %v484
    %v584 = vpop.f32.mrf.mxu0
    %v585 = vadd.f32 0.0, %v584
    %586 = vmatmul.f32.gmra.mxu0 %v485
    %v587 = vpop.f32.mrf.mxu0
    %v588 = vadd.f32 0.0, %v587
    %589 = vmatmul.f32.gmra.mxu0 %v486
    %v590 = vpop.f32.mrf.mxu0
    %v591 = vadd.f32 0.0, %v590
    %592 = vmatmul.f32.gmra.mxu0 %v487
    %v593 = vpop.f32.mrf.mxu0
    %v594 = vadd.f32 0.0, %v593
    %595 = vmatmul.f32.gmra.mxu0 %v488
    %v596 = vpop.f32.mrf.mxu0
    %v597 = vadd.f32 0.0, %v596
    %598 = vmatmul.f32.gmra.mxu0 %v489
    %v599 = vpop.f32.mrf.mxu0
    %v600 = vadd.f32 0.0, %v599
    %601 = vmatmul.f32.gmra.mxu0 %v490
    %v602 = vpop.f32.mrf.mxu0
    %v603 = vadd.f32 0.0, %v602
    %604 = vmatmul.f32.gmra.mxu0 %v491
    %v605 = vpop.f32.mrf.mxu0
    %v606 = vadd.f32 0.0, %v605
    %607 = vmatmul.f32.gmra.mxu0 %v492
    %v608 = vpop.f32.mrf.mxu0
    %v609 = vadd.f32 0.0, %v608
    %610 = vmatmul.f32.gmra.mxu0 %v493
    %v611 = vpop.f32.mrf.mxu0
    %v612 = vadd.f32 0.0, %v611
    %613 = vmatmul.f32.gmra.mxu0 %v494
    %v614 = vpop.f32.mrf.mxu0
    %v615 = vadd.f32 0.0, %v614
    %616 = vmatmul.f32.gmra.mxu0 %v495
    %v617 = vpop.f32.mrf.mxu0
    %v618 = vadd.f32 0.0, %v617
    %619 = vmatmul.f32.gmra.mxu0 %v496
    %v620 = vpop.f32.mrf.mxu0
    %v621 = vadd.f32 0.0, %v620
    %622 = vmatmul.f32.gmra.mxu0 %v497
    %v623 = vpop.f32.mrf.mxu0
    %v624 = vadd.f32 0.0, %v623
    %625 = vmatmul.f32.gmra.mxu0 %v498
    %v626 = vpop.f32.mrf.mxu0
    %v627 = vadd.f32 0.0, %v626
    %628 = vdwg.mxu0
    %v629 = vld [vmem:[%s2 + $0x4] sm:$0x1]
    %v630 = vld [vmem:[%s2 + $0x5] sm:$0x1]
    %v631 = vadd.f32 %v534, %v537
    %v632 = vadd.f32 %v631, %v540
    %v633 = vadd.f32 %v632, %v543
    %v634 = vadd.f32 %v633, %v546
    %v635 = vadd.f32 %v634, %v549
    %v636 = vadd.f32 %v635, %v552
    %v637 = vadd.f32 %v636, %v555
    %v638 = vadd.f32 %v637, %v558
    %v639 = vadd.f32 %v638, %v561
    %v640 = vadd.f32 %v639, %v564
    %v641 = vadd.f32 %v640, %v567
    %v642 = vadd.f32 %v641, %v570
    %v643 = vadd.f32 %v642, %v573
    %v644 = vadd.f32 %v643, %v576
    %v645 = vadd.f32 %v644, %v579
    %v646 = vadd.f32 %v645, %v582
    %v647 = vadd.f32 %v646, %v585
    %v648 = vadd.f32 %v647, %v588
    %v649 = vadd.f32 %v648, %v591
    %v650 = vadd.f32 %v649, %v594
    %v651 = vadd.f32 %v650, %v597
    %v652 = vadd.f32 %v651, %v600
    %v653 = vadd.f32 %v652, %v603
    %v654 = vadd.f32 %v653, %v606
    %v655 = vadd.f32 %v654, %v609
    %v656 = vadd.f32 %v655, %v612
    %v657 = vadd.f32 %v656, %v615
    %v658 = vadd.f32 %v657, %v618
    %v659 = vadd.f32 %v658, %v621
    %v660 = vadd.f32 %v659, %v624
    %v661 = vadd.f32 %v660, %v627
    %v662 = vrot.slane %v661, 4
    %v663 = vadd.f32 %v661, %v662
    %v664 = vrot.slane %v663, 2
    %v665 = vadd.f32 %v663, %v664
    %v666 = vrot.slane %v665, 1
    %v667 = vadd.f32 %v665, %v666
    %v668 = vmul.f32 %v534, %v534
    %v669 = vmul.f32 %v537, %v537
    %v670 = vmul.f32 %v540, %v540
    %v671 = vmul.f32 %v543, %v543
    %v672 = vmul.f32 %v546, %v546
    %v673 = vmul.f32 %v549, %v549
    %v674 = vmul.f32 %v552, %v552
    %v675 = vmul.f32 %v555, %v555
    %v676 = vmul.f32 %v558, %v558
    %v677 = vmul.f32 %v561, %v561
    %v678 = vmul.f32 %v564, %v564
    %v679 = vmul.f32 %v567, %v567
    %v680 = vmul.f32 %v570, %v570
    %v681 = vmul.f32 %v573, %v573
    %v682 = vmul.f32 %v576, %v576
    %v683 = vmul.f32 %v579, %v579
    %v684 = vmul.f32 %v582, %v582
    %v685 = vmul.f32 %v585, %v585
    %v686 = vmul.f32 %v588, %v588
    %v687 = vmul.f32 %v591, %v591
    %v688 = vmul.f32 %v594, %v594
    %v689 = vmul.f32 %v597, %v597
    %v690 = vmul.f32 %v600, %v600
    %v691 = vmul.f32 %v603, %v603
    %v692 = vmul.f32 %v606, %v606
    %v693 = vmul.f32 %v609, %v609
    %v694 = vmul.f32 %v612, %v612
    %v695 = vmul.f32 %v615, %v615
    %v696 = vmul.f32 %v618, %v618
    %v697 = vmul.f32 %v621, %v621
    %v698 = vmul.f32 %v624, %v624
    %v699 = vmul.f32 %v627, %v627
    %v700 = vadd.f32 %v668, %v669
    %v701 = vadd.f32 %v700, %v670
    %v702 = vadd.f32 %v701, %v671
    %v703 = vadd.f32 %v702, %v672
    %v704 = vadd.f32 %v703, %v673
    %v705 = vadd.f32 %v704, %v674
    %v706 = vadd.f32 %v705, %v675
    %v707 = vadd.f32 %v706, %v676
    %v708 = vadd.f32 %v707, %v677
    %v709 = vadd.f32 %v708, %v678
    %v710 = vadd.f32 %v709, %v679
    %v711 = vadd.f32 %v710, %v680
    %v712 = vadd.f32 %v711, %v681
    %v713 = vadd.f32 %v712, %v682
    %v714 = vadd.f32 %v713, %v683
    %v715 = vadd.f32 %v714, %v684
    %v716 = vadd.f32 %v715, %v685
    %v717 = vadd.f32 %v716, %v686
    %v718 = vadd.f32 %v717, %v687
    %v719 = vadd.f32 %v718, %v688
    %v720 = vadd.f32 %v719, %v689
    %v721 = vadd.f32 %v720, %v690
    %v722 = vadd.f32 %v721, %v691
    %v723 = vadd.f32 %v722, %v692
    %v724 = vadd.f32 %v723, %v693
    %v725 = vadd.f32 %v724, %v694
    %v726 = vadd.f32 %v725, %v695
    %v727 = vadd.f32 %v726, %v696
    %v728 = vadd.f32 %v727, %v697
    %v729 = vadd.f32 %v728, %v698
    %v730 = vadd.f32 %v729, %v699
    %v731 = vrot.slane %v730, 4
    %v732 = vadd.f32 %v730, %v731
    %v733 = vrot.slane %v732, 2
    %v734 = vadd.f32 %v732, %v733
    %v735 = vrot.slane %v734, 1
    %v736 = vadd.f32 %v734, %v735
    %v737 = vmul.f32 %v667, 0.00390625
    %v738 = vmul.f32 %v736, 0.00390625
    %v739 = vmul.f32 %v737, %v737
    %v740 = vsub.f32 %v738, %v739
    %v741 = vmax.f32 %v740, 0.0
    %v742 = vadd.f32 %v741, 1e-05
    %v743 = vrsqrt.pop %v742
    %v744 = vmul.f32 %v743, %v742
    %v745 = vmul.f32 %v744, %v743
    %v746 = vmul.f32 0.5, %v745
    %v747 = vsub.f32 1.5, %v746
    %v748 = vmul.f32 %v743, %v747
    %vm749 = vweird.f32 %v742
    %vm750 = vweird.f32 %v743
    %vm751 = vmor %vm749, %vm750
    %v752 = vsel %vm751, %v743, %v748
    %v753 = vmul.f32 %v629, %v752
    %v754 = vmul.f32 %v737, %v753
    %v755 = vsub.f32 %v630, %v754
    %v756 = vperm.slane %v753, 0
    %v757 = vmul.f32 %v534, %v756
    %v758 = vmul.f32 %v537, %v756
    %v759 = vmul.f32 %v540, %v756
    %v760 = vmul.f32 %v543, %v756
    %v761 = vmul.f32 %v546, %v756
    %v762 = vmul.f32 %v549, %v756
    %v763 = vmul.f32 %v552, %v756
    %v764 = vmul.f32 %v555, %v756
    %v765 = vmul.f32 %v558, %v756
    %v766 = vmul.f32 %v561, %v756
    %v767 = vmul.f32 %v564, %v756
    %v768 = vmul.f32 %v567, %v756
    %v769 = vmul.f32 %v570, %v756
    %v770 = vmul.f32 %v573, %v756
    %v771 = vmul.f32 %v576, %v756
    %v772 = vmul.f32 %v579, %v756
    %v773 = vmul.f32 %v582, %v756
    %v774 = vmul.f32 %v585, %v756
    %v775 = vmul.f32 %v588, %v756
    %v776 = vmul.f32 %v591, %v756
    %v777 = vmul.f32 %v594, %v756
    %v778 = vmul.f32 %v597, %v756
    %v779 = vmul.f32 %v600, %v756
    %v780 = vmul.f32 %v603, %v756
    %v781 = vmul.f32 %v606, %v756
    %v782 = vmul.f32 %v609, %v756
    %v783 = vmul.f32 %v612, %v756
    %v784 = vmul.f32 %v615, %v756
    %v785 = vmul.f32 %v618, %v756
    %v786 = vmul.f32 %v621, %v756
    %v787 = vmul.f32 %v624, %v756
    %v788 = vmul.f32 %v627, %v756
    %v789 = vperm.slane %v755, 0
    %v790 = vadd.f32 %v757, %v789
    %v791 = vadd.f32 %v758, %v789
    %v792 = vadd.f32 %v759, %v789
    %v793 = vadd.f32 %v760, %v789
    %v794 = vadd.f32 %v761, %v789
    %v795 = vadd.f32 %v762, %v789
    %v796 = vadd.f32 %v763, %v789
    %v797 = vadd.f32 %v764, %v789
    %v798 = vadd.f32 %v765, %v789
    %v799 = vadd.f32 %v766, %v789
    %v800 = vadd.f32 %v767, %v789
    %v801 = vadd.f32 %v768, %v789
    %v802 = vadd.f32 %v769, %v789
    %v803 = vadd.f32 %v770, %v789
    %v804 = vadd.f32 %v771, %v789
    %v805 = vadd.f32 %v772, %v789
    %v806 = vadd.f32 %v773, %v789
    %v807 = vadd.f32 %v774, %v789
    %v808 = vadd.f32 %v775, %v789
    %v809 = vadd.f32 %v776, %v789
    %v810 = vadd.f32 %v777, %v789
    %v811 = vadd.f32 %v778, %v789
    %v812 = vadd.f32 %v779, %v789
    %v813 = vadd.f32 %v780, %v789
    %v814 = vadd.f32 %v781, %v789
    %v815 = vadd.f32 %v782, %v789
    %v816 = vadd.f32 %v783, %v789
    %v817 = vadd.f32 %v784, %v789
    %v818 = vadd.f32 %v785, %v789
    %v819 = vadd.f32 %v786, %v789
    %v820 = vadd.f32 %v787, %v789
    %v821 = vadd.f32 %v788, %v789
    %v822 = vmax.f32 %v790, 0.0
    %v823 = vmax.f32 %v791, 0.0
    %v824 = vmax.f32 %v792, 0.0
    %v825 = vmax.f32 %v793, 0.0
    %v826 = vmax.f32 %v794, 0.0
    %v827 = vmax.f32 %v795, 0.0
    %v828 = vmax.f32 %v796, 0.0
    %v829 = vmax.f32 %v797, 0.0
    %v830 = vmax.f32 %v798, 0.0
    %v831 = vmax.f32 %v799, 0.0
    %v832 = vmax.f32 %v800, 0.0
    %v833 = vmax.f32 %v801, 0.0
    %v834 = vmax.f32 %v802, 0.0
    %v835 = vmax.f32 %v803, 0.0
    %v836 = vmax.f32 %v804, 0.0
    %v837 = vmax.f32 %v805, 0.0
    %v838 = vmax.f32 %v806, 0.0
    %v839 = vmax.f32 %v807, 0.0
    %v840 = vmax.f32 %v808, 0.0
    %v841 = vmax.f32 %v809, 0.0
    %v842 = vmax.f32 %v810, 0.0
    %v843 = vmax.f32 %v811, 0.0
    %v844 = vmax.f32 %v812, 0.0
    %v845 = vmax.f32 %v813, 0.0
    %v846 = vmax.f32 %v814, 0.0
    %v847 = vmax.f32 %v815, 0.0
    %v848 = vmax.f32 %v816, 0.0
    %v849 = vmax.f32 %v817, 0.0
    %v850 = vmax.f32 %v818, 0.0
    %v851 = vmax.f32 %v819, 0.0
    %v852 = vmax.f32 %v820, 0.0
    %v853 = vmax.f32 %v821, 0.0
    %s854 = scalar_lea.vmem [#allocation2], 256
    %v855 = vld [vmem:[%s854] sm:$0xff]
    %v856 = vld [vmem:[%s854 + $0x8] sm:$0xff]
    %v857 = vld [vmem:[%s854 + $0x10] sm:$0xff]
    %v858 = vld [vmem:[%s854 + $0x18] sm:$0xff]
    %v859 = vld [vmem:[%s854 + $0x20] sm:$0xff]
    %v860 = vld [vmem:[%s854 + $0x28] sm:$0xff]
    %v861 = vld [vmem:[%s854 + $0x30] sm:$0xff]
    %v862 = vld [vmem:[%s854 + $0x38] sm:$0xff]
    %v863 = vld [vmem:[%s854 + $0x40] sm:$0xff]
    %v864 = vld [vmem:[%s854 + $0x48] sm:$0xff]
    %v865 = vld [vmem:[%s854 + $0x50] sm:$0xff]
    %v866 = vld [vmem:[%s854 + $0x58] sm:$0xff]
    %v867 = vld [vmem:[%s854 + $0x60] sm:$0xff]
    %v868 = vld [vmem:[%s854 + $0x68] sm:$0xff]
    %v869 = vld [vmem:[%s854 + $0x70] sm:$0xff]
    %v870 = vld [vmem:[%s854 + $0x78] sm:$0xff]
    %871 = vmatpush.msra.mxu0 %v870
    %872 = vmatpush.msra.mxu0 %v869
    %873 = vmatpush.msra.mxu0 %v868
    %874 = vmatpush.msra.mxu0 %v867
    %875 = vmatpush.msra.mxu0 %v866
    %876 = vmatpush.msra.mxu0 %v865
    %877 = vmatpush.msra.mxu0 %v864
    %878 = vmatpush.msra.mxu0 %v863
    %879 = vmatpush.msra.mxu0 %v862
    %880 = vmatpush.msra.mxu0 %v861
    %881 = vmatpush.msra.mxu0 %v860
    %882 = vmatpush.msra.mxu0 %v859
    %883 = vmatpush.msra.mxu0 %v858
    %884 = vmatpush.msra.mxu0 %v857
    %885 = vmatpush.msra.mxu0 %v856
    %886 = vmatpush.msra.mxu0 %v855
    %887 = vmatmul.f32.gmra.mxu0 %v822
    %v888 = vpop.f32.mrf.mxu0
    %v889 = vadd.f32 0.0, %v888
    %890 = vmatmul.f32.gmra.mxu0 %v823
    %v891 = vpop.f32.mrf.mxu0
    %v892 = vadd.f32 0.0, %v891
    %893 = vmatmul.f32.gmra.mxu0 %v824
    %v894 = vpop.f32.mrf.mxu0
    %v895 = vadd.f32 0.0, %v894
    %896 = vmatmul.f32.gmra.mxu0 %v825
    %v897 = vpop.f32.mrf.mxu0
    %v898 = vadd.f32 0.0, %v897
    %899 = vmatmul.f32.gmra.mxu0 %v826
    %v900 = vpop.f32.mrf.mxu0
    %v901 = vadd.f32 0.0, %v900
    %902 = vmatmul.f32.gmra.mxu0 %v827
    %v903 = vpop.f32.mrf.mxu0
    %v904 = vadd.f32 0.0, %v903
    %905 = vmatmul.f32.gmra.mxu0 %v828
    %v906 = vpop.f32.mrf.mxu0
    %v907 = vadd.f32 0.0, %v906
    %908 = vmatmul.f32.gmra.mxu0 %v829
    %v909 = vpop.f32.mrf.mxu0
    %v910 = vadd.f32 0.0, %v909
    %911 = vmatmul.f32.gmra.mxu0 %v830
    %v912 = vpop.f32.mrf.mxu0
    %v913 = vadd.f32 0.0, %v912
    %914 = vmatmul.f32.gmra.mxu0 %v831
    %v915 = vpop.f32.mrf.mxu0
    %v916 = vadd.f32 0.0, %v915
    %917 = vmatmul.f32.gmra.mxu0 %v832
    %v918 = vpop.f32.mrf.mxu0
    %v919 = vadd.f32 0.0, %v918
    %920 = vmatmul.f32.gmra.mxu0 %v833
    %v921 = vpop.f32.mrf.mxu0
    %v922 = vadd.f32 0.0, %v921
    %923 = vmatmul.f32.gmra.mxu0 %v834
    %v924 = vpop.f32.mrf.mxu0
    %v925 = vadd.f32 0.0, %v924
    %926 = vmatmul.f32.gmra.mxu0 %v835
    %v927 = vpop.f32.mrf.mxu0
    %v928 = vadd.f32 0.0, %v927
    %929 = vmatmul.f32.gmra.mxu0 %v836
    %v930 = vpop.f32.mrf.mxu0
    %v931 = vadd.f32 0.0, %v930
    %932 = vmatmul.f32.gmra.mxu0 %v837
    %v933 = vpop.f32.mrf.mxu0
    %v934 = vadd.f32 0.0, %v933
    %935 = vmatmul.f32.gmra.mxu0 %v838
    %v936 = vpop.f32.mrf.mxu0
    %v937 = vadd.f32 0.0, %v936
    %938 = vmatmul.f32.gmra.mxu0 %v839
    %v939 = vpop.f32.mrf.mxu0
    %v940 = vadd.f32 0.0, %v939
    %941 = vmatmul.f32.gmra.mxu0 %v840
    %v942 = vpop.f32.mrf.mxu0
    %v943 = vadd.f32 0.0, %v942
    %944 = vmatmul.f32.gmra.mxu0 %v841
    %v945 = vpop.f32.mrf.mxu0
    %v946 = vadd.f32 0.0, %v945
    %947 = vmatmul.f32.gmra.mxu0 %v842
    %v948 = vpop.f32.mrf.mxu0
    %v949 = vadd.f32 0.0, %v948
    %950 = vmatmul.f32.gmra.mxu0 %v843
    %v951 = vpop.f32.mrf.mxu0
    %v952 = vadd.f32 0.0, %v951
    %953 = vmatmul.f32.gmra.mxu0 %v844
    %v954 = vpop.f32.mrf.mxu0
    %v955 = vadd.f32 0.0, %v954
    %956 = vmatmul.f32.gmra.mxu0 %v845
    %v957 = vpop.f32.mrf.mxu0
    %v958 = vadd.f32 0.0, %v957
    %959 = vmatmul.f32.gmra.mxu0 %v846
    %v960 = vpop.f32.mrf.mxu0
    %v961 = vadd.f32 0.0, %v960
    %962 = vmatmul.f32.gmra.mxu0 %v847
    %v963 = vpop.f32.mrf.mxu0
    %v964 = vadd.f32 0.0, %v963
    %965 = vmatmul.f32.gmra.mxu0 %v848
    %v966 = vpop.f32.mrf.mxu0
    %v967 = vadd.f32 0.0, %v966
    %968 = vmatmul.f32.gmra.mxu0 %v849
    %v969 = vpop.f32.mrf.mxu0
    %v970 = vadd.f32 0.0, %v969
    %971 = vmatmul.f32.gmra.mxu0 %v850
    %v972 = vpop.f32.mrf.mxu0
    %v973 = vadd.f32 0.0, %v972
    %974 = vmatmul.f32.gmra.mxu0 %v851
    %v975 = vpop.f32.mrf.mxu0
    %v976 = vadd.f32 0.0, %v975
    %977 = vmatmul.f32.gmra.mxu0 %v852
    %v978 = vpop.f32.mrf.mxu0
    %v979 = vadd.f32 0.0, %v978
    %980 = vmatmul.f32.gmra.mxu0 %v853
    %v981 = vpop.f32.mrf.mxu0
    %v982 = vadd.f32 0.0, %v981
    %983 = vdwg.mxu0
    %v984 = vld [vmem:[%s2 + $0x6] sm:$0x1]
    %v985 = vld [vmem:[%s2 + $0x7] sm:$0x1]
    %v986 = vadd.f32 %v889, %v892
    %v987 = vadd.f32 %v986, %v895
    %v988 = vadd.f32 %v987, %v898
    %v989 = vadd.f32 %v988, %v901
    %v990 = vadd.f32 %v989, %v904
    %v991 = vadd.f32 %v990, %v907
    %v992 = vadd.f32 %v991, %v910
    %v993 = vadd.f32 %v992, %v913
    %v994 = vadd.f32 %v993, %v916
    %v995 = vadd.f32 %v994, %v919
    %v996 = vadd.f32 %v995, %v922
    %v997 = vadd.f32 %v996, %v925
    %v998 = vadd.f32 %v997, %v928
    %v999 = vadd.f32 %v998, %v931
    %v1000 = vadd.f32 %v999, %v934
    %v1001 = vadd.f32 %v1000, %v937
    %v1002 = vadd.f32 %v1001, %v940
    %v1003 = vadd.f32 %v1002, %v943
    %v1004 = vadd.f32 %v1003, %v946
    %v1005 = vadd.f32 %v1004, %v949
    %v1006 = vadd.f32 %v1005, %v952
    %v1007 = vadd.f32 %v1006, %v955
    %v1008 = vadd.f32 %v1007, %v958
    %v1009 = vadd.f32 %v1008, %v961
    %v1010 = vadd.f32 %v1009, %v964
    %v1011 = vadd.f32 %v1010, %v967
    %v1012 = vadd.f32 %v1011, %v970
    %v1013 = vadd.f32 %v1012, %v973
    %v1014 = vadd.f32 %v1013, %v976
    %v1015 = vadd.f32 %v1014, %v979
    %v1016 = vadd.f32 %v1015, %v982
    %v1017 = vrot.slane %v1016, 4
    %v1018 = vadd.f32 %v1016, %v1017
    %v1019 = vrot.slane %v1018, 2
    %v1020 = vadd.f32 %v1018, %v1019
    %v1021 = vrot.slane %v1020, 1
    %v1022 = vadd.f32 %v1020, %v1021
    %v1023 = vmul.f32 %v889, %v889
    %v1024 = vmul.f32 %v892, %v892
    %v1025 = vmul.f32 %v895, %v895
    %v1026 = vmul.f32 %v898, %v898
    %v1027 = vmul.f32 %v901, %v901
    %v1028 = vmul.f32 %v904, %v904
    %v1029 = vmul.f32 %v907, %v907
    %v1030 = vmul.f32 %v910, %v910
    %v1031 = vmul.f32 %v913, %v913
    %v1032 = vmul.f32 %v916, %v916
    %v1033 = vmul.f32 %v919, %v919
    %v1034 = vmul.f32 %v922, %v922
    %v1035 = vmul.f32 %v925, %v925
    %v1036 = vmul.f32 %v928, %v928
    %v1037 = vmul.f32 %v931, %v931
    %v1038 = vmul.f32 %v934, %v934
    %v1039 = vmul.f32 %v937, %v937
    %v1040 = vmul.f32 %v940, %v940
    %v1041 = vmul.f32 %v943, %v943
    %v1042 = vmul.f32 %v946, %v946
    %v1043 = vmul.f32 %v949, %v949
    %v1044 = vmul.f32 %v952, %v952
    %v1045 = vmul.f32 %v955, %v955
    %v1046 = vmul.f32 %v958, %v958
    %v1047 = vmul.f32 %v961, %v961
    %v1048 = vmul.f32 %v964, %v964
    %v1049 = vmul.f32 %v967, %v967
    %v1050 = vmul.f32 %v970, %v970
    %v1051 = vmul.f32 %v973, %v973
    %v1052 = vmul.f32 %v976, %v976
    %v1053 = vmul.f32 %v979, %v979
    %v1054 = vmul.f32 %v982, %v982
    %v1055 = vadd.f32 %v1023, %v1024
    %v1056 = vadd.f32 %v1055, %v1025
    %v1057 = vadd.f32 %v1056, %v1026
    %v1058 = vadd.f32 %v1057, %v1027
    %v1059 = vadd.f32 %v1058, %v1028
    %v1060 = vadd.f32 %v1059, %v1029
    %v1061 = vadd.f32 %v1060, %v1030
    %v1062 = vadd.f32 %v1061, %v1031
    %v1063 = vadd.f32 %v1062, %v1032
    %v1064 = vadd.f32 %v1063, %v1033
    %v1065 = vadd.f32 %v1064, %v1034
    %v1066 = vadd.f32 %v1065, %v1035
    %v1067 = vadd.f32 %v1066, %v1036
    %v1068 = vadd.f32 %v1067, %v1037
    %v1069 = vadd.f32 %v1068, %v1038
    %v1070 = vadd.f32 %v1069, %v1039
    %v1071 = vadd.f32 %v1070, %v1040
    %v1072 = vadd.f32 %v1071, %v1041
    %v1073 = vadd.f32 %v1072, %v1042
    %v1074 = vadd.f32 %v1073, %v1043
    %v1075 = vadd.f32 %v1074, %v1044
    %v1076 = vadd.f32 %v1075, %v1045
    %v1077 = vadd.f32 %v1076, %v1046
    %v1078 = vadd.f32 %v1077, %v1047
    %v1079 = vadd.f32 %v1078, %v1048
    %v1080 = vadd.f32 %v1079, %v1049
    %v1081 = vadd.f32 %v1080, %v1050
    %v1082 = vadd.f32 %v1081, %v1051
    %v1083 = vadd.f32 %v1082, %v1052
    %v1084 = vadd.f32 %v1083, %v1053
    %v1085 = vadd.f32 %v1084, %v1054
    %v1086 = vrot.slane %v1085, 4
    %v1087 = vadd.f32 %v1085, %v1086
    %v1088 = vrot.slane %v1087, 2
    %v1089 = vadd.f32 %v1087, %v1088
    %v1090 = vrot.slane %v1089, 1
    %v1091 = vadd.f32 %v1089, %v1090
    %v1092 = vmul.f32 %v1022, 0.00390625
    %v1093 = vmul.f32 %v1091, 0.00390625
    %v1094 = vmul.f32 %v1092, %v1092
    %v1095 = vsub.f32 %v1093, %v1094
    %v1096 = vmax.f32 %v1095, 0.0
    %v1097 = vadd.f32 %v1096, 1e-05
    %v1098 = vrsqrt.pop %v1097
    %v1099 = vmul.f32 %v1098, %v1097
    %v1100 = vmul.f32 %v1099, %v1098
    %v1101 = vmul.f32 0.5, %v1100
    %v1102 = vsub.f32 1.5, %v1101
    %v1103 = vmul.f32 %v1098, %v1102
    %vm1104 = vweird.f32 %v1097
    %vm1105 = vweird.f32 %v1098
    %vm1106 = vmor %vm1104, %vm1105
    %v1107 = vsel %vm1106, %v1098, %v1103
    %v1108 = vmul.f32 %v984, %v1107
    %v1109 = vmul.f32 %v1092, %v1108
    %v1110 = vsub.f32 %v985, %v1109
    %v1111 = vperm.slane %v1108, 0
    %v1112 = vmul.f32 %v889, %v1111
    %v1113 = vmul.f32 %v892, %v1111
    %v1114 = vmul.f32 %v895, %v1111
    %v1115 = vmul.f32 %v898, %v1111
    %v1116 = vmul.f32 %v901, %v1111
    %v1117 = vmul.f32 %v904, %v1111
    %v1118 = vmul.f32 %v907, %v1111
    %v1119 = vmul.f32 %v910, %v1111
    %v1120 = vmul.f32 %v913, %v1111
    %v1121 = vmul.f32 %v916, %v1111
    %v1122 = vmul.f32 %v919, %v1111
    %v1123 = vmul.f32 %v922, %v1111
    %v1124 = vmul.f32 %v925, %v1111
    %v1125 = vmul.f32 %v928, %v1111
    %v1126 = vmul.f32 %v931, %v1111
    %v1127 = vmul.f32 %v934, %v1111
    %v1128 = vmul.f32 %v937, %v1111
    %v1129 = vmul.f32 %v940, %v1111
    %v1130 = vmul.f32 %v943, %v1111
    %v1131 = vmul.f32 %v946, %v1111
    %v1132 = vmul.f32 %v949, %v1111
    %v1133 = vmul.f32 %v952, %v1111
    %v1134 = vmul.f32 %v955, %v1111
    %v1135 = vmul.f32 %v958, %v1111
    %v1136 = vmul.f32 %v961, %v1111
    %v1137 = vmul.f32 %v964, %v1111
    %v1138 = vmul.f32 %v967, %v1111
    %v1139 = vmul.f32 %v970, %v1111
    %v1140 = vmul.f32 %v973, %v1111
    %v1141 = vmul.f32 %v976, %v1111
    %v1142 = vmul.f32 %v979, %v1111
    %v1143 = vmul.f32 %v982, %v1111
    %v1144 = vperm.slane %v1110, 0
    %v1145 = vadd.f32 %v1112, %v1144
    %v1146 = vadd.f32 %v1113, %v1144
    %v1147 = vadd.f32 %v1114, %v1144
    %v1148 = vadd.f32 %v1115, %v1144
    %v1149 = vadd.f32 %v1116, %v1144
    %v1150 = vadd.f32 %v1117, %v1144
    %v1151 = vadd.f32 %v1118, %v1144
    %v1152 = vadd.f32 %v1119, %v1144
    %v1153 = vadd.f32 %v1120, %v1144
    %v1154 = vadd.f32 %v1121, %v1144
    %v1155 = vadd.f32 %v1122, %v1144
    %v1156 = vadd.f32 %v1123, %v1144
    %v1157 = vadd.f32 %v1124, %v1144
    %v1158 = vadd.f32 %v1125, %v1144
    %v1159 = vadd.f32 %v1126, %v1144
    %v1160 = vadd.f32 %v1127, %v1144
    %v1161 = vadd.f32 %v1128, %v1144
    %v1162 = vadd.f32 %v1129, %v1144
    %v1163 = vadd.f32 %v1130, %v1144
    %v1164 = vadd.f32 %v1131, %v1144
    %v1165 = vadd.f32 %v1132, %v1144
    %v1166 = vadd.f32 %v1133, %v1144
    %v1167 = vadd.f32 %v1134, %v1144
    %v1168 = vadd.f32 %v1135, %v1144
    %v1169 = vadd.f32 %v1136, %v1144
    %v1170 = vadd.f32 %v1137, %v1144
    %v1171 = vadd.f32 %v1138, %v1144
    %v1172 = vadd.f32 %v1139, %v1144
    %v1173 = vadd.f32 %v1140, %v1144
    %v1174 = vadd.f32 %v1141, %v1144
    %v1175 = vadd.f32 %v1142, %v1144
    %v1176 = vadd.f32 %v1143, %v1144
    %v1177 = vmax.f32 %v1145, 0.0
    %v1178 = vmax.f32 %v1146, 0.0
    %v1179 = vmax.f32 %v1147, 0.0
    %v1180 = vmax.f32 %v1148, 0.0
    %v1181 = vmax.f32 %v1149, 0.0
    %v1182 = vmax.f32 %v1150, 0.0
    %v1183 = vmax.f32 %v1151, 0.0
    %v1184 = vmax.f32 %v1152, 0.0
    %v1185 = vmax.f32 %v1153, 0.0
    %v1186 = vmax.f32 %v1154, 0.0
    %v1187 = vmax.f32 %v1155, 0.0
    %v1188 = vmax.f32 %v1156, 0.0
    %v1189 = vmax.f32 %v1157, 0.0
    %v1190 = vmax.f32 %v1158, 0.0
    %v1191 = vmax.f32 %v1159, 0.0
    %v1192 = vmax.f32 %v1160, 0.0
    %v1193 = vmax.f32 %v1161, 0.0
    %v1194 = vmax.f32 %v1162, 0.0
    %v1195 = vmax.f32 %v1163, 0.0
    %v1196 = vmax.f32 %v1164, 0.0
    %v1197 = vmax.f32 %v1165, 0.0
    %v1198 = vmax.f32 %v1166, 0.0
    %v1199 = vmax.f32 %v1167, 0.0
    %v1200 = vmax.f32 %v1168, 0.0
    %v1201 = vmax.f32 %v1169, 0.0
    %v1202 = vmax.f32 %v1170, 0.0
    %v1203 = vmax.f32 %v1171, 0.0
    %v1204 = vmax.f32 %v1172, 0.0
    %v1205 = vmax.f32 %v1173, 0.0
    %v1206 = vmax.f32 %v1174, 0.0
    %v1207 = vmax.f32 %v1175, 0.0
    %v1208 = vmax.f32 %v1176, 0.0
    %s1209 = scalar_lea.vmem [#allocation2], 384
    %v1210 = vld [vmem:[%s1209] sm:$0xff]
    %v1211 = vld [vmem:[%s1209 + $0x8] sm:$0xff]
    %v1212 = vld [vmem:[%s1209 + $0x10] sm:$0xff]
    %v1213 = vld [vmem:[%s1209 + $0x18] sm:$0xff]
    %v1214 = vld [vmem:[%s1209 + $0x20] sm:$0xff]
    %v1215 = vld [vmem:[%s1209 + $0x28] sm:$0xff]
    %v1216 = vld [vmem:[%s1209 + $0x30] sm:$0xff]
    %v1217 = vld [vmem:[%s1209 + $0x38] sm:$0xff]
    %v1218 = vld [vmem:[%s1209 + $0x40] sm:$0xff]
    %v1219 = vld [vmem:[%s1209 + $0x48] sm:$0xff]
    %v1220 = vld [vmem:[%s1209 + $0x50] sm:$0xff]
    %v1221 = vld [vmem:[%s1209 + $0x58] sm:$0xff]
    %v1222 = vld [vmem:[%s1209 + $0x60] sm:$0xff]
    %v1223 = vld [vmem:[%s1209 + $0x68] sm:$0xff]
    %v1224 = vld [vmem:[%s1209 + $0x70] sm:$0xff]
    %v1225 = vld [vmem:[%s1209 + $0x78] sm:$0xff]
    %v1226 = vld [vmem:[%s2] sm:$0x1]
    %v1227 = vperm.slane %v1226, 0
    %1228 = vmatpush.msra.mxu0 %v1225
    %1229 = vmatpush.msra.mxu0 %v1224
    %1230 = vmatpush.msra.mxu0 %v1223
    %1231 = vmatpush.msra.mxu0 %v1222
    %1232 = vmatpush.msra.mxu0 %v1221
    %1233 = vmatpush.msra.mxu0 %v1220
    %1234 = vmatpush.msra.mxu0 %v1219
    %1235 = vmatpush.msra.mxu0 %v1218
    %1236 = vmatpush.msra.mxu0 %v1217
    %1237 = vmatpush.msra.mxu0 %v1216
    %1238 = vmatpush.msra.mxu0 %v1215
    %1239 = vmatpush.msra.mxu0 %v1214
    %1240 = vmatpush.msra.mxu0 %v1213
    %1241 = vmatpush.msra.mxu0 %v1212
    %1242 = vmatpush.msra.mxu0 %v1211
    %1243 = vmatpush.msra.mxu0 %v1210
    %1244 = vmatmul.f32.gmra.mxu0 %v1177
    %v1245 = vpop.f32.mrf.mxu0
    %v1246 = vadd.f32 %v1227, %v1245
    %1247 = vmatmul.f32.gmra.mxu0 %v1178
    %v1248 = vpop.f32.mrf.mxu0
    %v1249 = vadd.f32 %v1227, %v1248
    %1250 = vmatmul.f32.gmra.mxu0 %v1179
    %v1251 = vpop.f32.mrf.mxu0
    %v1252 = vadd.f32 %v1227, %v1251
    %1253 = vmatmul.f32.gmra.mxu0 %v1180
    %v1254 = vpop.f32.mrf.mxu0
    %v1255 = vadd.f32 %v1227, %v1254
    %1256 = vmatmul.f32.gmra.mxu0 %v1181
    %v1257 = vpop.f32.mrf.mxu0
    %v1258 = vadd.f32 %v1227, %v1257
    %1259 = vmatmul.f32.gmra.mxu0 %v1182
    %v1260 = vpop.f32.mrf.mxu0
    %v1261 = vadd.f32 %v1227, %v1260
    %1262 = vmatmul.f32.gmra.mxu0 %v1183
    %v1263 = vpop.f32.mrf.mxu0
    %v1264 = vadd.f32 %v1227, %v1263
    %1265 = vmatmul.f32.gmra.mxu0 %v1184
    %v1266 = vpop.f32.mrf.mxu0
    %v1267 = vadd.f32 %v1227, %v1266
    %1268 = vmatmul.f32.gmra.mxu0 %v1185
    %v1269 = vpop.f32.mrf.mxu0
    %v1270 = vadd.f32 %v1227, %v1269
    %1271 = vmatmul.f32.gmra.mxu0 %v1186
    %v1272 = vpop.f32.mrf.mxu0
    %v1273 = vadd.f32 %v1227, %v1272
    %1274 = vmatmul.f32.gmra.mxu0 %v1187
    %v1275 = vpop.f32.mrf.mxu0
    %v1276 = vadd.f32 %v1227, %v1275
    %1277 = vmatmul.f32.gmra.mxu0 %v1188
    %v1278 = vpop.f32.mrf.mxu0
    %v1279 = vadd.f32 %v1227, %v1278
    %1280 = vmatmul.f32.gmra.mxu0 %v1189
    %v1281 = vpop.f32.mrf.mxu0
    %v1282 = vadd.f32 %v1227, %v1281
    %1283 = vmatmul.f32.gmra.mxu0 %v1190
    %v1284 = vpop.f32.mrf.mxu0
    %v1285 = vadd.f32 %v1227, %v1284
    %1286 = vmatmul.f32.gmra.mxu0 %v1191
    %v1287 = vpop.f32.mrf.mxu0
    %v1288 = vadd.f32 %v1227, %v1287
    %1289 = vmatmul.f32.gmra.mxu0 %v1192
    %v1290 = vpop.f32.mrf.mxu0
    %v1291 = vadd.f32 %v1227, %v1290
    %1292 = vmatmul.f32.gmra.mxu0 %v1193
    %v1293 = vpop.f32.mrf.mxu0
    %v1294 = vadd.f32 %v1227, %v1293
    %1295 = vmatmul.f32.gmra.mxu0 %v1194
    %v1296 = vpop.f32.mrf.mxu0
    %v1297 = vadd.f32 %v1227, %v1296
    %1298 = vmatmul.f32.gmra.mxu0 %v1195
    %v1299 = vpop.f32.mrf.mxu0
    %v1300 = vadd.f32 %v1227, %v1299
    %1301 = vmatmul.f32.gmra.mxu0 %v1196
    %v1302 = vpop.f32.mrf.mxu0
    %v1303 = vadd.f32 %v1227, %v1302
    %1304 = vmatmul.f32.gmra.mxu0 %v1197
    %v1305 = vpop.f32.mrf.mxu0
    %v1306 = vadd.f32 %v1227, %v1305
    %1307 = vmatmul.f32.gmra.mxu0 %v1198
    %v1308 = vpop.f32.mrf.mxu0
    %v1309 = vadd.f32 %v1227, %v1308
    %1310 = vmatmul.f32.gmra.mxu0 %v1199
    %v1311 = vpop.f32.mrf.mxu0
    %v1312 = vadd.f32 %v1227, %v1311
    %1313 = vmatmul.f32.gmra.mxu0 %v1200
    %v1314 = vpop.f32.mrf.mxu0
    %v1315 = vadd.f32 %v1227, %v1314
    %1316 = vmatmul.f32.gmra.mxu0 %v1201
    %v1317 = vpop.f32.mrf.mxu0
    %v1318 = vadd.f32 %v1227, %v1317
    %1319 = vmatmul.f32.gmra.mxu0 %v1202
    %v1320 = vpop.f32.mrf.mxu0
    %v1321 = vadd.f32 %v1227, %v1320
    %1322 = vmatmul.f32.gmra.mxu0 %v1203
    %v1323 = vpop.f32.mrf.mxu0
    %v1324 = vadd.f32 %v1227, %v1323
    %1325 = vmatmul.f32.gmra.mxu0 %v1204
    %v1326 = vpop.f32.mrf.mxu0
    %v1327 = vadd.f32 %v1227, %v1326
    %1328 = vmatmul.f32.gmra.mxu0 %v1205
    %v1329 = vpop.f32.mrf.mxu0
    %v1330 = vadd.f32 %v1227, %v1329
    %1331 = vmatmul.f32.gmra.mxu0 %v1206
    %v1332 = vpop.f32.mrf.mxu0
    %v1333 = vadd.f32 %v1227, %v1332
    %1334 = vmatmul.f32.gmra.mxu0 %v1207
    %v1335 = vpop.f32.mrf.mxu0
    %v1336 = vadd.f32 %v1227, %v1335
    %1337 = vmatmul.f32.gmra.mxu0 %v1208
    %v1338 = vpop.f32.mrf.mxu0
    %v1339 = vadd.f32 %v1227, %v1338
    %1340 = vdwg.mxu0
    %v1341 = vmul.f32 %v1246, %v1246
    %v1342 = vmul.f32 %v1249, %v1249
    %v1343 = vmul.f32 %v1252, %v1252
    %v1344 = vmul.f32 %v1255, %v1255
    %v1345 = vmul.f32 %v1258, %v1258
    %v1346 = vmul.f32 %v1261, %v1261
    %v1347 = vmul.f32 %v1264, %v1264
    %v1348 = vmul.f32 %v1267, %v1267
    %v1349 = vmul.f32 %v1270, %v1270
    %v1350 = vmul.f32 %v1273, %v1273
    %v1351 = vmul.f32 %v1276, %v1276
    %v1352 = vmul.f32 %v1279, %v1279
    %v1353 = vmul.f32 %v1282, %v1282
    %v1354 = vmul.f32 %v1285, %v1285
    %v1355 = vmul.f32 %v1288, %v1288
    %v1356 = vmul.f32 %v1291, %v1291
    %v1357 = vmul.f32 %v1294, %v1294
    %v1358 = vmul.f32 %v1297, %v1297
    %v1359 = vmul.f32 %v1300, %v1300
    %v1360 = vmul.f32 %v1303, %v1303
    %v1361 = vmul.f32 %v1306, %v1306
    %v1362 = vmul.f32 %v1309, %v1309
    %v1363 = vmul.f32 %v1312, %v1312
    %v1364 = vmul.f32 %v1315, %v1315
    %v1365 = vmul.f32 %v1318, %v1318
    %v1366 = vmul.f32 %v1321, %v1321
    %v1367 = vmul.f32 %v1324, %v1324
    %v1368 = vmul.f32 %v1327, %v1327
    %v1369 = vmul.f32 %v1330, %v1330
    %v1370 = vmul.f32 %v1333, %v1333
    %v1371 = vmul.f32 %v1336, %v1336
    %v1372 = vmul.f32 %v1339, %v1339
    %1373 = vadd.xlane.f32.xlu0 %v1341
    %v1374 = vpop.xlane.xlu0 %1373
    %1375 = vadd.xlane.f32.xlu0 %v1342
    %v1376 = vpop.xlane.xlu0 %1375
    %1377 = vadd.xlane.f32.xlu0 %v1343
    %v1378 = vpop.xlane.xlu0 %1377
    %1379 = vadd.xlane.f32.xlu0 %v1344
    %v1380 = vpop.xlane.xlu0 %1379
    %1381 = vadd.xlane.f32.xlu0 %v1345
    %v1382 = vpop.xlane.xlu0 %1381
    %1383 = vadd.xlane.f32.xlu0 %v1346
    %v1384 = vpop.xlane.xlu0 %1383
    %1385 = vadd.xlane.f32.xlu0 %v1347
    %v1386 = vpop.xlane.xlu0 %1385
    %1387 = vadd.xlane.f32.xlu0 %v1348
    %v1388 = vpop.xlane.xlu0 %1387
    %1389 = vadd.xlane.f32.xlu0 %v1349
    %v1390 = vpop.xlane.xlu0 %1389
    %1391 = vadd.xlane.f32.xlu0 %v1350
    %v1392 = vpop.xlane.xlu0 %1391
    %1393 = vadd.xlane.f32.xlu0 %v1351
    %v1394 = vpop.xlane.xlu0 %1393
    %1395 = vadd.xlane.f32.xlu0 %v1352
    %v1396 = vpop.xlane.xlu0 %1395
    %1397 = vadd.xlane.f32.xlu0 %v1353
    %v1398 = vpop.xlane.xlu0 %1397
    %1399 = vadd.xlane.f32.xlu0 %v1354
    %v1400 = vpop.xlane.xlu0 %1399
    %1401 = vadd.xlane.f32.xlu0 %v1355
    %v1402 = vpop.xlane.xlu0 %1401
    %1403 = vadd.xlane.f32.xlu0 %v1356
    %v1404 = vpop.xlane.xlu0 %1403
    %1405 = vadd.xlane.f32.xlu0 %v1357
    %v1406 = vpop.xlane.xlu0 %1405
    %1407 = vadd.xlane.f32.xlu0 %v1358
    %v1408 = vpop.xlane.xlu0 %1407
    %1409 = vadd.xlane.f32.xlu0 %v1359
    %v1410 = vpop.xlane.xlu0 %1409
    %1411 = vadd.xlane.f32.xlu0 %v1360
    %v1412 = vpop.xlane.xlu0 %1411
    %1413 = vadd.xlane.f32.xlu0 %v1361
    %v1414 = vpop.xlane.xlu0 %1413
    %1415 = vadd.xlane.f32.xlu0 %v1362
    %v1416 = vpop.xlane.xlu0 %1415
    %1417 = vadd.xlane.f32.xlu0 %v1363
    %v1418 = vpop.xlane.xlu0 %1417
    %1419 = vadd.xlane.f32.xlu0 %v1364
    %v1420 = vpop.xlane.xlu0 %1419
    %1421 = vadd.xlane.f32.xlu0 %v1365
    %v1422 = vpop.xlane.xlu0 %1421
    %1423 = vadd.xlane.f32.xlu0 %v1366
    %v1424 = vpop.xlane.xlu0 %1423
    %1425 = vadd.xlane.f32.xlu0 %v1367
    %v1426 = vpop.xlane.xlu0 %1425
    %1427 = vadd.xlane.f32.xlu0 %v1368
    %v1428 = vpop.xlane.xlu0 %1427
    %1429 = vadd.xlane.f32.xlu0 %v1369
    %v1430 = vpop.xlane.xlu0 %1429
    %1431 = vadd.xlane.f32.xlu0 %v1370
    %v1432 = vpop.xlane.xlu0 %1431
    %1433 = vadd.xlane.f32.xlu0 %v1371
    %v1434 = vpop.xlane.xlu0 %1433
    %1435 = vadd.xlane.f32.xlu0 %v1372
    %v1436 = vpop.xlane.xlu0 %1435
    %v1437 = vmax.f32 %v1374, 1e-24
    %v1438 = vmax.f32 %v1376, 1e-24
    %v1439 = vmax.f32 %v1378, 1e-24
    %v1440 = vmax.f32 %v1380, 1e-24
    %v1441 = vmax.f32 %v1382, 1e-24
    %v1442 = vmax.f32 %v1384, 1e-24
    %v1443 = vmax.f32 %v1386, 1e-24
    %v1444 = vmax.f32 %v1388, 1e-24
    %v1445 = vmax.f32 %v1390, 1e-24
    %v1446 = vmax.f32 %v1392, 1e-24
    %v1447 = vmax.f32 %v1394, 1e-24
    %v1448 = vmax.f32 %v1396, 1e-24
    %v1449 = vmax.f32 %v1398, 1e-24
    %v1450 = vmax.f32 %v1400, 1e-24
    %v1451 = vmax.f32 %v1402, 1e-24
    %v1452 = vmax.f32 %v1404, 1e-24
    %v1453 = vmax.f32 %v1406, 1e-24
    %v1454 = vmax.f32 %v1408, 1e-24
    %v1455 = vmax.f32 %v1410, 1e-24
    %v1456 = vmax.f32 %v1412, 1e-24
    %v1457 = vmax.f32 %v1414, 1e-24
    %v1458 = vmax.f32 %v1416, 1e-24
    %v1459 = vmax.f32 %v1418, 1e-24
    %v1460 = vmax.f32 %v1420, 1e-24
    %v1461 = vmax.f32 %v1422, 1e-24
    %v1462 = vmax.f32 %v1424, 1e-24
    %v1463 = vmax.f32 %v1426, 1e-24
    %v1464 = vmax.f32 %v1428, 1e-24
    %v1465 = vmax.f32 %v1430, 1e-24
    %v1466 = vmax.f32 %v1432, 1e-24
    %v1467 = vmax.f32 %v1434, 1e-24
    %v1468 = vmax.f32 %v1436, 1e-24
    %v1469 = vrsqrt.pop %v1437
    %v1470 = vmul.f32 %v1469, %v1437
    %v1471 = vmul.f32 %v1470, %v1469
    %v1472 = vmul.f32 0.5, %v1471
    %v1473 = vsub.f32 1.5, %v1472
    %v1474 = vmul.f32 %v1469, %v1473
    %vm1475 = vweird.f32 %v1437
    %vm1476 = vweird.f32 %v1469
    %vm1477 = vmor %vm1475, %vm1476
    %v1478 = vsel %vm1477, %v1469, %v1474
    %v1479 = vrsqrt.pop %v1438
    %v1480 = vmul.f32 %v1479, %v1438
    %v1481 = vmul.f32 %v1480, %v1479
    %v1482 = vmul.f32 0.5, %v1481
    %v1483 = vsub.f32 1.5, %v1482
    %v1484 = vmul.f32 %v1479, %v1483
    %vm1485 = vweird.f32 %v1438
    %vm1486 = vweird.f32 %v1479
    %vm1487 = vmor %vm1485, %vm1486
    %v1488 = vsel %vm1487, %v1479, %v1484
    %v1489 = vrsqrt.pop %v1439
    %v1490 = vmul.f32 %v1489, %v1439
    %v1491 = vmul.f32 %v1490, %v1489
    %v1492 = vmul.f32 0.5, %v1491
    %v1493 = vsub.f32 1.5, %v1492
    %v1494 = vmul.f32 %v1489, %v1493
    %vm1495 = vweird.f32 %v1439
    %vm1496 = vweird.f32 %v1489
    %vm1497 = vmor %vm1495, %vm1496
    %v1498 = vsel %vm1497, %v1489, %v1494
    %v1499 = vrsqrt.pop %v1440
    %v1500 = vmul.f32 %v1499, %v1440
    %v1501 = vmul.f32 %v1500, %v1499
    %v1502 = vmul.f32 0.5, %v1501
    %v1503 = vsub.f32 1.5, %v1502
    %v1504 = vmul.f32 %v1499, %v1503
    %vm1505 = vweird.f32 %v1440
    %vm1506 = vweird.f32 %v1499
    %vm1507 = vmor %vm1505, %vm1506
    %v1508 = vsel %vm1507, %v1499, %v1504
    %v1509 = vrsqrt.pop %v1441
    %v1510 = vmul.f32 %v1509, %v1441
    %v1511 = vmul.f32 %v1510, %v1509
    %v1512 = vmul.f32 0.5, %v1511
    %v1513 = vsub.f32 1.5, %v1512
    %v1514 = vmul.f32 %v1509, %v1513
    %vm1515 = vweird.f32 %v1441
    %vm1516 = vweird.f32 %v1509
    %vm1517 = vmor %vm1515, %vm1516
    %v1518 = vsel %vm1517, %v1509, %v1514
    %v1519 = vrsqrt.pop %v1442
    %v1520 = vmul.f32 %v1519, %v1442
    %v1521 = vmul.f32 %v1520, %v1519
    %v1522 = vmul.f32 0.5, %v1521
    %v1523 = vsub.f32 1.5, %v1522
    %v1524 = vmul.f32 %v1519, %v1523
    %vm1525 = vweird.f32 %v1442
    %vm1526 = vweird.f32 %v1519
    %vm1527 = vmor %vm1525, %vm1526
    %v1528 = vsel %vm1527, %v1519, %v1524
    %v1529 = vrsqrt.pop %v1443
    %v1530 = vmul.f32 %v1529, %v1443
    %v1531 = vmul.f32 %v1530, %v1529
    %v1532 = vmul.f32 0.5, %v1531
    %v1533 = vsub.f32 1.5, %v1532
    %v1534 = vmul.f32 %v1529, %v1533
    %vm1535 = vweird.f32 %v1443
    %vm1536 = vweird.f32 %v1529
    %vm1537 = vmor %vm1535, %vm1536
    %v1538 = vsel %vm1537, %v1529, %v1534
    %v1539 = vrsqrt.pop %v1444
    %v1540 = vmul.f32 %v1539, %v1444
    %v1541 = vmul.f32 %v1540, %v1539
    %v1542 = vmul.f32 0.5, %v1541
    %v1543 = vsub.f32 1.5, %v1542
    %v1544 = vmul.f32 %v1539, %v1543
    %vm1545 = vweird.f32 %v1444
    %vm1546 = vweird.f32 %v1539
    %vm1547 = vmor %vm1545, %vm1546
    %v1548 = vsel %vm1547, %v1539, %v1544
    %v1549 = vrsqrt.pop %v1445
    %v1550 = vmul.f32 %v1549, %v1445
    %v1551 = vmul.f32 %v1550, %v1549
    %v1552 = vmul.f32 0.5, %v1551
    %v1553 = vsub.f32 1.5, %v1552
    %v1554 = vmul.f32 %v1549, %v1553
    %vm1555 = vweird.f32 %v1445
    %vm1556 = vweird.f32 %v1549
    %vm1557 = vmor %vm1555, %vm1556
    %v1558 = vsel %vm1557, %v1549, %v1554
    %v1559 = vrsqrt.pop %v1446
    %v1560 = vmul.f32 %v1559, %v1446
    %v1561 = vmul.f32 %v1560, %v1559
    %v1562 = vmul.f32 0.5, %v1561
    %v1563 = vsub.f32 1.5, %v1562
    %v1564 = vmul.f32 %v1559, %v1563
    %vm1565 = vweird.f32 %v1446
    %vm1566 = vweird.f32 %v1559
    %vm1567 = vmor %vm1565, %vm1566
    %v1568 = vsel %vm1567, %v1559, %v1564
    %v1569 = vrsqrt.pop %v1447
    %v1570 = vmul.f32 %v1569, %v1447
    %v1571 = vmul.f32 %v1570, %v1569
    %v1572 = vmul.f32 0.5, %v1571
    %v1573 = vsub.f32 1.5, %v1572
    %v1574 = vmul.f32 %v1569, %v1573
    %vm1575 = vweird.f32 %v1447
    %vm1576 = vweird.f32 %v1569
    %vm1577 = vmor %vm1575, %vm1576
    %v1578 = vsel %vm1577, %v1569, %v1574
    %v1579 = vrsqrt.pop %v1448
    %v1580 = vmul.f32 %v1579, %v1448
    %v1581 = vmul.f32 %v1580, %v1579
    %v1582 = vmul.f32 0.5, %v1581
    %v1583 = vsub.f32 1.5, %v1582
    %v1584 = vmul.f32 %v1579, %v1583
    %vm1585 = vweird.f32 %v1448
    %vm1586 = vweird.f32 %v1579
    %vm1587 = vmor %vm1585, %vm1586
    %v1588 = vsel %vm1587, %v1579, %v1584
    %v1589 = vrsqrt.pop %v1449
    %v1590 = vmul.f32 %v1589, %v1449
    %v1591 = vmul.f32 %v1590, %v1589
    %v1592 = vmul.f32 0.5, %v1591
    %v1593 = vsub.f32 1.5, %v1592
    %v1594 = vmul.f32 %v1589, %v1593
    %vm1595 = vweird.f32 %v1449
    %vm1596 = vweird.f32 %v1589
    %vm1597 = vmor %vm1595, %vm1596
    %v1598 = vsel %vm1597, %v1589, %v1594
    %v1599 = vrsqrt.pop %v1450
    %v1600 = vmul.f32 %v1599, %v1450
    %v1601 = vmul.f32 %v1600, %v1599
    %v1602 = vmul.f32 0.5, %v1601
    %v1603 = vsub.f32 1.5, %v1602
    %v1604 = vmul.f32 %v1599, %v1603
    %vm1605 = vweird.f32 %v1450
    %vm1606 = vweird.f32 %v1599
    %vm1607 = vmor %vm1605, %vm1606
    %v1608 = vsel %vm1607, %v1599, %v1604
    %v1609 = vrsqrt.pop %v1451
    %v1610 = vmul.f32 %v1609, %v1451
    %v1611 = vmul.f32 %v1610, %v1609
    %v1612 = vmul.f32 0.5, %v1611
    %v1613 = vsub.f32 1.5, %v1612
    %v1614 = vmul.f32 %v1609, %v1613
    %vm1615 = vweird.f32 %v1451
    %vm1616 = vweird.f32 %v1609
    %vm1617 = vmor %vm1615, %vm1616
    %v1618 = vsel %vm1617, %v1609, %v1614
    %v1619 = vrsqrt.pop %v1452
    %v1620 = vmul.f32 %v1619, %v1452
    %v1621 = vmul.f32 %v1620, %v1619
    %v1622 = vmul.f32 0.5, %v1621
    %v1623 = vsub.f32 1.5, %v1622
    %v1624 = vmul.f32 %v1619, %v1623
    %vm1625 = vweird.f32 %v1452
    %vm1626 = vweird.f32 %v1619
    %vm1627 = vmor %vm1625, %vm1626
    %v1628 = vsel %vm1627, %v1619, %v1624
    %v1629 = vrsqrt.pop %v1453
    %v1630 = vmul.f32 %v1629, %v1453
    %v1631 = vmul.f32 %v1630, %v1629
    %v1632 = vmul.f32 0.5, %v1631
    %v1633 = vsub.f32 1.5, %v1632
    %v1634 = vmul.f32 %v1629, %v1633
    %vm1635 = vweird.f32 %v1453
    %vm1636 = vweird.f32 %v1629
    %vm1637 = vmor %vm1635, %vm1636
    %v1638 = vsel %vm1637, %v1629, %v1634
    %v1639 = vrsqrt.pop %v1454
    %v1640 = vmul.f32 %v1639, %v1454
    %v1641 = vmul.f32 %v1640, %v1639
    %v1642 = vmul.f32 0.5, %v1641
    %v1643 = vsub.f32 1.5, %v1642
    %v1644 = vmul.f32 %v1639, %v1643
    %vm1645 = vweird.f32 %v1454
    %vm1646 = vweird.f32 %v1639
    %vm1647 = vmor %vm1645, %vm1646
    %v1648 = vsel %vm1647, %v1639, %v1644
    %v1649 = vrsqrt.pop %v1455
    %v1650 = vmul.f32 %v1649, %v1455
    %v1651 = vmul.f32 %v1650, %v1649
    %v1652 = vmul.f32 0.5, %v1651
    %v1653 = vsub.f32 1.5, %v1652
    %v1654 = vmul.f32 %v1649, %v1653
    %vm1655 = vweird.f32 %v1455
    %vm1656 = vweird.f32 %v1649
    %vm1657 = vmor %vm1655, %vm1656
    %v1658 = vsel %vm1657, %v1649, %v1654
    %v1659 = vrsqrt.pop %v1456
    %v1660 = vmul.f32 %v1659, %v1456
    %v1661 = vmul.f32 %v1660, %v1659
    %v1662 = vmul.f32 0.5, %v1661
    %v1663 = vsub.f32 1.5, %v1662
    %v1664 = vmul.f32 %v1659, %v1663
    %vm1665 = vweird.f32 %v1456
    %vm1666 = vweird.f32 %v1659
    %vm1667 = vmor %vm1665, %vm1666
    %v1668 = vsel %vm1667, %v1659, %v1664
    %v1669 = vrsqrt.pop %v1457
    %v1670 = vmul.f32 %v1669, %v1457
    %v1671 = vmul.f32 %v1670, %v1669
    %v1672 = vmul.f32 0.5, %v1671
    %v1673 = vsub.f32 1.5, %v1672
    %v1674 = vmul.f32 %v1669, %v1673
    %vm1675 = vweird.f32 %v1457
    %vm1676 = vweird.f32 %v1669
    %vm1677 = vmor %vm1675, %vm1676
    %v1678 = vsel %vm1677, %v1669, %v1674
    %v1679 = vrsqrt.pop %v1458
    %v1680 = vmul.f32 %v1679, %v1458
    %v1681 = vmul.f32 %v1680, %v1679
    %v1682 = vmul.f32 0.5, %v1681
    %v1683 = vsub.f32 1.5, %v1682
    %v1684 = vmul.f32 %v1679, %v1683
    %vm1685 = vweird.f32 %v1458
    %vm1686 = vweird.f32 %v1679
    %vm1687 = vmor %vm1685, %vm1686
    %v1688 = vsel %vm1687, %v1679, %v1684
    %v1689 = vrsqrt.pop %v1459
    %v1690 = vmul.f32 %v1689, %v1459
    %v1691 = vmul.f32 %v1690, %v1689
    %v1692 = vmul.f32 0.5, %v1691
    %v1693 = vsub.f32 1.5, %v1692
    %v1694 = vmul.f32 %v1689, %v1693
    %vm1695 = vweird.f32 %v1459
    %vm1696 = vweird.f32 %v1689
    %vm1697 = vmor %vm1695, %vm1696
    %v1698 = vsel %vm1697, %v1689, %v1694
    %v1699 = vrsqrt.pop %v1460
    %v1700 = vmul.f32 %v1699, %v1460
    %v1701 = vmul.f32 %v1700, %v1699
    %v1702 = vmul.f32 0.5, %v1701
    %v1703 = vsub.f32 1.5, %v1702
    %v1704 = vmul.f32 %v1699, %v1703
    %vm1705 = vweird.f32 %v1460
    %vm1706 = vweird.f32 %v1699
    %vm1707 = vmor %vm1705, %vm1706
    %v1708 = vsel %vm1707, %v1699, %v1704
    %v1709 = vrsqrt.pop %v1461
    %v1710 = vmul.f32 %v1709, %v1461
    %v1711 = vmul.f32 %v1710, %v1709
    %v1712 = vmul.f32 0.5, %v1711
    %v1713 = vsub.f32 1.5, %v1712
    %v1714 = vmul.f32 %v1709, %v1713
    %vm1715 = vweird.f32 %v1461
    %vm1716 = vweird.f32 %v1709
    %vm1717 = vmor %vm1715, %vm1716
    %v1718 = vsel %vm1717, %v1709, %v1714
    %v1719 = vrsqrt.pop %v1462
    %v1720 = vmul.f32 %v1719, %v1462
    %v1721 = vmul.f32 %v1720, %v1719
    %v1722 = vmul.f32 0.5, %v1721
    %v1723 = vsub.f32 1.5, %v1722
    %v1724 = vmul.f32 %v1719, %v1723
    %vm1725 = vweird.f32 %v1462
    %vm1726 = vweird.f32 %v1719
    %vm1727 = vmor %vm1725, %vm1726
    %v1728 = vsel %vm1727, %v1719, %v1724
    %v1729 = vrsqrt.pop %v1463
    %v1730 = vmul.f32 %v1729, %v1463
    %v1731 = vmul.f32 %v1730, %v1729
    %v1732 = vmul.f32 0.5, %v1731
    %v1733 = vsub.f32 1.5, %v1732
    %v1734 = vmul.f32 %v1729, %v1733
    %vm1735 = vweird.f32 %v1463
    %vm1736 = vweird.f32 %v1729
    %vm1737 = vmor %vm1735, %vm1736
    %v1738 = vsel %vm1737, %v1729, %v1734
    %v1739 = vrsqrt.pop %v1464
    %v1740 = vmul.f32 %v1739, %v1464
    %v1741 = vmul.f32 %v1740, %v1739
    %v1742 = vmul.f32 0.5, %v1741
    %v1743 = vsub.f32 1.5, %v1742
    %v1744 = vmul.f32 %v1739, %v1743
    %vm1745 = vweird.f32 %v1464
    %vm1746 = vweird.f32 %v1739
    %vm1747 = vmor %vm1745, %vm1746
    %v1748 = vsel %vm1747, %v1739, %v1744
    %v1749 = vrsqrt.pop %v1465
    %v1750 = vmul.f32 %v1749, %v1465
    %v1751 = vmul.f32 %v1750, %v1749
    %v1752 = vmul.f32 0.5, %v1751
    %v1753 = vsub.f32 1.5, %v1752
    %v1754 = vmul.f32 %v1749, %v1753
    %vm1755 = vweird.f32 %v1465
    %vm1756 = vweird.f32 %v1749
    %vm1757 = vmor %vm1755, %vm1756
    %v1758 = vsel %vm1757, %v1749, %v1754
    %v1759 = vrsqrt.pop %v1466
    %v1760 = vmul.f32 %v1759, %v1466
    %v1761 = vmul.f32 %v1760, %v1759
    %v1762 = vmul.f32 0.5, %v1761
    %v1763 = vsub.f32 1.5, %v1762
    %v1764 = vmul.f32 %v1759, %v1763
    %vm1765 = vweird.f32 %v1466
    %vm1766 = vweird.f32 %v1759
    %vm1767 = vmor %vm1765, %vm1766
    %v1768 = vsel %vm1767, %v1759, %v1764
    %v1769 = vrsqrt.pop %v1467
    %v1770 = vmul.f32 %v1769, %v1467
    %v1771 = vmul.f32 %v1770, %v1769
    %v1772 = vmul.f32 0.5, %v1771
    %v1773 = vsub.f32 1.5, %v1772
    %v1774 = vmul.f32 %v1769, %v1773
    %vm1775 = vweird.f32 %v1467
    %vm1776 = vweird.f32 %v1769
    %vm1777 = vmor %vm1775, %vm1776
    %v1778 = vsel %vm1777, %v1769, %v1774
    %v1779 = vrsqrt.pop %v1468
    %v1780 = vmul.f32 %v1779, %v1468
    %v1781 = vmul.f32 %v1780, %v1779
    %v1782 = vmul.f32 0.5, %v1781
    %v1783 = vsub.f32 1.5, %v1782
    %v1784 = vmul.f32 %v1779, %v1783
    %vm1785 = vweird.f32 %v1468
    %vm1786 = vweird.f32 %v1779
    %vm1787 = vmor %vm1785, %vm1786
    %v1788 = vsel %vm1787, %v1779, %v1784
    %v1789 = vmul.f32 %v1246, %v1478
    %v1790 = vmul.f32 %v1249, %v1488
    %v1791 = vmul.f32 %v1252, %v1498
    %v1792 = vmul.f32 %v1255, %v1508
    %v1793 = vmul.f32 %v1258, %v1518
    %v1794 = vmul.f32 %v1261, %v1528
    %v1795 = vmul.f32 %v1264, %v1538
    %v1796 = vmul.f32 %v1267, %v1548
    %v1797 = vmul.f32 %v1270, %v1558
    %v1798 = vmul.f32 %v1273, %v1568
    %v1799 = vmul.f32 %v1276, %v1578
    %v1800 = vmul.f32 %v1279, %v1588
    %v1801 = vmul.f32 %v1282, %v1598
    %v1802 = vmul.f32 %v1285, %v1608
    %v1803 = vmul.f32 %v1288, %v1618
    %v1804 = vmul.f32 %v1291, %v1628
    %v1805 = vmul.f32 %v1294, %v1638
    %v1806 = vmul.f32 %v1297, %v1648
    %v1807 = vmul.f32 %v1300, %v1658
    %v1808 = vmul.f32 %v1303, %v1668
    %v1809 = vmul.f32 %v1306, %v1678
    %v1810 = vmul.f32 %v1309, %v1688
    %v1811 = vmul.f32 %v1312, %v1698
    %v1812 = vmul.f32 %v1315, %v1708
    %v1813 = vmul.f32 %v1318, %v1718
    %v1814 = vmul.f32 %v1321, %v1728
    %v1815 = vmul.f32 %v1324, %v1738
    %v1816 = vmul.f32 %v1327, %v1748
    %v1817 = vmul.f32 %v1330, %v1758
    %v1818 = vmul.f32 %v1333, %v1768
    %v1819 = vmul.f32 %v1336, %v1778
    %v1820 = vmul.f32 %v1339, %v1788
    %s1821 = scalar_lea.vmem [#allocation2], 512
    %v1822 = vld [vmem:[%s1821] sm:$0xff]
    %v1823 = vld [vmem:[%s1821 + $0x8] sm:$0xff]
    %v1824 = vld [vmem:[%s1821 + $0x10] sm:$0xff]
    %v1825 = vld [vmem:[%s1821 + $0x18] sm:$0xff]
    %v1826 = vld [vmem:[%s1821 + $0x20] sm:$0xff]
    %v1827 = vld [vmem:[%s1821 + $0x28] sm:$0xff]
    %v1828 = vld [vmem:[%s1821 + $0x30] sm:$0xff]
    %v1829 = vld [vmem:[%s1821 + $0x38] sm:$0xff]
    %v1830 = vld [vmem:[%s1821 + $0x40] sm:$0xff]
    %v1831 = vld [vmem:[%s1821 + $0x48] sm:$0xff]
    %v1832 = vld [vmem:[%s1821 + $0x50] sm:$0xff]
    %v1833 = vld [vmem:[%s1821 + $0x58] sm:$0xff]
    %v1834 = vld [vmem:[%s1821 + $0x60] sm:$0xff]
    %v1835 = vld [vmem:[%s1821 + $0x68] sm:$0xff]
    %v1836 = vld [vmem:[%s1821 + $0x70] sm:$0xff]
    %v1837 = vld [vmem:[%s1821 + $0x78] sm:$0xff]
    %1838 = vmatpush.msra.mxu0 %v1837
    %1839 = vmatpush.msra.mxu0 %v1836
    %1840 = vmatpush.msra.mxu0 %v1835
    %1841 = vmatpush.msra.mxu0 %v1834
    %1842 = vmatpush.msra.mxu0 %v1833
    %1843 = vmatpush.msra.mxu0 %v1832
    %1844 = vmatpush.msra.mxu0 %v1831
    %1845 = vmatpush.msra.mxu0 %v1830
    %1846 = vmatpush.msra.mxu0 %v1829
    %1847 = vmatpush.msra.mxu0 %v1828
    %1848 = vmatpush.msra.mxu0 %v1827
    %1849 = vmatpush.msra.mxu0 %v1826
    %1850 = vmatpush.msra.mxu0 %v1825
    %1851 = vmatpush.msra.mxu0 %v1824
    %1852 = vmatpush.msra.mxu0 %v1823
    %1853 = vmatpush.msra.mxu0 %v1822
    %1854 = vmatmul.f32.gmra.mxu0 %v1789
    %v1855 = vpop.f32.mrf.mxu0
    %v1856 = vadd.f32 0.0, %v1855
    %1857 = vmatmul.f32.gmra.mxu0 %v1790
    %v1858 = vpop.f32.mrf.mxu0
    %v1859 = vadd.f32 0.0, %v1858
    %1860 = vmatmul.f32.gmra.mxu0 %v1791
    %v1861 = vpop.f32.mrf.mxu0
    %v1862 = vadd.f32 0.0, %v1861
    %1863 = vmatmul.f32.gmra.mxu0 %v1792
    %v1864 = vpop.f32.mrf.mxu0
    %v1865 = vadd.f32 0.0, %v1864
    %1866 = vmatmul.f32.gmra.mxu0 %v1793
    %v1867 = vpop.f32.mrf.mxu0
    %v1868 = vadd.f32 0.0, %v1867
    %1869 = vmatmul.f32.gmra.mxu0 %v1794
    %v1870 = vpop.f32.mrf.mxu0
    %v1871 = vadd.f32 0.0, %v1870
    %1872 = vmatmul.f32.gmra.mxu0 %v1795
    %v1873 = vpop.f32.mrf.mxu0
    %v1874 = vadd.f32 0.0, %v1873
    %1875 = vmatmul.f32.gmra.mxu0 %v1796
    %v1876 = vpop.f32.mrf.mxu0
    %v1877 = vadd.f32 0.0, %v1876
    %1878 = vmatmul.f32.gmra.mxu0 %v1797
    %v1879 = vpop.f32.mrf.mxu0
    %v1880 = vadd.f32 0.0, %v1879
    %1881 = vmatmul.f32.gmra.mxu0 %v1798
    %v1882 = vpop.f32.mrf.mxu0
    %v1883 = vadd.f32 0.0, %v1882
    %1884 = vmatmul.f32.gmra.mxu0 %v1799
    %v1885 = vpop.f32.mrf.mxu0
    %v1886 = vadd.f32 0.0, %v1885
    %1887 = vmatmul.f32.gmra.mxu0 %v1800
    %v1888 = vpop.f32.mrf.mxu0
    %v1889 = vadd.f32 0.0, %v1888
    %1890 = vmatmul.f32.gmra.mxu0 %v1801
    %v1891 = vpop.f32.mrf.mxu0
    %v1892 = vadd.f32 0.0, %v1891
    %1893 = vmatmul.f32.gmra.mxu0 %v1802
    %v1894 = vpop.f32.mrf.mxu0
    %v1895 = vadd.f32 0.0, %v1894
    %1896 = vmatmul.f32.gmra.mxu0 %v1803
    %v1897 = vpop.f32.mrf.mxu0
    %v1898 = vadd.f32 0.0, %v1897
    %1899 = vmatmul.f32.gmra.mxu0 %v1804
    %v1900 = vpop.f32.mrf.mxu0
    %v1901 = vadd.f32 0.0, %v1900
    %1902 = vmatmul.f32.gmra.mxu0 %v1805
    %v1903 = vpop.f32.mrf.mxu0
    %v1904 = vadd.f32 0.0, %v1903
    %1905 = vmatmul.f32.gmra.mxu0 %v1806
    %v1906 = vpop.f32.mrf.mxu0
    %v1907 = vadd.f32 0.0, %v1906
    %1908 = vmatmul.f32.gmra.mxu0 %v1807
    %v1909 = vpop.f32.mrf.mxu0
    %v1910 = vadd.f32 0.0, %v1909
    %1911 = vmatmul.f32.gmra.mxu0 %v1808
    %v1912 = vpop.f32.mrf.mxu0
    %v1913 = vadd.f32 0.0, %v1912
    %1914 = vmatmul.f32.gmra.mxu0 %v1809
    %v1915 = vpop.f32.mrf.mxu0
    %v1916 = vadd.f32 0.0, %v1915
    %1917 = vmatmul.f32.gmra.mxu0 %v1810
    %v1918 = vpop.f32.mrf.mxu0
    %v1919 = vadd.f32 0.0, %v1918
    %1920 = vmatmul.f32.gmra.mxu0 %v1811
    %v1921 = vpop.f32.mrf.mxu0
    %v1922 = vadd.f32 0.0, %v1921
    %1923 = vmatmul.f32.gmra.mxu0 %v1812
    %v1924 = vpop.f32.mrf.mxu0
    %v1925 = vadd.f32 0.0, %v1924
    %1926 = vmatmul.f32.gmra.mxu0 %v1813
    %v1927 = vpop.f32.mrf.mxu0
    %v1928 = vadd.f32 0.0, %v1927
    %1929 = vmatmul.f32.gmra.mxu0 %v1814
    %v1930 = vpop.f32.mrf.mxu0
    %v1931 = vadd.f32 0.0, %v1930
    %1932 = vmatmul.f32.gmra.mxu0 %v1815
    %v1933 = vpop.f32.mrf.mxu0
    %v1934 = vadd.f32 0.0, %v1933
    %1935 = vmatmul.f32.gmra.mxu0 %v1816
    %v1936 = vpop.f32.mrf.mxu0
    %v1937 = vadd.f32 0.0, %v1936
    %1938 = vmatmul.f32.gmra.mxu0 %v1817
    %v1939 = vpop.f32.mrf.mxu0
    %v1940 = vadd.f32 0.0, %v1939
    %1941 = vmatmul.f32.gmra.mxu0 %v1818
    %v1942 = vpop.f32.mrf.mxu0
    %v1943 = vadd.f32 0.0, %v1942
    %1944 = vmatmul.f32.gmra.mxu0 %v1819
    %v1945 = vpop.f32.mrf.mxu0
    %v1946 = vadd.f32 0.0, %v1945
    %1947 = vmatmul.f32.gmra.mxu0 %v1820
    %v1948 = vpop.f32.mrf.mxu0
    %v1949 = vadd.f32 0.0, %v1948
    %1950 = vdwg.mxu0
    %v1951 = vld [vmem:[%s2 + $0x8] sm:$0x1]
    %v1952 = vld [vmem:[%s2 + $0x9] sm:$0x1]
    %v1953 = vadd.f32 %v1856, %v1859
    %v1954 = vadd.f32 %v1953, %v1862
    %v1955 = vadd.f32 %v1954, %v1865
    %v1956 = vadd.f32 %v1955, %v1868
    %v1957 = vadd.f32 %v1956, %v1871
    %v1958 = vadd.f32 %v1957, %v1874
    %v1959 = vadd.f32 %v1958, %v1877
    %v1960 = vadd.f32 %v1959, %v1880
    %v1961 = vadd.f32 %v1960, %v1883
    %v1962 = vadd.f32 %v1961, %v1886
    %v1963 = vadd.f32 %v1962, %v1889
    %v1964 = vadd.f32 %v1963, %v1892
    %v1965 = vadd.f32 %v1964, %v1895
    %v1966 = vadd.f32 %v1965, %v1898
    %v1967 = vadd.f32 %v1966, %v1901
    %v1968 = vadd.f32 %v1967, %v1904
    %v1969 = vadd.f32 %v1968, %v1907
    %v1970 = vadd.f32 %v1969, %v1910
    %v1971 = vadd.f32 %v1970, %v1913
    %v1972 = vadd.f32 %v1971, %v1916
    %v1973 = vadd.f32 %v1972, %v1919
    %v1974 = vadd.f32 %v1973, %v1922
    %v1975 = vadd.f32 %v1974, %v1925
    %v1976 = vadd.f32 %v1975, %v1928
    %v1977 = vadd.f32 %v1976, %v1931
    %v1978 = vadd.f32 %v1977, %v1934
    %v1979 = vadd.f32 %v1978, %v1937
    %v1980 = vadd.f32 %v1979, %v1940
    %v1981 = vadd.f32 %v1980, %v1943
    %v1982 = vadd.f32 %v1981, %v1946
    %v1983 = vadd.f32 %v1982, %v1949
    %v1984 = vrot.slane %v1983, 4
    %v1985 = vadd.f32 %v1983, %v1984
    %v1986 = vrot.slane %v1985, 2
    %v1987 = vadd.f32 %v1985, %v1986
    %v1988 = vrot.slane %v1987, 1
    %v1989 = vadd.f32 %v1987, %v1988
    %v1990 = vmul.f32 %v1856, %v1856
    %v1991 = vmul.f32 %v1859, %v1859
    %v1992 = vmul.f32 %v1862, %v1862
    %v1993 = vmul.f32 %v1865, %v1865
    %v1994 = vmul.f32 %v1868, %v1868
    %v1995 = vmul.f32 %v1871, %v1871
    %v1996 = vmul.f32 %v1874, %v1874
    %v1997 = vmul.f32 %v1877, %v1877
    %v1998 = vmul.f32 %v1880, %v1880
    %v1999 = vmul.f32 %v1883, %v1883
    %v2000 = vmul.f32 %v1886, %v1886
    %v2001 = vmul.f32 %v1889, %v1889
    %v2002 = vmul.f32 %v1892, %v1892
    %v2003 = vmul.f32 %v1895, %v1895
    %v2004 = vmul.f32 %v1898, %v1898
    %v2005 = vmul.f32 %v1901, %v1901
    %v2006 = vmul.f32 %v1904, %v1904
    %v2007 = vmul.f32 %v1907, %v1907
    %v2008 = vmul.f32 %v1910, %v1910
    %v2009 = vmul.f32 %v1913, %v1913
    %v2010 = vmul.f32 %v1916, %v1916
    %v2011 = vmul.f32 %v1919, %v1919
    %v2012 = vmul.f32 %v1922, %v1922
    %v2013 = vmul.f32 %v1925, %v1925
    %v2014 = vmul.f32 %v1928, %v1928
    %v2015 = vmul.f32 %v1931, %v1931
    %v2016 = vmul.f32 %v1934, %v1934
    %v2017 = vmul.f32 %v1937, %v1937
    %v2018 = vmul.f32 %v1940, %v1940
    %v2019 = vmul.f32 %v1943, %v1943
    %v2020 = vmul.f32 %v1946, %v1946
    %v2021 = vmul.f32 %v1949, %v1949
    %v2022 = vadd.f32 %v1990, %v1991
    %v2023 = vadd.f32 %v2022, %v1992
    %v2024 = vadd.f32 %v2023, %v1993
    %v2025 = vadd.f32 %v2024, %v1994
    %v2026 = vadd.f32 %v2025, %v1995
    %v2027 = vadd.f32 %v2026, %v1996
    %v2028 = vadd.f32 %v2027, %v1997
    %v2029 = vadd.f32 %v2028, %v1998
    %v2030 = vadd.f32 %v2029, %v1999
    %v2031 = vadd.f32 %v2030, %v2000
    %v2032 = vadd.f32 %v2031, %v2001
    %v2033 = vadd.f32 %v2032, %v2002
    %v2034 = vadd.f32 %v2033, %v2003
    %v2035 = vadd.f32 %v2034, %v2004
    %v2036 = vadd.f32 %v2035, %v2005
    %v2037 = vadd.f32 %v2036, %v2006
    %v2038 = vadd.f32 %v2037, %v2007
    %v2039 = vadd.f32 %v2038, %v2008
    %v2040 = vadd.f32 %v2039, %v2009
    %v2041 = vadd.f32 %v2040, %v2010
    %v2042 = vadd.f32 %v2041, %v2011
    %v2043 = vadd.f32 %v2042, %v2012
    %v2044 = vadd.f32 %v2043, %v2013
    %v2045 = vadd.f32 %v2044, %v2014
    %v2046 = vadd.f32 %v2045, %v2015
    %v2047 = vadd.f32 %v2046, %v2016
    %v2048 = vadd.f32 %v2047, %v2017
    %v2049 = vadd.f32 %v2048, %v2018
    %v2050 = vadd.f32 %v2049, %v2019
    %v2051 = vadd.f32 %v2050, %v2020
    %v2052 = vadd.f32 %v2051, %v2021
    %v2053 = vrot.slane %v2052, 4
    %v2054 = vadd.f32 %v2052, %v2053
    %v2055 = vrot.slane %v2054, 2
    %v2056 = vadd.f32 %v2054, %v2055
    %v2057 = vrot.slane %v2056, 1
    %v2058 = vadd.f32 %v2056, %v2057
    %v2059 = vmul.f32 %v1989, 0.00390625
    %v2060 = vmul.f32 %v2058, 0.00390625
    %v2061 = vmul.f32 %v2059, %v2059
    %v2062 = vsub.f32 %v2060, %v2061
    %v2063 = vmax.f32 %v2062, 0.0
    %v2064 = vadd.f32 %v2063, 1e-05
    %v2065 = vrsqrt.pop %v2064
    %v2066 = vmul.f32 %v2065, %v2064
    %v2067 = vmul.f32 %v2066, %v2065
    %v2068 = vmul.f32 0.5, %v2067
    %v2069 = vsub.f32 1.5, %v2068
    %v2070 = vmul.f32 %v2065, %v2069
    %vm2071 = vweird.f32 %v2064
    %vm2072 = vweird.f32 %v2065
    %vm2073 = vmor %vm2071, %vm2072
    %v2074 = vsel %vm2073, %v2065, %v2070
    %v2075 = vmul.f32 %v1951, %v2074
    %v2076 = vmul.f32 %v2059, %v2075
    %v2077 = vsub.f32 %v1952, %v2076
    %v2078 = vperm.slane %v2075, 0
    %v2079 = vmul.f32 %v1856, %v2078
    %v2080 = vmul.f32 %v1859, %v2078
    %v2081 = vmul.f32 %v1862, %v2078
    %v2082 = vmul.f32 %v1865, %v2078
    %v2083 = vmul.f32 %v1868, %v2078
    %v2084 = vmul.f32 %v1871, %v2078
    %v2085 = vmul.f32 %v1874, %v2078
    %v2086 = vmul.f32 %v1877, %v2078
    %v2087 = vmul.f32 %v1880, %v2078
    %v2088 = vmul.f32 %v1883, %v2078
    %v2089 = vmul.f32 %v1886, %v2078
    %v2090 = vmul.f32 %v1889, %v2078
    %v2091 = vmul.f32 %v1892, %v2078
    %v2092 = vmul.f32 %v1895, %v2078
    %v2093 = vmul.f32 %v1898, %v2078
    %v2094 = vmul.f32 %v1901, %v2078
    %v2095 = vmul.f32 %v1904, %v2078
    %v2096 = vmul.f32 %v1907, %v2078
    %v2097 = vmul.f32 %v1910, %v2078
    %v2098 = vmul.f32 %v1913, %v2078
    %v2099 = vmul.f32 %v1916, %v2078
    %v2100 = vmul.f32 %v1919, %v2078
    %v2101 = vmul.f32 %v1922, %v2078
    %v2102 = vmul.f32 %v1925, %v2078
    %v2103 = vmul.f32 %v1928, %v2078
    %v2104 = vmul.f32 %v1931, %v2078
    %v2105 = vmul.f32 %v1934, %v2078
    %v2106 = vmul.f32 %v1937, %v2078
    %v2107 = vmul.f32 %v1940, %v2078
    %v2108 = vmul.f32 %v1943, %v2078
    %v2109 = vmul.f32 %v1946, %v2078
    %v2110 = vmul.f32 %v1949, %v2078
    %v2111 = vperm.slane %v2077, 0
    %v2112 = vadd.f32 %v2079, %v2111
    %v2113 = vadd.f32 %v2080, %v2111
    %v2114 = vadd.f32 %v2081, %v2111
    %v2115 = vadd.f32 %v2082, %v2111
    %v2116 = vadd.f32 %v2083, %v2111
    %v2117 = vadd.f32 %v2084, %v2111
    %v2118 = vadd.f32 %v2085, %v2111
    %v2119 = vadd.f32 %v2086, %v2111
    %v2120 = vadd.f32 %v2087, %v2111
    %v2121 = vadd.f32 %v2088, %v2111
    %v2122 = vadd.f32 %v2089, %v2111
    %v2123 = vadd.f32 %v2090, %v2111
    %v2124 = vadd.f32 %v2091, %v2111
    %v2125 = vadd.f32 %v2092, %v2111
    %v2126 = vadd.f32 %v2093, %v2111
    %v2127 = vadd.f32 %v2094, %v2111
    %v2128 = vadd.f32 %v2095, %v2111
    %v2129 = vadd.f32 %v2096, %v2111
    %v2130 = vadd.f32 %v2097, %v2111
    %v2131 = vadd.f32 %v2098, %v2111
    %v2132 = vadd.f32 %v2099, %v2111
    %v2133 = vadd.f32 %v2100, %v2111
    %v2134 = vadd.f32 %v2101, %v2111
    %v2135 = vadd.f32 %v2102, %v2111
    %v2136 = vadd.f32 %v2103, %v2111
    %v2137 = vadd.f32 %v2104, %v2111
    %v2138 = vadd.f32 %v2105, %v2111
    %v2139 = vadd.f32 %v2106, %v2111
    %v2140 = vadd.f32 %v2107, %v2111
    %v2141 = vadd.f32 %v2108, %v2111
    %v2142 = vadd.f32 %v2109, %v2111
    %v2143 = vadd.f32 %v2110, %v2111
    %v2144 = vmax.f32 %v2112, 0.0
    %v2145 = vmax.f32 %v2113, 0.0
    %v2146 = vmax.f32 %v2114, 0.0
    %v2147 = vmax.f32 %v2115, 0.0
    %v2148 = vmax.f32 %v2116, 0.0
    %v2149 = vmax.f32 %v2117, 0.0
    %v2150 = vmax.f32 %v2118, 0.0
    %v2151 = vmax.f32 %v2119, 0.0
    %v2152 = vmax.f32 %v2120, 0.0
    %v2153 = vmax.f32 %v2121, 0.0
    %v2154 = vmax.f32 %v2122, 0.0
    %v2155 = vmax.f32 %v2123, 0.0
    %v2156 = vmax.f32 %v2124, 0.0
    %v2157 = vmax.f32 %v2125, 0.0
    %v2158 = vmax.f32 %v2126, 0.0
    %v2159 = vmax.f32 %v2127, 0.0
    %v2160 = vmax.f32 %v2128, 0.0
    %v2161 = vmax.f32 %v2129, 0.0
    %v2162 = vmax.f32 %v2130, 0.0
    %v2163 = vmax.f32 %v2131, 0.0
    %v2164 = vmax.f32 %v2132, 0.0
    %v2165 = vmax.f32 %v2133, 0.0
    %v2166 = vmax.f32 %v2134, 0.0
    %v2167 = vmax.f32 %v2135, 0.0
    %v2168 = vmax.f32 %v2136, 0.0
    %v2169 = vmax.f32 %v2137, 0.0
    %v2170 = vmax.f32 %v2138, 0.0
    %v2171 = vmax.f32 %v2139, 0.0
    %v2172 = vmax.f32 %v2140, 0.0
    %v2173 = vmax.f32 %v2141, 0.0
    %v2174 = vmax.f32 %v2142, 0.0
    %v2175 = vmax.f32 %v2143, 0.0
    %s2176 = scalar_lea.vmem [#allocation2], 640
    %v2177 = vld [vmem:[%s2176] sm:$0xff]
    %v2178 = vld [vmem:[%s2176 + $0x8] sm:$0xff]
    %v2179 = vld [vmem:[%s2176 + $0x10] sm:$0xff]
    %v2180 = vld [vmem:[%s2176 + $0x18] sm:$0xff]
    %v2181 = vld [vmem:[%s2176 + $0x20] sm:$0xff]
    %v2182 = vld [vmem:[%s2176 + $0x28] sm:$0xff]
    %v2183 = vld [vmem:[%s2176 + $0x30] sm:$0xff]
    %v2184 = vld [vmem:[%s2176 + $0x38] sm:$0xff]
    %v2185 = vld [vmem:[%s2176 + $0x40] sm:$0xff]
    %v2186 = vld [vmem:[%s2176 + $0x48] sm:$0xff]
    %v2187 = vld [vmem:[%s2176 + $0x50] sm:$0xff]
    %v2188 = vld [vmem:[%s2176 + $0x58] sm:$0xff]
    %v2189 = vld [vmem:[%s2176 + $0x60] sm:$0xff]
    %v2190 = vld [vmem:[%s2176 + $0x68] sm:$0xff]
    %v2191 = vld [vmem:[%s2176 + $0x70] sm:$0xff]
    %v2192 = vld [vmem:[%s2176 + $0x78] sm:$0xff]
    %2193 = vmatpush.msra.mxu0 %v2192
    %2194 = vmatpush.msra.mxu0 %v2191
    %2195 = vmatpush.msra.mxu0 %v2190
    %2196 = vmatpush.msra.mxu0 %v2189
    %2197 = vmatpush.msra.mxu0 %v2188
    %2198 = vmatpush.msra.mxu0 %v2187
    %2199 = vmatpush.msra.mxu0 %v2186
    %2200 = vmatpush.msra.mxu0 %v2185
    %2201 = vmatpush.msra.mxu0 %v2184
    %2202 = vmatpush.msra.mxu0 %v2183
    %2203 = vmatpush.msra.mxu0 %v2182
    %2204 = vmatpush.msra.mxu0 %v2181
    %2205 = vmatpush.msra.mxu0 %v2180
    %2206 = vmatpush.msra.mxu0 %v2179
    %2207 = vmatpush.msra.mxu0 %v2178
    %2208 = vmatpush.msra.mxu0 %v2177
    %2209 = vmatmul.f32.gmra.mxu0 %v2144
    %v2210 = vpop.f32.mrf.mxu0
    %v2211 = vadd.f32 0.0, %v2210
    %2212 = vmatmul.f32.gmra.mxu0 %v2145
    %v2213 = vpop.f32.mrf.mxu0
    %v2214 = vadd.f32 0.0, %v2213
    %2215 = vmatmul.f32.gmra.mxu0 %v2146
    %v2216 = vpop.f32.mrf.mxu0
    %v2217 = vadd.f32 0.0, %v2216
    %2218 = vmatmul.f32.gmra.mxu0 %v2147
    %v2219 = vpop.f32.mrf.mxu0
    %v2220 = vadd.f32 0.0, %v2219
    %2221 = vmatmul.f32.gmra.mxu0 %v2148
    %v2222 = vpop.f32.mrf.mxu0
    %v2223 = vadd.f32 0.0, %v2222
    %2224 = vmatmul.f32.gmra.mxu0 %v2149
    %v2225 = vpop.f32.mrf.mxu0
    %v2226 = vadd.f32 0.0, %v2225
    %2227 = vmatmul.f32.gmra.mxu0 %v2150
    %v2228 = vpop.f32.mrf.mxu0
    %v2229 = vadd.f32 0.0, %v2228
    %2230 = vmatmul.f32.gmra.mxu0 %v2151
    %v2231 = vpop.f32.mrf.mxu0
    %v2232 = vadd.f32 0.0, %v2231
    %2233 = vmatmul.f32.gmra.mxu0 %v2152
    %v2234 = vpop.f32.mrf.mxu0
    %v2235 = vadd.f32 0.0, %v2234
    %2236 = vmatmul.f32.gmra.mxu0 %v2153
    %v2237 = vpop.f32.mrf.mxu0
    %v2238 = vadd.f32 0.0, %v2237
    %2239 = vmatmul.f32.gmra.mxu0 %v2154
    %v2240 = vpop.f32.mrf.mxu0
    %v2241 = vadd.f32 0.0, %v2240
    %2242 = vmatmul.f32.gmra.mxu0 %v2155
    %v2243 = vpop.f32.mrf.mxu0
    %v2244 = vadd.f32 0.0, %v2243
    %2245 = vmatmul.f32.gmra.mxu0 %v2156
    %v2246 = vpop.f32.mrf.mxu0
    %v2247 = vadd.f32 0.0, %v2246
    %2248 = vmatmul.f32.gmra.mxu0 %v2157
    %v2249 = vpop.f32.mrf.mxu0
    %v2250 = vadd.f32 0.0, %v2249
    %2251 = vmatmul.f32.gmra.mxu0 %v2158
    %v2252 = vpop.f32.mrf.mxu0
    %v2253 = vadd.f32 0.0, %v2252
    %2254 = vmatmul.f32.gmra.mxu0 %v2159
    %v2255 = vpop.f32.mrf.mxu0
    %v2256 = vadd.f32 0.0, %v2255
    %2257 = vmatmul.f32.gmra.mxu0 %v2160
    %v2258 = vpop.f32.mrf.mxu0
    %v2259 = vadd.f32 0.0, %v2258
    %2260 = vmatmul.f32.gmra.mxu0 %v2161
    %v2261 = vpop.f32.mrf.mxu0
    %v2262 = vadd.f32 0.0, %v2261
    %2263 = vmatmul.f32.gmra.mxu0 %v2162
    %v2264 = vpop.f32.mrf.mxu0
    %v2265 = vadd.f32 0.0, %v2264
    %2266 = vmatmul.f32.gmra.mxu0 %v2163
    %v2267 = vpop.f32.mrf.mxu0
    %v2268 = vadd.f32 0.0, %v2267
    %2269 = vmatmul.f32.gmra.mxu0 %v2164
    %v2270 = vpop.f32.mrf.mxu0
    %v2271 = vadd.f32 0.0, %v2270
    %2272 = vmatmul.f32.gmra.mxu0 %v2165
    %v2273 = vpop.f32.mrf.mxu0
    %v2274 = vadd.f32 0.0, %v2273
    %2275 = vmatmul.f32.gmra.mxu0 %v2166
    %v2276 = vpop.f32.mrf.mxu0
    %v2277 = vadd.f32 0.0, %v2276
    %2278 = vmatmul.f32.gmra.mxu0 %v2167
    %v2279 = vpop.f32.mrf.mxu0
    %v2280 = vadd.f32 0.0, %v2279
    %2281 = vmatmul.f32.gmra.mxu0 %v2168
    %v2282 = vpop.f32.mrf.mxu0
    %v2283 = vadd.f32 0.0, %v2282
    %2284 = vmatmul.f32.gmra.mxu0 %v2169
    %v2285 = vpop.f32.mrf.mxu0
    %v2286 = vadd.f32 0.0, %v2285
    %2287 = vmatmul.f32.gmra.mxu0 %v2170
    %v2288 = vpop.f32.mrf.mxu0
    %v2289 = vadd.f32 0.0, %v2288
    %2290 = vmatmul.f32.gmra.mxu0 %v2171
    %v2291 = vpop.f32.mrf.mxu0
    %v2292 = vadd.f32 0.0, %v2291
    %2293 = vmatmul.f32.gmra.mxu0 %v2172
    %v2294 = vpop.f32.mrf.mxu0
    %v2295 = vadd.f32 0.0, %v2294
    %2296 = vmatmul.f32.gmra.mxu0 %v2173
    %v2297 = vpop.f32.mrf.mxu0
    %v2298 = vadd.f32 0.0, %v2297
    %2299 = vmatmul.f32.gmra.mxu0 %v2174
    %v2300 = vpop.f32.mrf.mxu0
    %v2301 = vadd.f32 0.0, %v2300
    %2302 = vmatmul.f32.gmra.mxu0 %v2175
    %v2303 = vpop.f32.mrf.mxu0
    %v2304 = vadd.f32 0.0, %v2303
    %2305 = vdwg.mxu0
    %v2306 = vld [vmem:[%s2 + $0xa] sm:$0x1]
    %v2307 = vld [vmem:[%s2 + $0xb] sm:$0x1]
    %v2308 = vadd.f32 %v2211, %v2214
    %v2309 = vadd.f32 %v2308, %v2217
    %v2310 = vadd.f32 %v2309, %v2220
    %v2311 = vadd.f32 %v2310, %v2223
    %v2312 = vadd.f32 %v2311, %v2226
    %v2313 = vadd.f32 %v2312, %v2229
    %v2314 = vadd.f32 %v2313, %v2232
    %v2315 = vadd.f32 %v2314, %v2235
    %v2316 = vadd.f32 %v2315, %v2238
    %v2317 = vadd.f32 %v2316, %v2241
    %v2318 = vadd.f32 %v2317, %v2244
    %v2319 = vadd.f32 %v2318, %v2247
    %v2320 = vadd.f32 %v2319, %v2250
    %v2321 = vadd.f32 %v2320, %v2253
    %v2322 = vadd.f32 %v2321, %v2256
    %v2323 = vadd.f32 %v2322, %v2259
    %v2324 = vadd.f32 %v2323, %v2262
    %v2325 = vadd.f32 %v2324, %v2265
    %v2326 = vadd.f32 %v2325, %v2268
    %v2327 = vadd.f32 %v2326, %v2271
    %v2328 = vadd.f32 %v2327, %v2274
    %v2329 = vadd.f32 %v2328, %v2277
    %v2330 = vadd.f32 %v2329, %v2280
    %v2331 = vadd.f32 %v2330, %v2283
    %v2332 = vadd.f32 %v2331, %v2286
    %v2333 = vadd.f32 %v2332, %v2289
    %v2334 = vadd.f32 %v2333, %v2292
    %v2335 = vadd.f32 %v2334, %v2295
    %v2336 = vadd.f32 %v2335, %v2298
    %v2337 = vadd.f32 %v2336, %v2301
    %v2338 = vadd.f32 %v2337, %v2304
    %v2339 = vrot.slane %v2338, 4
    %v2340 = vadd.f32 %v2338, %v2339
    %v2341 = vrot.slane %v2340, 2
    %v2342 = vadd.f32 %v2340, %v2341
    %v2343 = vrot.slane %v2342, 1
    %v2344 = vadd.f32 %v2342, %v2343
    %v2345 = vmul.f32 %v2211, %v2211
    %v2346 = vmul.f32 %v2214, %v2214
    %v2347 = vmul.f32 %v2217, %v2217
    %v2348 = vmul.f32 %v2220, %v2220
    %v2349 = vmul.f32 %v2223, %v2223
    %v2350 = vmul.f32 %v2226, %v2226
    %v2351 = vmul.f32 %v2229, %v2229
    %v2352 = vmul.f32 %v2232, %v2232
    %v2353 = vmul.f32 %v2235, %v2235
    %v2354 = vmul.f32 %v2238, %v2238
    %v2355 = vmul.f32 %v2241, %v2241
    %v2356 = vmul.f32 %v2244, %v2244
    %v2357 = vmul.f32 %v2247, %v2247
    %v2358 = vmul.f32 %v2250, %v2250
    %v2359 = vmul.f32 %v2253, %v2253
    %v2360 = vmul.f32 %v2256, %v2256
    %v2361 = vmul.f32 %v2259, %v2259
    %v2362 = vmul.f32 %v2262, %v2262
    %v2363 = vmul.f32 %v2265, %v2265
    %v2364 = vmul.f32 %v2268, %v2268
    %v2365 = vmul.f32 %v2271, %v2271
    %v2366 = vmul.f32 %v2274, %v2274
    %v2367 = vmul.f32 %v2277, %v2277
    %v2368 = vmul.f32 %v2280, %v2280
    %v2369 = vmul.f32 %v2283, %v2283
    %v2370 = vmul.f32 %v2286, %v2286
    %v2371 = vmul.f32 %v2289, %v2289
    %v2372 = vmul.f32 %v2292, %v2292
    %v2373 = vmul.f32 %v2295, %v2295
    %v2374 = vmul.f32 %v2298, %v2298
    %v2375 = vmul.f32 %v2301, %v2301
    %v2376 = vmul.f32 %v2304, %v2304
    %v2377 = vadd.f32 %v2345, %v2346
    %v2378 = vadd.f32 %v2377, %v2347
    %v2379 = vadd.f32 %v2378, %v2348
    %v2380 = vadd.f32 %v2379, %v2349
    %v2381 = vadd.f32 %v2380, %v2350
    %v2382 = vadd.f32 %v2381, %v2351
    %v2383 = vadd.f32 %v2382, %v2352
    %v2384 = vadd.f32 %v2383, %v2353
    %v2385 = vadd.f32 %v2384, %v2354
    %v2386 = vadd.f32 %v2385, %v2355
    %v2387 = vadd.f32 %v2386, %v2356
    %v2388 = vadd.f32 %v2387, %v2357
    %v2389 = vadd.f32 %v2388, %v2358
    %v2390 = vadd.f32 %v2389, %v2359
    %v2391 = vadd.f32 %v2390, %v2360
    %v2392 = vadd.f32 %v2391, %v2361
    %v2393 = vadd.f32 %v2392, %v2362
    %v2394 = vadd.f32 %v2393, %v2363
    %v2395 = vadd.f32 %v2394, %v2364
    %v2396 = vadd.f32 %v2395, %v2365
    %v2397 = vadd.f32 %v2396, %v2366
    %v2398 = vadd.f32 %v2397, %v2367
    %v2399 = vadd.f32 %v2398, %v2368
    %v2400 = vadd.f32 %v2399, %v2369
    %v2401 = vadd.f32 %v2400, %v2370
    %v2402 = vadd.f32 %v2401, %v2371
    %v2403 = vadd.f32 %v2402, %v2372
    %v2404 = vadd.f32 %v2403, %v2373
    %v2405 = vadd.f32 %v2404, %v2374
    %v2406 = vadd.f32 %v2405, %v2375
    %v2407 = vadd.f32 %v2406, %v2376
    %v2408 = vrot.slane %v2407, 4
    %v2409 = vadd.f32 %v2407, %v2408
    %v2410 = vrot.slane %v2409, 2
    %v2411 = vadd.f32 %v2409, %v2410
    %v2412 = vrot.slane %v2411, 1
    %v2413 = vadd.f32 %v2411, %v2412
    %v2414 = vmul.f32 %v2344, 0.00390625
    %v2415 = vmul.f32 %v2413, 0.00390625
    %v2416 = vmul.f32 %v2414, %v2414
    %v2417 = vsub.f32 %v2415, %v2416
    %v2418 = vmax.f32 %v2417, 0.0
    %v2419 = vadd.f32 %v2418, 1e-05
    %v2420 = vrsqrt.pop %v2419
    %v2421 = vmul.f32 %v2420, %v2419
    %v2422 = vmul.f32 %v2421, %v2420
    %v2423 = vmul.f32 0.5, %v2422
    %v2424 = vsub.f32 1.5, %v2423
    %v2425 = vmul.f32 %v2420, %v2424
    %vm2426 = vweird.f32 %v2419
    %vm2427 = vweird.f32 %v2420
    %vm2428 = vmor %vm2426, %vm2427
    %v2429 = vsel %vm2428, %v2420, %v2425
    %v2430 = vmul.f32 %v2306, %v2429
    %v2431 = vmul.f32 %v2414, %v2430
    %v2432 = vsub.f32 %v2307, %v2431
    %v2433 = vperm.slane %v2430, 0
    %v2434 = vmul.f32 %v2211, %v2433
    %v2435 = vmul.f32 %v2214, %v2433
    %v2436 = vmul.f32 %v2217, %v2433
    %v2437 = vmul.f32 %v2220, %v2433
    %v2438 = vmul.f32 %v2223, %v2433
    %v2439 = vmul.f32 %v2226, %v2433
    %v2440 = vmul.f32 %v2229, %v2433
    %v2441 = vmul.f32 %v2232, %v2433
    %v2442 = vmul.f32 %v2235, %v2433
    %v2443 = vmul.f32 %v2238, %v2433
    %v2444 = vmul.f32 %v2241, %v2433
    %v2445 = vmul.f32 %v2244, %v2433
    %v2446 = vmul.f32 %v2247, %v2433
    %v2447 = vmul.f32 %v2250, %v2433
    %v2448 = vmul.f32 %v2253, %v2433
    %v2449 = vmul.f32 %v2256, %v2433
    %v2450 = vmul.f32 %v2259, %v2433
    %v2451 = vmul.f32 %v2262, %v2433
    %v2452 = vmul.f32 %v2265, %v2433
    %v2453 = vmul.f32 %v2268, %v2433
    %v2454 = vmul.f32 %v2271, %v2433
    %v2455 = vmul.f32 %v2274, %v2433
    %v2456 = vmul.f32 %v2277, %v2433
    %v2457 = vmul.f32 %v2280, %v2433
    %v2458 = vmul.f32 %v2283, %v2433
    %v2459 = vmul.f32 %v2286, %v2433
    %v2460 = vmul.f32 %v2289, %v2433
    %v2461 = vmul.f32 %v2292, %v2433
    %v2462 = vmul.f32 %v2295, %v2433
    %v2463 = vmul.f32 %v2298, %v2433
    %v2464 = vmul.f32 %v2301, %v2433
    %v2465 = vmul.f32 %v2304, %v2433
    %v2466 = vperm.slane %v2432, 0
    %v2467 = vadd.f32 %v2434, %v2466
    %v2468 = vadd.f32 %v2435, %v2466
    %v2469 = vadd.f32 %v2436, %v2466
    %v2470 = vadd.f32 %v2437, %v2466
    %v2471 = vadd.f32 %v2438, %v2466
    %v2472 = vadd.f32 %v2439, %v2466
    %v2473 = vadd.f32 %v2440, %v2466
    %v2474 = vadd.f32 %v2441, %v2466
    %v2475 = vadd.f32 %v2442, %v2466
    %v2476 = vadd.f32 %v2443, %v2466
    %v2477 = vadd.f32 %v2444, %v2466
    %v2478 = vadd.f32 %v2445, %v2466
    %v2479 = vadd.f32 %v2446, %v2466
    %v2480 = vadd.f32 %v2447, %v2466
    %v2481 = vadd.f32 %v2448, %v2466
    %v2482 = vadd.f32 %v2449, %v2466
    %v2483 = vadd.f32 %v2450, %v2466
    %v2484 = vadd.f32 %v2451, %v2466
    %v2485 = vadd.f32 %v2452, %v2466
    %v2486 = vadd.f32 %v2453, %v2466
    %v2487 = vadd.f32 %v2454, %v2466
    %v2488 = vadd.f32 %v2455, %v2466
    %v2489 = vadd.f32 %v2456, %v2466
    %v2490 = vadd.f32 %v2457, %v2466
    %v2491 = vadd.f32 %v2458, %v2466
    %v2492 = vadd.f32 %v2459, %v2466
    %v2493 = vadd.f32 %v2460, %v2466
    %v2494 = vadd.f32 %v2461, %v2466
    %v2495 = vadd.f32 %v2462, %v2466
    %v2496 = vadd.f32 %v2463, %v2466
    %v2497 = vadd.f32 %v2464, %v2466
    %v2498 = vadd.f32 %v2465, %v2466
    %v2499 = vmax.f32 %v2467, 0.0
    %v2500 = vmax.f32 %v2468, 0.0
    %v2501 = vmax.f32 %v2469, 0.0
    %v2502 = vmax.f32 %v2470, 0.0
    %v2503 = vmax.f32 %v2471, 0.0
    %v2504 = vmax.f32 %v2472, 0.0
    %v2505 = vmax.f32 %v2473, 0.0
    %v2506 = vmax.f32 %v2474, 0.0
    %v2507 = vmax.f32 %v2475, 0.0
    %v2508 = vmax.f32 %v2476, 0.0
    %v2509 = vmax.f32 %v2477, 0.0
    %v2510 = vmax.f32 %v2478, 0.0
    %v2511 = vmax.f32 %v2479, 0.0
    %v2512 = vmax.f32 %v2480, 0.0
    %v2513 = vmax.f32 %v2481, 0.0
    %v2514 = vmax.f32 %v2482, 0.0
    %v2515 = vmax.f32 %v2483, 0.0
    %v2516 = vmax.f32 %v2484, 0.0
    %v2517 = vmax.f32 %v2485, 0.0
    %v2518 = vmax.f32 %v2486, 0.0
    %v2519 = vmax.f32 %v2487, 0.0
    %v2520 = vmax.f32 %v2488, 0.0
    %v2521 = vmax.f32 %v2489, 0.0
    %v2522 = vmax.f32 %v2490, 0.0
    %v2523 = vmax.f32 %v2491, 0.0
    %v2524 = vmax.f32 %v2492, 0.0
    %v2525 = vmax.f32 %v2493, 0.0
    %v2526 = vmax.f32 %v2494, 0.0
    %v2527 = vmax.f32 %v2495, 0.0
    %v2528 = vmax.f32 %v2496, 0.0
    %v2529 = vmax.f32 %v2497, 0.0
    %v2530 = vmax.f32 %v2498, 0.0
    %s2531 = scalar_lea.vmem [#allocation2], 768
    %v2532 = vld [vmem:[%s2531] sm:$0xff]
    %v2533 = vld [vmem:[%s2531 + $0x8] sm:$0xff]
    %v2534 = vld [vmem:[%s2531 + $0x10] sm:$0xff]
    %v2535 = vld [vmem:[%s2531 + $0x18] sm:$0xff]
    %v2536 = vld [vmem:[%s2531 + $0x20] sm:$0xff]
    %v2537 = vld [vmem:[%s2531 + $0x28] sm:$0xff]
    %v2538 = vld [vmem:[%s2531 + $0x30] sm:$0xff]
    %v2539 = vld [vmem:[%s2531 + $0x38] sm:$0xff]
    %v2540 = vld [vmem:[%s2531 + $0x40] sm:$0xff]
    %v2541 = vld [vmem:[%s2531 + $0x48] sm:$0xff]
    %v2542 = vld [vmem:[%s2531 + $0x50] sm:$0xff]
    %v2543 = vld [vmem:[%s2531 + $0x58] sm:$0xff]
    %v2544 = vld [vmem:[%s2531 + $0x60] sm:$0xff]
    %v2545 = vld [vmem:[%s2531 + $0x68] sm:$0xff]
    %v2546 = vld [vmem:[%s2531 + $0x70] sm:$0xff]
    %v2547 = vld [vmem:[%s2531 + $0x78] sm:$0xff]
    %2548 = vmatpush.msra.mxu0 %v2547
    %2549 = vmatpush.msra.mxu0 %v2546
    %2550 = vmatpush.msra.mxu0 %v2545
    %2551 = vmatpush.msra.mxu0 %v2544
    %2552 = vmatpush.msra.mxu0 %v2543
    %2553 = vmatpush.msra.mxu0 %v2542
    %2554 = vmatpush.msra.mxu0 %v2541
    %2555 = vmatpush.msra.mxu0 %v2540
    %2556 = vmatpush.msra.mxu0 %v2539
    %2557 = vmatpush.msra.mxu0 %v2538
    %2558 = vmatpush.msra.mxu0 %v2537
    %2559 = vmatpush.msra.mxu0 %v2536
    %2560 = vmatpush.msra.mxu0 %v2535
    %2561 = vmatpush.msra.mxu0 %v2534
    %2562 = vmatpush.msra.mxu0 %v2533
    %2563 = vmatpush.msra.mxu0 %v2532
    %2564 = vmatmul.f32.gmra.mxu0 %v2499
    %v2565 = vpop.f32.mrf.mxu0
    %v2566 = vadd.f32 0.0, %v2565
    %2567 = vmatmul.f32.gmra.mxu0 %v2500
    %v2568 = vpop.f32.mrf.mxu0
    %v2569 = vadd.f32 0.0, %v2568
    %2570 = vmatmul.f32.gmra.mxu0 %v2501
    %v2571 = vpop.f32.mrf.mxu0
    %v2572 = vadd.f32 0.0, %v2571
    %2573 = vmatmul.f32.gmra.mxu0 %v2502
    %v2574 = vpop.f32.mrf.mxu0
    %v2575 = vadd.f32 0.0, %v2574
    %2576 = vmatmul.f32.gmra.mxu0 %v2503
    %v2577 = vpop.f32.mrf.mxu0
    %v2578 = vadd.f32 0.0, %v2577
    %2579 = vmatmul.f32.gmra.mxu0 %v2504
    %v2580 = vpop.f32.mrf.mxu0
    %v2581 = vadd.f32 0.0, %v2580
    %2582 = vmatmul.f32.gmra.mxu0 %v2505
    %v2583 = vpop.f32.mrf.mxu0
    %v2584 = vadd.f32 0.0, %v2583
    %2585 = vmatmul.f32.gmra.mxu0 %v2506
    %v2586 = vpop.f32.mrf.mxu0
    %v2587 = vadd.f32 0.0, %v2586
    %2588 = vmatmul.f32.gmra.mxu0 %v2507
    %v2589 = vpop.f32.mrf.mxu0
    %v2590 = vadd.f32 0.0, %v2589
    %2591 = vmatmul.f32.gmra.mxu0 %v2508
    %v2592 = vpop.f32.mrf.mxu0
    %v2593 = vadd.f32 0.0, %v2592
    %2594 = vmatmul.f32.gmra.mxu0 %v2509
    %v2595 = vpop.f32.mrf.mxu0
    %v2596 = vadd.f32 0.0, %v2595
    %2597 = vmatmul.f32.gmra.mxu0 %v2510
    %v2598 = vpop.f32.mrf.mxu0
    %v2599 = vadd.f32 0.0, %v2598
    %2600 = vmatmul.f32.gmra.mxu0 %v2511
    %v2601 = vpop.f32.mrf.mxu0
    %v2602 = vadd.f32 0.0, %v2601
    %2603 = vmatmul.f32.gmra.mxu0 %v2512
    %v2604 = vpop.f32.mrf.mxu0
    %v2605 = vadd.f32 0.0, %v2604
    %2606 = vmatmul.f32.gmra.mxu0 %v2513
    %v2607 = vpop.f32.mrf.mxu0
    %v2608 = vadd.f32 0.0, %v2607
    %2609 = vmatmul.f32.gmra.mxu0 %v2514
    %v2610 = vpop.f32.mrf.mxu0
    %v2611 = vadd.f32 0.0, %v2610
    %2612 = vmatmul.f32.gmra.mxu0 %v2515
    %v2613 = vpop.f32.mrf.mxu0
    %v2614 = vadd.f32 0.0, %v2613
    %2615 = vmatmul.f32.gmra.mxu0 %v2516
    %v2616 = vpop.f32.mrf.mxu0
    %v2617 = vadd.f32 0.0, %v2616
    %2618 = vmatmul.f32.gmra.mxu0 %v2517
    %v2619 = vpop.f32.mrf.mxu0
    %v2620 = vadd.f32 0.0, %v2619
    %2621 = vmatmul.f32.gmra.mxu0 %v2518
    %v2622 = vpop.f32.mrf.mxu0
    %v2623 = vadd.f32 0.0, %v2622
    %2624 = vmatmul.f32.gmra.mxu0 %v2519
    %v2625 = vpop.f32.mrf.mxu0
    %v2626 = vadd.f32 0.0, %v2625
    %2627 = vmatmul.f32.gmra.mxu0 %v2520
    %v2628 = vpop.f32.mrf.mxu0
    %v2629 = vadd.f32 0.0, %v2628
    %2630 = vmatmul.f32.gmra.mxu0 %v2521
    %v2631 = vpop.f32.mrf.mxu0
    %v2632 = vadd.f32 0.0, %v2631
    %2633 = vmatmul.f32.gmra.mxu0 %v2522
    %v2634 = vpop.f32.mrf.mxu0
    %v2635 = vadd.f32 0.0, %v2634
    %2636 = vmatmul.f32.gmra.mxu0 %v2523
    %v2637 = vpop.f32.mrf.mxu0
    %v2638 = vadd.f32 0.0, %v2637
    %2639 = vmatmul.f32.gmra.mxu0 %v2524
    %v2640 = vpop.f32.mrf.mxu0
    %v2641 = vadd.f32 0.0, %v2640
    %2642 = vmatmul.f32.gmra.mxu0 %v2525
    %v2643 = vpop.f32.mrf.mxu0
    %v2644 = vadd.f32 0.0, %v2643
    %2645 = vmatmul.f32.gmra.mxu0 %v2526
    %v2646 = vpop.f32.mrf.mxu0
    %v2647 = vadd.f32 0.0, %v2646
    %2648 = vmatmul.f32.gmra.mxu0 %v2527
    %v2649 = vpop.f32.mrf.mxu0
    %v2650 = vadd.f32 0.0, %v2649
    %2651 = vmatmul.f32.gmra.mxu0 %v2528
    %v2652 = vpop.f32.mrf.mxu0
    %v2653 = vadd.f32 0.0, %v2652
    %2654 = vmatmul.f32.gmra.mxu0 %v2529
    %v2655 = vpop.f32.mrf.mxu0
    %v2656 = vadd.f32 0.0, %v2655
    %2657 = vmatmul.f32.gmra.mxu0 %v2530
    %v2658 = vpop.f32.mrf.mxu0
    %v2659 = vadd.f32 0.0, %v2658
    %2660 = vdwg.mxu0
    %v2661 = vld [vmem:[%s2 + $0xc] sm:$0x1]
    %v2662 = vld [vmem:[%s2 + $0xd] sm:$0x1]
    %v2663 = vadd.f32 %v2566, %v2569
    %v2664 = vadd.f32 %v2663, %v2572
    %v2665 = vadd.f32 %v2664, %v2575
    %v2666 = vadd.f32 %v2665, %v2578
    %v2667 = vadd.f32 %v2666, %v2581
    %v2668 = vadd.f32 %v2667, %v2584
    %v2669 = vadd.f32 %v2668, %v2587
    %v2670 = vadd.f32 %v2669, %v2590
    %v2671 = vadd.f32 %v2670, %v2593
    %v2672 = vadd.f32 %v2671, %v2596
    %v2673 = vadd.f32 %v2672, %v2599
    %v2674 = vadd.f32 %v2673, %v2602
    %v2675 = vadd.f32 %v2674, %v2605
    %v2676 = vadd.f32 %v2675, %v2608
    %v2677 = vadd.f32 %v2676, %v2611
    %v2678 = vadd.f32 %v2677, %v2614
    %v2679 = vadd.f32 %v2678, %v2617
    %v2680 = vadd.f32 %v2679, %v2620
    %v2681 = vadd.f32 %v2680, %v2623
    %v2682 = vadd.f32 %v2681, %v2626
    %v2683 = vadd.f32 %v2682, %v2629
    %v2684 = vadd.f32 %v2683, %v2632
    %v2685 = vadd.f32 %v2684, %v2635
    %v2686 = vadd.f32 %v2685, %v2638
    %v2687 = vadd.f32 %v2686, %v2641
    %v2688 = vadd.f32 %v2687, %v2644
    %v2689 = vadd.f32 %v2688, %v2647
    %v2690 = vadd.f32 %v2689, %v2650
    %v2691 = vadd.f32 %v2690, %v2653
    %v2692 = vadd.f32 %v2691, %v2656
    %v2693 = vadd.f32 %v2692, %v2659
    %v2694 = vrot.slane %v2693, 4
    %v2695 = vadd.f32 %v2693, %v2694
    %v2696 = vrot.slane %v2695, 2
    %v2697 = vadd.f32 %v2695, %v2696
    %v2698 = vrot.slane %v2697, 1
    %v2699 = vadd.f32 %v2697, %v2698
    %v2700 = vmul.f32 %v2566, %v2566
    %v2701 = vmul.f32 %v2569, %v2569
    %v2702 = vmul.f32 %v2572, %v2572
    %v2703 = vmul.f32 %v2575, %v2575
    %v2704 = vmul.f32 %v2578, %v2578
    %v2705 = vmul.f32 %v2581, %v2581
    %v2706 = vmul.f32 %v2584, %v2584
    %v2707 = vmul.f32 %v2587, %v2587
    %v2708 = vmul.f32 %v2590, %v2590
    %v2709 = vmul.f32 %v2593, %v2593
    %v2710 = vmul.f32 %v2596, %v2596
    %v2711 = vmul.f32 %v2599, %v2599
    %v2712 = vmul.f32 %v2602, %v2602
    %v2713 = vmul.f32 %v2605, %v2605
    %v2714 = vmul.f32 %v2608, %v2608
    %v2715 = vmul.f32 %v2611, %v2611
    %v2716 = vmul.f32 %v2614, %v2614
    %v2717 = vmul.f32 %v2617, %v2617
    %v2718 = vmul.f32 %v2620, %v2620
    %v2719 = vmul.f32 %v2623, %v2623
    %v2720 = vmul.f32 %v2626, %v2626
    %v2721 = vmul.f32 %v2629, %v2629
    %v2722 = vmul.f32 %v2632, %v2632
    %v2723 = vmul.f32 %v2635, %v2635
    %v2724 = vmul.f32 %v2638, %v2638
    %v2725 = vmul.f32 %v2641, %v2641
    %v2726 = vmul.f32 %v2644, %v2644
    %v2727 = vmul.f32 %v2647, %v2647
    %v2728 = vmul.f32 %v2650, %v2650
    %v2729 = vmul.f32 %v2653, %v2653
    %v2730 = vmul.f32 %v2656, %v2656
    %v2731 = vmul.f32 %v2659, %v2659
    %v2732 = vadd.f32 %v2700, %v2701
    %v2733 = vadd.f32 %v2732, %v2702
    %v2734 = vadd.f32 %v2733, %v2703
    %v2735 = vadd.f32 %v2734, %v2704
    %v2736 = vadd.f32 %v2735, %v2705
    %v2737 = vadd.f32 %v2736, %v2706
    %v2738 = vadd.f32 %v2737, %v2707
    %v2739 = vadd.f32 %v2738, %v2708
    %v2740 = vadd.f32 %v2739, %v2709
    %v2741 = vadd.f32 %v2740, %v2710
    %v2742 = vadd.f32 %v2741, %v2711
    %v2743 = vadd.f32 %v2742, %v2712
    %v2744 = vadd.f32 %v2743, %v2713
    %v2745 = vadd.f32 %v2744, %v2714
    %v2746 = vadd.f32 %v2745, %v2715
    %v2747 = vadd.f32 %v2746, %v2716
    %v2748 = vadd.f32 %v2747, %v2717
    %v2749 = vadd.f32 %v2748, %v2718
    %v2750 = vadd.f32 %v2749, %v2719
    %v2751 = vadd.f32 %v2750, %v2720
    %v2752 = vadd.f32 %v2751, %v2721
    %v2753 = vadd.f32 %v2752, %v2722
    %v2754 = vadd.f32 %v2753, %v2723
    %v2755 = vadd.f32 %v2754, %v2724
    %v2756 = vadd.f32 %v2755, %v2725
    %v2757 = vadd.f32 %v2756, %v2726
    %v2758 = vadd.f32 %v2757, %v2727
    %v2759 = vadd.f32 %v2758, %v2728
    %v2760 = vadd.f32 %v2759, %v2729
    %v2761 = vadd.f32 %v2760, %v2730
    %v2762 = vadd.f32 %v2761, %v2731
    %v2763 = vrot.slane %v2762, 4
    %v2764 = vadd.f32 %v2762, %v2763
    %v2765 = vrot.slane %v2764, 2
    %v2766 = vadd.f32 %v2764, %v2765
    %v2767 = vrot.slane %v2766, 1
    %v2768 = vadd.f32 %v2766, %v2767
    %v2769 = vmul.f32 %v2699, 0.00390625
    %v2770 = vmul.f32 %v2768, 0.00390625
    %v2771 = vmul.f32 %v2769, %v2769
    %v2772 = vsub.f32 %v2770, %v2771
    %v2773 = vmax.f32 %v2772, 0.0
    %v2774 = vadd.f32 %v2773, 1e-05
    %v2775 = vrsqrt.pop %v2774
    %v2776 = vmul.f32 %v2775, %v2774
    %v2777 = vmul.f32 %v2776, %v2775
    %v2778 = vmul.f32 0.5, %v2777
    %v2779 = vsub.f32 1.5, %v2778
    %v2780 = vmul.f32 %v2775, %v2779
    %vm2781 = vweird.f32 %v2774
    %vm2782 = vweird.f32 %v2775
    %vm2783 = vmor %vm2781, %vm2782
    %v2784 = vsel %vm2783, %v2775, %v2780
    %v2785 = vmul.f32 %v2661, %v2784
    %v2786 = vmul.f32 %v2769, %v2785
    %v2787 = vsub.f32 %v2662, %v2786
    %v2788 = vperm.slane %v2785, 0
    %v2789 = vmul.f32 %v2566, %v2788
    %v2790 = vmul.f32 %v2569, %v2788
    %v2791 = vmul.f32 %v2572, %v2788
    %v2792 = vmul.f32 %v2575, %v2788
    %v2793 = vmul.f32 %v2578, %v2788
    %v2794 = vmul.f32 %v2581, %v2788
    %v2795 = vmul.f32 %v2584, %v2788
    %v2796 = vmul.f32 %v2587, %v2788
    %v2797 = vmul.f32 %v2590, %v2788
    %v2798 = vmul.f32 %v2593, %v2788
    %v2799 = vmul.f32 %v2596, %v2788
    %v2800 = vmul.f32 %v2599, %v2788
    %v2801 = vmul.f32 %v2602, %v2788
    %v2802 = vmul.f32 %v2605, %v2788
    %v2803 = vmul.f32 %v2608, %v2788
    %v2804 = vmul.f32 %v2611, %v2788
    %v2805 = vmul.f32 %v2614, %v2788
    %v2806 = vmul.f32 %v2617, %v2788
    %v2807 = vmul.f32 %v2620, %v2788
    %v2808 = vmul.f32 %v2623, %v2788
    %v2809 = vmul.f32 %v2626, %v2788
    %v2810 = vmul.f32 %v2629, %v2788
    %v2811 = vmul.f32 %v2632, %v2788
    %v2812 = vmul.f32 %v2635, %v2788
    %v2813 = vmul.f32 %v2638, %v2788
    %v2814 = vmul.f32 %v2641, %v2788
    %v2815 = vmul.f32 %v2644, %v2788
    %v2816 = vmul.f32 %v2647, %v2788
    %v2817 = vmul.f32 %v2650, %v2788
    %v2818 = vmul.f32 %v2653, %v2788
    %v2819 = vmul.f32 %v2656, %v2788
    %v2820 = vmul.f32 %v2659, %v2788
    %v2821 = vperm.slane %v2787, 0
    %v2822 = vadd.f32 %v2789, %v2821
    %v2823 = vadd.f32 %v2790, %v2821
    %v2824 = vadd.f32 %v2791, %v2821
    %v2825 = vadd.f32 %v2792, %v2821
    %v2826 = vadd.f32 %v2793, %v2821
    %v2827 = vadd.f32 %v2794, %v2821
    %v2828 = vadd.f32 %v2795, %v2821
    %v2829 = vadd.f32 %v2796, %v2821
    %v2830 = vadd.f32 %v2797, %v2821
    %v2831 = vadd.f32 %v2798, %v2821
    %v2832 = vadd.f32 %v2799, %v2821
    %v2833 = vadd.f32 %v2800, %v2821
    %v2834 = vadd.f32 %v2801, %v2821
    %v2835 = vadd.f32 %v2802, %v2821
    %v2836 = vadd.f32 %v2803, %v2821
    %v2837 = vadd.f32 %v2804, %v2821
    %v2838 = vadd.f32 %v2805, %v2821
    %v2839 = vadd.f32 %v2806, %v2821
    %v2840 = vadd.f32 %v2807, %v2821
    %v2841 = vadd.f32 %v2808, %v2821
    %v2842 = vadd.f32 %v2809, %v2821
    %v2843 = vadd.f32 %v2810, %v2821
    %v2844 = vadd.f32 %v2811, %v2821
    %v2845 = vadd.f32 %v2812, %v2821
    %v2846 = vadd.f32 %v2813, %v2821
    %v2847 = vadd.f32 %v2814, %v2821
    %v2848 = vadd.f32 %v2815, %v2821
    %v2849 = vadd.f32 %v2816, %v2821
    %v2850 = vadd.f32 %v2817, %v2821
    %v2851 = vadd.f32 %v2818, %v2821
    %v2852 = vadd.f32 %v2819, %v2821
    %v2853 = vadd.f32 %v2820, %v2821
    %v2854 = vmax.f32 %v2822, 0.0
    %v2855 = vmax.f32 %v2823, 0.0
    %v2856 = vmax.f32 %v2824, 0.0
    %v2857 = vmax.f32 %v2825, 0.0
    %v2858 = vmax.f32 %v2826, 0.0
    %v2859 = vmax.f32 %v2827, 0.0
    %v2860 = vmax.f32 %v2828, 0.0
    %v2861 = vmax.f32 %v2829, 0.0
    %v2862 = vmax.f32 %v2830, 0.0
    %v2863 = vmax.f32 %v2831, 0.0
    %v2864 = vmax.f32 %v2832, 0.0
    %v2865 = vmax.f32 %v2833, 0.0
    %v2866 = vmax.f32 %v2834, 0.0
    %v2867 = vmax.f32 %v2835, 0.0
    %v2868 = vmax.f32 %v2836, 0.0
    %v2869 = vmax.f32 %v2837, 0.0
    %v2870 = vmax.f32 %v2838, 0.0
    %v2871 = vmax.f32 %v2839, 0.0
    %v2872 = vmax.f32 %v2840, 0.0
    %v2873 = vmax.f32 %v2841, 0.0
    %v2874 = vmax.f32 %v2842, 0.0
    %v2875 = vmax.f32 %v2843, 0.0
    %v2876 = vmax.f32 %v2844, 0.0
    %v2877 = vmax.f32 %v2845, 0.0
    %v2878 = vmax.f32 %v2846, 0.0
    %v2879 = vmax.f32 %v2847, 0.0
    %v2880 = vmax.f32 %v2848, 0.0
    %v2881 = vmax.f32 %v2849, 0.0
    %v2882 = vmax.f32 %v2850, 0.0
    %v2883 = vmax.f32 %v2851, 0.0
    %v2884 = vmax.f32 %v2852, 0.0
    %v2885 = vmax.f32 %v2853, 0.0
    %s2886 = scalar_lea.vmem [#allocation2], 896
    %v2887 = vld [vmem:[%s2886] sm:$0xff]
    %v2888 = vld [vmem:[%s2886 + $0x8] sm:$0xff]
    %v2889 = vld [vmem:[%s2886 + $0x10] sm:$0xff]
    %v2890 = vld [vmem:[%s2886 + $0x18] sm:$0xff]
    %v2891 = vld [vmem:[%s2886 + $0x20] sm:$0xff]
    %v2892 = vld [vmem:[%s2886 + $0x28] sm:$0xff]
    %v2893 = vld [vmem:[%s2886 + $0x30] sm:$0xff]
    %v2894 = vld [vmem:[%s2886 + $0x38] sm:$0xff]
    %v2895 = vld [vmem:[%s2886 + $0x40] sm:$0xff]
    %v2896 = vld [vmem:[%s2886 + $0x48] sm:$0xff]
    %v2897 = vld [vmem:[%s2886 + $0x50] sm:$0xff]
    %v2898 = vld [vmem:[%s2886 + $0x58] sm:$0xff]
    %v2899 = vld [vmem:[%s2886 + $0x60] sm:$0xff]
    %v2900 = vld [vmem:[%s2886 + $0x68] sm:$0xff]
    %v2901 = vld [vmem:[%s2886 + $0x70] sm:$0xff]
    %v2902 = vld [vmem:[%s2886 + $0x78] sm:$0xff]
    %v2903 = vld [vmem:[%s2 + $0x1] sm:$0x1]
    %v2904 = vperm.slane %v2903, 0
    %2905 = vmatpush.msra.mxu0 %v2902
    %2906 = vmatpush.msra.mxu0 %v2901
    %2907 = vmatpush.msra.mxu0 %v2900
    %2908 = vmatpush.msra.mxu0 %v2899
    %2909 = vmatpush.msra.mxu0 %v2898
    %2910 = vmatpush.msra.mxu0 %v2897
    %2911 = vmatpush.msra.mxu0 %v2896
    %2912 = vmatpush.msra.mxu0 %v2895
    %2913 = vmatpush.msra.mxu0 %v2894
    %2914 = vmatpush.msra.mxu0 %v2893
    %2915 = vmatpush.msra.mxu0 %v2892
    %2916 = vmatpush.msra.mxu0 %v2891
    %2917 = vmatpush.msra.mxu0 %v2890
    %2918 = vmatpush.msra.mxu0 %v2889
    %2919 = vmatpush.msra.mxu0 %v2888
    %2920 = vmatpush.msra.mxu0 %v2887
    %2921 = vmatmul.f32.gmra.mxu0 %v2854
    %v2922 = vpop.f32.mrf.mxu0
    %v2923 = vadd.f32 %v2904, %v2922
    %2924 = vmatmul.f32.gmra.mxu0 %v2855
    %v2925 = vpop.f32.mrf.mxu0
    %v2926 = vadd.f32 %v2904, %v2925
    %2927 = vmatmul.f32.gmra.mxu0 %v2856
    %v2928 = vpop.f32.mrf.mxu0
    %v2929 = vadd.f32 %v2904, %v2928
    %2930 = vmatmul.f32.gmra.mxu0 %v2857
    %v2931 = vpop.f32.mrf.mxu0
    %v2932 = vadd.f32 %v2904, %v2931
    %2933 = vmatmul.f32.gmra.mxu0 %v2858
    %v2934 = vpop.f32.mrf.mxu0
    %v2935 = vadd.f32 %v2904, %v2934
    %2936 = vmatmul.f32.gmra.mxu0 %v2859
    %v2937 = vpop.f32.mrf.mxu0
    %v2938 = vadd.f32 %v2904, %v2937
    %2939 = vmatmul.f32.gmra.mxu0 %v2860
    %v2940 = vpop.f32.mrf.mxu0
    %v2941 = vadd.f32 %v2904, %v2940
    %2942 = vmatmul.f32.gmra.mxu0 %v2861
    %v2943 = vpop.f32.mrf.mxu0
    %v2944 = vadd.f32 %v2904, %v2943
    %2945 = vmatmul.f32.gmra.mxu0 %v2862
    %v2946 = vpop.f32.mrf.mxu0
    %v2947 = vadd.f32 %v2904, %v2946
    %2948 = vmatmul.f32.gmra.mxu0 %v2863
    %v2949 = vpop.f32.mrf.mxu0
    %v2950 = vadd.f32 %v2904, %v2949
    %2951 = vmatmul.f32.gmra.mxu0 %v2864
    %v2952 = vpop.f32.mrf.mxu0
    %v2953 = vadd.f32 %v2904, %v2952
    %2954 = vmatmul.f32.gmra.mxu0 %v2865
    %v2955 = vpop.f32.mrf.mxu0
    %v2956 = vadd.f32 %v2904, %v2955
    %2957 = vmatmul.f32.gmra.mxu0 %v2866
    %v2958 = vpop.f32.mrf.mxu0
    %v2959 = vadd.f32 %v2904, %v2958
    %2960 = vmatmul.f32.gmra.mxu0 %v2867
    %v2961 = vpop.f32.mrf.mxu0
    %v2962 = vadd.f32 %v2904, %v2961
    %2963 = vmatmul.f32.gmra.mxu0 %v2868
    %v2964 = vpop.f32.mrf.mxu0
    %v2965 = vadd.f32 %v2904, %v2964
    %2966 = vmatmul.f32.gmra.mxu0 %v2869
    %v2967 = vpop.f32.mrf.mxu0
    %v2968 = vadd.f32 %v2904, %v2967
    %2969 = vmatmul.f32.gmra.mxu0 %v2870
    %v2970 = vpop.f32.mrf.mxu0
    %v2971 = vadd.f32 %v2904, %v2970
    %2972 = vmatmul.f32.gmra.mxu0 %v2871
    %v2973 = vpop.f32.mrf.mxu0
    %v2974 = vadd.f32 %v2904, %v2973
    %2975 = vmatmul.f32.gmra.mxu0 %v2872
    %v2976 = vpop.f32.mrf.mxu0
    %v2977 = vadd.f32 %v2904, %v2976
    %2978 = vmatmul.f32.gmra.mxu0 %v2873
    %v2979 = vpop.f32.mrf.mxu0
    %v2980 = vadd.f32 %v2904, %v2979
    %2981 = vmatmul.f32.gmra.mxu0 %v2874
    %v2982 = vpop.f32.mrf.mxu0
    %v2983 = vadd.f32 %v2904, %v2982
    %2984 = vmatmul.f32.gmra.mxu0 %v2875
    %v2985 = vpop.f32.mrf.mxu0
    %v2986 = vadd.f32 %v2904, %v2985
    %2987 = vmatmul.f32.gmra.mxu0 %v2876
    %v2988 = vpop.f32.mrf.mxu0
    %v2989 = vadd.f32 %v2904, %v2988
    %2990 = vmatmul.f32.gmra.mxu0 %v2877
    %v2991 = vpop.f32.mrf.mxu0
    %v2992 = vadd.f32 %v2904, %v2991
    %2993 = vmatmul.f32.gmra.mxu0 %v2878
    %v2994 = vpop.f32.mrf.mxu0
    %v2995 = vadd.f32 %v2904, %v2994
    %2996 = vmatmul.f32.gmra.mxu0 %v2879
    %v2997 = vpop.f32.mrf.mxu0
    %v2998 = vadd.f32 %v2904, %v2997
    %2999 = vmatmul.f32.gmra.mxu0 %v2880
    %v3000 = vpop.f32.mrf.mxu0
    %v3001 = vadd.f32 %v2904, %v3000
    %3002 = vmatmul.f32.gmra.mxu0 %v2881
    %v3003 = vpop.f32.mrf.mxu0
    %v3004 = vadd.f32 %v2904, %v3003
    %3005 = vmatmul.f32.gmra.mxu0 %v2882
    %v3006 = vpop.f32.mrf.mxu0
    %v3007 = vadd.f32 %v2904, %v3006
    %3008 = vmatmul.f32.gmra.mxu0 %v2883
    %v3009 = vpop.f32.mrf.mxu0
    %v3010 = vadd.f32 %v2904, %v3009
    %3011 = vmatmul.f32.gmra.mxu0 %v2884
    %v3012 = vpop.f32.mrf.mxu0
    %v3013 = vadd.f32 %v2904, %v3012
    %3014 = vmatmul.f32.gmra.mxu0 %v2885
    %v3015 = vpop.f32.mrf.mxu0
    %v3016 = vadd.f32 %v2904, %v3015
    %3017 = vdwg.mxu0
    %3018 = vst.msk [vmem:[%s3] sm:$0xff] %vm64, %v2923
    %3019 = vst.msk [vmem:[%s3 + $0x8] sm:$0xff] %vm64, %v2926
    %3020 = vst.msk [vmem:[%s3 + $0x10] sm:$0xff] %vm64, %v2929
    %3021 = vst.msk [vmem:[%s3 + $0x18] sm:$0xff] %vm64, %v2932
    %3022 = vst.msk [vmem:[%s3 + $0x20] sm:$0xff] %vm64, %v2935
    %3023 = vst.msk [vmem:[%s3 + $0x28] sm:$0xff] %vm64, %v2938
    %3024 = vst.msk [vmem:[%s3 + $0x30] sm:$0xff] %vm64, %v2941
    %3025 = vst.msk [vmem:[%s3 + $0x38] sm:$0xff] %vm64, %v2944
    %3026 = vst.msk [vmem:[%s3 + $0x40] sm:$0xff] %vm64, %v2947
    %3027 = vst.msk [vmem:[%s3 + $0x48] sm:$0xff] %vm64, %v2950
    %3028 = vst.msk [vmem:[%s3 + $0x50] sm:$0xff] %vm64, %v2953
    %3029 = vst.msk [vmem:[%s3 + $0x58] sm:$0xff] %vm64, %v2956
    %3030 = vst.msk [vmem:[%s3 + $0x60] sm:$0xff] %vm64, %v2959
    %3031 = vst.msk [vmem:[%s3 + $0x68] sm:$0xff] %vm64, %v2962
    %3032 = vst.msk [vmem:[%s3 + $0x70] sm:$0xff] %vm64, %v2965
    %3033 = vst.msk [vmem:[%s3 + $0x78] sm:$0xff] %vm64, %v2968
    %3034 = vst.msk [vmem:[%s3 + $0x80] sm:$0xff] %vm64, %v2971
    %3035 = vst.msk [vmem:[%s3 + $0x88] sm:$0xff] %vm64, %v2974
    %3036 = vst.msk [vmem:[%s3 + $0x90] sm:$0xff] %vm64, %v2977
    %3037 = vst.msk [vmem:[%s3 + $0x98] sm:$0xff] %vm64, %v2980
    %3038 = vst.msk [vmem:[%s3 + $0xa0] sm:$0xff] %vm64, %v2983
    %3039 = vst.msk [vmem:[%s3 + $0xa8] sm:$0xff] %vm64, %v2986
    %3040 = vst.msk [vmem:[%s3 + $0xb0] sm:$0xff] %vm64, %v2989
    %3041 = vst.msk [vmem:[%s3 + $0xb8] sm:$0xff] %vm64, %v2992
    %3042 = vst.msk [vmem:[%s3 + $0xc0] sm:$0xff] %vm64, %v2995
    %3043 = vst.msk [vmem:[%s3 + $0xc8] sm:$0xff] %vm64, %v2998
    %3044 = vst.msk [vmem:[%s3 + $0xd0] sm:$0xff] %vm64, %v3001
    %3045 = vst.msk [vmem:[%s3 + $0xd8] sm:$0xff] %vm64, %v3004
    %3046 = vst.msk [vmem:[%s3 + $0xe0] sm:$0xff] %vm64, %v3007
    %3047 = vst.msk [vmem:[%s3 + $0xe8] sm:$0xff] %vm64, %v3010
    %3048 = vst.msk [vmem:[%s3 + $0xf0] sm:$0xff] %vm64, %v3013
    %3049 = vst.msk [vmem:[%s3 + $0xf8] sm:$0xff] %vm64, %v3016
    // Predicated region
    $region18: #{deep_autoencoder.1} parent=1 // pred_check
      _
    $region19: #{deep_autoencoder.1} parent=1 // pred_check_branch
      %3051 = sbr.rel (0) target = $region21
    $region20: #{deep_autoencoder.1} parent=1 // pred_region
      _
    $region21: #{deep_autoencoder.1} parent=1 // pred_fallthru
      _
    // Predicated region
    $region22: #{deep_autoencoder.1} parent=1 // pred_check
      _
    $region23: #{deep_autoencoder.1} parent=1 // pred_check_branch
      %3053 = sbr.rel (0) target = $region25
    $region24: #{deep_autoencoder.1} parent=1 // pred_region
      _
    $region25: #{deep_autoencoder.1} parent=1 // pred_fallthru
      _
    %3054 = vsyncpa [#allocation3], 1

</llo_original>
